<compile_context>
chip_gen: v5e
topology: v5e:2x2
jax: 0.10.0
libtpu: 0.0.40
codegen_flags: <defaults>
</compile_context>

<pallas_src>
import numpy as np

import jax
import jax.numpy as jnp
from jax import lax
from jax.experimental import pallas as pl
from jax.experimental.pallas import tpu as pltpu

NEG_SLOPE = 0.2


# ----------------------------------------------------------------------------
# Fused whole-network kernel: 4 x (fat dot + bias + LeakyReLU) + adv epilogue
# ----------------------------------------------------------------------------
def _discriminator_kernel(x_ref,
                          m1_ref, b1_ref, m2_ref, b2_ref,
                          m3_ref, b3_ref, m4_ref, b4_ref,
                          wadv_ref, badv_ref, out_ref):
    def conv_block(x, m_ref, b_ref):
        # One fat MXU dot per conv layer (K = Hin*Win*Cin), f32 accumulation.
        y = jnp.dot(x, m_ref[...], preferred_element_type=jnp.float32)
        y = y + b_ref[...]                       # bias, broadcast over rows
        # LeakyReLU(0.2); Dropout2d(0.25) is identity in eval mode.
        return jnp.where(y >= 0, y, NEG_SLOPE * y)

    x = x_ref[...]                               # (Bt, H*W*C) f32
    x = conv_block(x, m1_ref, b1_ref)
    x = conv_block(x, m2_ref, b2_ref)
    x = conv_block(x, m3_ref, b3_ref)
    x = conv_block(x, m4_ref, b4_ref)            # (Bt, ds*ds*128) f32
    # adv_layer: Linear(ds*ds*128 -> 1) as VPU multiply + lane reduction.
    v = jnp.sum(x * wadv_ref[...], axis=1, keepdims=True) + badv_ref[...]
    out_ref[...] = v                             # (Bt, 1) f32


# ----------------------------------------------------------------------------
# Wrapper-side weight lowering: Conv2d(3, stride=2, pad=1) -> dense matrix
# ----------------------------------------------------------------------------
def _conv_out_hw(h_in, w_in):
    return (h_in + 2 - 3) // 2 + 1, (w_in + 2 - 3) // 2 + 1


def _lowering_pattern(h_in, w_in):
    """Constant 0/1 tensor L[p_in, tap, p_out] for Conv2d(3, stride=2, pad=1)."""
    h_out, w_out = _conv_out_hw(h_in, w_in)
    L = np.zeros((h_in * w_in, 9, h_out * w_out), np.float32)
    for oh in range(h_out):
        for ow in range(w_out):
            q = oh * w_out + ow
            for kh in range(3):
                for kw in range(3):
                    ih, iw = 2 * oh + kh - 1, 2 * ow + kw - 1
                    if 0 <= ih < h_in and 0 <= iw < w_in:
                        L[ih * w_in + iw, kh * 3 + kw, q] = 1.0
    return L, (h_out, w_out)


def _lower_conv(w, h_in, w_in):
    """(3,3,Cin,Cout) weight -> dense (Hin*Win*Cin, Hout*Wout*Cout) matrix."""
    cin, cout = w.shape[2], w.shape[3]
    L, (h_out, w_out) = _lowering_pattern(h_in, w_in)
    m = jnp.einsum("ptq,tcf->pcqf", jnp.asarray(L),
                   w.reshape(9, cin, cout).astype(jnp.float32))
    return m.reshape(h_in * w_in * cin, h_out * w_out * cout), (h_out, w_out)


# ----------------------------------------------------------------------------
# Discriminator forward (single fused pallas_call)
# ----------------------------------------------------------------------------
def discriminator_forward(img_nchw, params):
    """Forward pass matching the PyTorch Discriminator (eval mode)."""
    b, c, h, w = img_nchw.shape
    # NCHW -> NHWC flatten: row index = ((y * W) + x) * C + c
    x = jnp.transpose(img_nchw, (0, 2, 3, 1)).reshape(b, h * w * c)
    x = x.astype(jnp.float32)

    # Lower each conv layer to a dense matrix + position-tiled bias row.
    mats, biases = [], []
    hh, ww = h, w
    for (wconv, bias) in params["convs"]:
        m, (ho, wo) = _lower_conv(wconv, hh, ww)
        mats.append(m)
        biases.append(jnp.tile(bias.astype(jnp.float32), ho * wo).reshape(1, -1))
        hh, ww = ho, wo

    # adv_layer: permute w_adv from NCHW-flatten order into NHWC-flatten order.
    c_last = params["convs"][-1][0].shape[-1]
    w_adv, b_adv = params["adv"]
    w_adv_perm = (w_adv[:, 0].reshape(c_last, hh, ww).transpose(1, 2, 0)
                  .reshape(1, hh * ww * c_last).astype(jnp.float32))
    b_adv = b_adv.reshape(1, 1).astype(jnp.float32)

    # Batch tiling: 8-sublane-aligned tiles; >=2 grid steps when B >= 2 so
    # both v7x TensorCores get work (negligible cost on single-TC v5e/v6e).
    bt = 8
    n_tiles = max(1, -(-b // bt))
    if b >= 2 and n_tiles < 2:
        n_tiles = 2
    b_pad = n_tiles * bt
    if b_pad != b:
        x = jnp.pad(x, ((0, b_pad - b), (0, 0)))

    k0 = x.shape[1]
    operands = [x]
    in_specs = [pl.BlockSpec((bt, k0), lambda i: (i, 0))]
    for m, bb in zip(mats, biases):
        operands.extend([m, bb])
        in_specs.append(pl.BlockSpec(m.shape, lambda i: (0, 0)))   # resident
        in_specs.append(pl.BlockSpec(bb.shape, lambda i: (0, 0)))  # resident
    operands.extend([w_adv_perm, b_adv])
    in_specs.append(pl.BlockSpec(w_adv_perm.shape, lambda i: (0, 0)))
    in_specs.append(pl.BlockSpec(b_adv.shape, lambda i: (0, 0)))

    out = pl.pallas_call(
        _discriminator_kernel,
        out_shape=jax.ShapeDtypeStruct((b_pad, 1), jnp.float32),
        grid=(n_tiles,),
        in_specs=in_specs,
        out_specs=pl.BlockSpec((bt, 1), lambda i: (i, 0)),
        compiler_params=pltpu.CompilerParams(
            dimension_semantics=("parallel",),
            vmem_limit_bytes=32 * 1024 * 1024),
    )(*operands)
    return out[:b]                               # (N, 1) f32


# ----------------------------------------------------------------------------
# Deterministic parameter init (shapes from the module's __init__)
# ----------------------------------------------------------------------------
def init_params(key, channels, img_size):
    chans = [channels, 16, 32, 64, 128]
    convs = []
    for i in range(4):
        key, kw_, kb_ = jax.random.split(key, 3)
        cin, cout = chans[i], chans[i + 1]
        w = 0.2 * jax.random.normal(kw_, (3, 3, cin, cout), jnp.float32)
        b = 0.2 * jax.random.normal(kb_, (cout,), jnp.float32)
        convs.append((w, b))
    ds = img_size // 2 ** 4
    key, kw_, kb_ = jax.random.split(key, 3)
    w_adv = 0.2 * jax.random.normal(kw_, (128 * ds * ds, 1), jnp.float32)
    b_adv = 0.2 * jax.random.normal(kb_, (1, 1), jnp.float32)
    return {"convs": convs, "adv": (w_adv, b_adv)}


# ----------------------------------------------------------------------------
# Pure-JAX f32 reference (for correctness check only)
# ----------------------------------------------------------------------------
def reference_forward(img_nchw, params):
    x = jnp.transpose(img_nchw, (0, 2, 3, 1))
    for (w, b) in params["convs"]:
        y = lax.conv_general_dilated(
            x, w, window_strides=(2, 2), padding=((1, 1), (1, 1)),
            dimension_numbers=("NHWC", "HWIO", "NHWC"))
        y = y + b.reshape(1, 1, 1, -1)
        x = jnp.where(y >= 0, y, NEG_SLOPE * y)
    feats = jnp.transpose(x, (0, 3, 1, 2)).reshape(x.shape[0], -1)
    w_adv, b_adv = params["adv"]
    return feats @ w_adv + b_adv


if __name__ == "__main__":
    config = {"channels": 4, "img_size": 16}
    batch = 2

    key = jax.random.PRNGKey(0)
    k_img, k_par = jax.random.split(key)
    img = jax.random.normal(
        k_img, (batch, config["channels"], config["img_size"],
                config["img_size"]), jnp.float32)
    params = init_params(k_par, config["channels"], config["img_size"])

    fwd = jax.jit(discriminator_forward)
    out = jax.block_until_ready(fwd(img, params))
    assert out.shape == (batch, 1), out.shape

    ref = reference_forward(img, params)
    # f32 end-to-end; modest tolerance for MXU accumulation-order differences.
    assert jnp.allclose(out, ref, rtol=2e-2, atol=2e-2), (out, ref)

    print("KERNEL_OK")
</pallas_src>

<mosaic_0001>
module attributes {stable_mosaic.version = 11 : i64} {
  func.func @_discriminator_kernel(%arg0: i32, %arg1: memref<8x1024xf32, #tpu.memory_space<vmem>>, %arg2: memref<1024x1024xf32, #tpu.memory_space<vmem>>, %arg3: memref<1x1024xf32, #tpu.memory_space<vmem>>, %arg4: memref<1024x512xf32, #tpu.memory_space<vmem>>, %arg5: memref<1x512xf32, #tpu.memory_space<vmem>>, %arg6: memref<512x256xf32, #tpu.memory_space<vmem>>, %arg7: memref<1x256xf32, #tpu.memory_space<vmem>>, %arg8: memref<256x128xf32, #tpu.memory_space<vmem>>, %arg9: memref<1x128xf32, #tpu.memory_space<vmem>>, %arg10: memref<1x128xf32, #tpu.memory_space<vmem>>, %arg11: memref<1x1xf32, #tpu.memory_space<vmem>>, %arg12: memref<8x1xf32, #tpu.memory_space<vmem>>) attributes {dimension_semantics = [#tpu.dimension_semantics<parallel>], iteration_bounds = array<i64: 2>, scalar_prefetch = 0 : i64, scratch_operands = 0 : i64, tpu.core_type = #tpu.core_type<tc>, window_params = [{transform_indices = @transform_0, window_bounds = array<i64: 8, 1024>}, {pipeline_mode = #tpu.pipeline_mode<synchronous>, transform_indices = @transform_1, window_bounds = array<i64: 1024, 1024>}, {pipeline_mode = #tpu.pipeline_mode<synchronous>, transform_indices = @transform_2, window_bounds = array<i64: 1, 1024>}, {pipeline_mode = #tpu.pipeline_mode<synchronous>, transform_indices = @transform_3, window_bounds = array<i64: 1024, 512>}, {pipeline_mode = #tpu.pipeline_mode<synchronous>, transform_indices = @transform_4, window_bounds = array<i64: 1, 512>}, {pipeline_mode = #tpu.pipeline_mode<synchronous>, transform_indices = @transform_5, window_bounds = array<i64: 512, 256>}, {pipeline_mode = #tpu.pipeline_mode<synchronous>, transform_indices = @transform_6, window_bounds = array<i64: 1, 256>}, {pipeline_mode = #tpu.pipeline_mode<synchronous>, transform_indices = @transform_7, window_bounds = array<i64: 256, 128>}, {pipeline_mode = #tpu.pipeline_mode<synchronous>, transform_indices = @transform_8, window_bounds = array<i64: 1, 128>}, {pipeline_mode = #tpu.pipeline_mode<synchronous>, transform_indices = @transform_9, window_bounds = array<i64: 1, 128>}, {pipeline_mode = #tpu.pipeline_mode<synchronous>, transform_indices = @transform_10, window_bounds = array<i64: 1, 1>}, {transform_indices = @transform_11, window_bounds = array<i64: 8, 1>}]} {
    %c0 = arith.constant 0 : index
    %c0_0 = arith.constant 0 : index
    %0 = vector.load %arg1[%c0, %c0_0] : memref<8x1024xf32, #tpu.memory_space<vmem>>, vector<8x1024xf32>
    %c0_1 = arith.constant 0 : index
    %c0_2 = arith.constant 0 : index
    %1 = vector.load %arg2[%c0_1, %c0_2] : memref<1024x1024xf32, #tpu.memory_space<vmem>>, vector<1024x1024xf32>
    %cst = arith.constant dense<0.000000e+00> : vector<8x1024xf32>
    %2 = tpu.matmul %0, %1, %cst {dimension_numbers = #tpu.dot_dimension_numbers<[1], [0], [0], [1], [0, 0, 1, 1], [], []>} : vector<8x1024xf32>, vector<1024x1024xf32>, vector<8x1024xf32> -> vector<8x1024xf32>
    %c0_3 = arith.constant 0 : index
    %c0_4 = arith.constant 0 : index
    %3 = vector.load %arg3[%c0_3, %c0_4] : memref<1x1024xf32, #tpu.memory_space<vmem>>, vector<1x1024xf32>
    %4 = vector.broadcast %3 : vector<1x1024xf32> to vector<8x1024xf32>
    %5 = arith.addf %2, %4 : vector<8x1024xf32>
    %cst_5 = arith.constant 0.000000e+00 : f32
    %6 = vector.broadcast %cst_5 : f32 to vector<8x1024xf32>
    %7 = arith.cmpf oge, %5, %6 : vector<8x1024xf32>
    %cst_6 = arith.constant 2.000000e-01 : f32
    %8 = vector.broadcast %cst_6 : f32 to vector<8x1024xf32>
    %9 = arith.mulf %8, %5 : vector<8x1024xf32>
    %10 = arith.select %7, %5, %9 : vector<8x1024xi1>, vector<8x1024xf32>
    %c0_7 = arith.constant 0 : index
    %c0_8 = arith.constant 0 : index
    %11 = vector.load %arg4[%c0_7, %c0_8] : memref<1024x512xf32, #tpu.memory_space<vmem>>, vector<1024x512xf32>
    %cst_9 = arith.constant dense<0.000000e+00> : vector<8x512xf32>
    %12 = tpu.matmul %10, %11, %cst_9 {dimension_numbers = #tpu.dot_dimension_numbers<[1], [0], [0], [1], [0, 0, 1, 1], [], []>} : vector<8x1024xf32>, vector<1024x512xf32>, vector<8x512xf32> -> vector<8x512xf32>
    %c0_10 = arith.constant 0 : index
    %c0_11 = arith.constant 0 : index
    %13 = vector.load %arg5[%c0_10, %c0_11] : memref<1x512xf32, #tpu.memory_space<vmem>>, vector<1x512xf32>
    %14 = vector.broadcast %13 : vector<1x512xf32> to vector<8x512xf32>
    %15 = arith.addf %12, %14 : vector<8x512xf32>
    %cst_12 = arith.constant 0.000000e+00 : f32
    %16 = vector.broadcast %cst_12 : f32 to vector<8x512xf32>
    %17 = arith.cmpf oge, %15, %16 : vector<8x512xf32>
    %cst_13 = arith.constant 2.000000e-01 : f32
    %18 = vector.broadcast %cst_13 : f32 to vector<8x512xf32>
    %19 = arith.mulf %18, %15 : vector<8x512xf32>
    %20 = arith.select %17, %15, %19 : vector<8x512xi1>, vector<8x512xf32>
    %c0_14 = arith.constant 0 : index
    %c0_15 = arith.constant 0 : index
    %21 = vector.load %arg6[%c0_14, %c0_15] : memref<512x256xf32, #tpu.memory_space<vmem>>, vector<512x256xf32>
    %cst_16 = arith.constant dense<0.000000e+00> : vector<8x256xf32>
    %22 = tpu.matmul %20, %21, %cst_16 {dimension_numbers = #tpu.dot_dimension_numbers<[1], [0], [0], [1], [0, 0, 1, 1], [], []>} : vector<8x512xf32>, vector<512x256xf32>, vector<8x256xf32> -> vector<8x256xf32>
    %c0_17 = arith.constant 0 : index
    %c0_18 = arith.constant 0 : index
    %23 = vector.load %arg7[%c0_17, %c0_18] : memref<1x256xf32, #tpu.memory_space<vmem>>, vector<1x256xf32>
    %24 = vector.broadcast %23 : vector<1x256xf32> to vector<8x256xf32>
    %25 = arith.addf %22, %24 : vector<8x256xf32>
    %cst_19 = arith.constant 0.000000e+00 : f32
    %26 = vector.broadcast %cst_19 : f32 to vector<8x256xf32>
    %27 = arith.cmpf oge, %25, %26 : vector<8x256xf32>
    %cst_20 = arith.constant 2.000000e-01 : f32
    %28 = vector.broadcast %cst_20 : f32 to vector<8x256xf32>
    %29 = arith.mulf %28, %25 : vector<8x256xf32>
    %30 = arith.select %27, %25, %29 : vector<8x256xi1>, vector<8x256xf32>
    %c0_21 = arith.constant 0 : index
    %c0_22 = arith.constant 0 : index
    %31 = vector.load %arg8[%c0_21, %c0_22] : memref<256x128xf32, #tpu.memory_space<vmem>>, vector<256x128xf32>
    %cst_23 = arith.constant dense<0.000000e+00> : vector<8x128xf32>
    %32 = tpu.matmul %30, %31, %cst_23 {dimension_numbers = #tpu.dot_dimension_numbers<[1], [0], [0], [1], [0, 0, 1, 1], [], []>} : vector<8x256xf32>, vector<256x128xf32>, vector<8x128xf32> -> vector<8x128xf32>
    %c0_24 = arith.constant 0 : index
    %c0_25 = arith.constant 0 : index
    %33 = vector.load %arg9[%c0_24, %c0_25] : memref<1x128xf32, #tpu.memory_space<vmem>>, vector<1x128xf32>
    %34 = vector.broadcast %33 : vector<1x128xf32> to vector<8x128xf32>
    %35 = arith.addf %32, %34 : vector<8x128xf32>
    %cst_26 = arith.constant 0.000000e+00 : f32
    %36 = vector.broadcast %cst_26 : f32 to vector<8x128xf32>
    %37 = arith.cmpf oge, %35, %36 : vector<8x128xf32>
    %cst_27 = arith.constant 2.000000e-01 : f32
    %38 = vector.broadcast %cst_27 : f32 to vector<8x128xf32>
    %39 = arith.mulf %38, %35 : vector<8x128xf32>
    %40 = arith.select %37, %35, %39 : vector<8x128xi1>, vector<8x128xf32>
    %c0_28 = arith.constant 0 : index
    %c0_29 = arith.constant 0 : index
    %41 = vector.load %arg10[%c0_28, %c0_29] : memref<1x128xf32, #tpu.memory_space<vmem>>, vector<1x128xf32>
    %42 = vector.broadcast %41 : vector<1x128xf32> to vector<8x128xf32>
    %43 = arith.mulf %40, %42 : vector<8x128xf32>
    %cst_30 = arith.constant dense<0.000000e+00> : vector<8xf32>
    %44 = vector.multi_reduction <add>, %43, %cst_30 [1] : vector<8x128xf32> to vector<8xf32>
    %45 = vector.shape_cast %44 : vector<8xf32> to vector<8x1xf32>
    %c0_31 = arith.constant 0 : index
    %c0_32 = arith.constant 0 : index
    %46 = vector.load %arg11[%c0_31, %c0_32] : memref<1x1xf32, #tpu.memory_space<vmem>>, vector<1x1xf32>
    %47 = vector.broadcast %46 : vector<1x1xf32> to vector<8x1xf32>
    %48 = arith.addf %45, %47 : vector<8x1xf32>
    %c0_33 = arith.constant 0 : index
    %c0_34 = arith.constant 0 : index
    %49 = vector.load %arg12[%c0_33, %c0_34] : memref<8x1xf32, #tpu.memory_space<vmem>>, vector<8x1xf32>
    tpu.vector_store %arg12[%c0_33, %c0_34], %48 {strides = array<i32>} : memref<8x1xf32, #tpu.memory_space<vmem>>, vector<8x1xf32>,
    return
  }
  func.func @transform_0(%arg0: i32) -> (i32, i32) {
    %c0_i32 = arith.constant 0 : i32
    %c0_i32_0 = arith.constant 0 : i32
    return %arg0, %c0_i32 : i32, i32
  }
  func.func @transform_1(%arg0: i32) -> (i32, i32) {
    %c0_i32 = arith.constant 0 : i32
    %c0_i32_0 = arith.constant 0 : i32
    %c0_i32_1 = arith.constant 0 : i32
    return %c0_i32, %c0_i32_0 : i32, i32
  }
  func.func @transform_2(%arg0: i32) -> (i32, i32) {
    %c0_i32 = arith.constant 0 : i32
    %c0_i32_0 = arith.constant 0 : i32
    %c0_i32_1 = arith.constant 0 : i32
    return %c0_i32, %c0_i32_0 : i32, i32
  }
  func.func @transform_3(%arg0: i32) -> (i32, i32) {
    %c0_i32 = arith.constant 0 : i32
    %c0_i32_0 = arith.constant 0 : i32
    %c0_i32_1 = arith.constant 0 : i32
    return %c0_i32, %c0_i32_0 : i32, i32
  }
  func.func @transform_4(%arg0: i32) -> (i32, i32) {
    %c0_i32 = arith.constant 0 : i32
    %c0_i32_0 = arith.constant 0 : i32
    %c0_i32_1 = arith.constant 0 : i32
    return %c0_i32, %c0_i32_0 : i32, i32
  }
  func.func @transform_5(%arg0: i32) -> (i32, i32) {
    %c0_i32 = arith.constant 0 : i32
    %c0_i32_0 = arith.constant 0 : i32
    %c0_i32_1 = arith.constant 0 : i32
    return %c0_i32, %c0_i32_0 : i32, i32
  }
  func.func @transform_6(%arg0: i32) -> (i32, i32) {
    %c0_i32 = arith.constant 0 : i32
    %c0_i32_0 = arith.constant 0 : i32
    %c0_i32_1 = arith.constant 0 : i32
    return %c0_i32, %c0_i32_0 : i32, i32
  }
  func.func @transform_7(%arg0: i32) -> (i32, i32) {
    %c0_i32 = arith.constant 0 : i32
    %c0_i32_0 = arith.constant 0 : i32
    %c0_i32_1 = arith.constant 0 : i32
    return %c0_i32, %c0_i32_0 : i32, i32
  }
  func.func @transform_8(%arg0: i32) -> (i32, i32) {
    %c0_i32 = arith.constant 0 : i32
    %c0_i32_0 = arith.constant 0 : i32
    %c0_i32_1 = arith.constant 0 : i32
    return %c0_i32, %c0_i32_0 : i32, i32
  }
  func.func @transform_9(%arg0: i32) -> (i32, i32) {
    %c0_i32 = arith.constant 0 : i32
    %c0_i32_0 = arith.constant 0 : i32
    %c0_i32_1 = arith.constant 0 : i32
    return %c0_i32, %c0_i32_0 : i32, i32
  }
  func.func @transform_10(%arg0: i32) -> (i32, i32) {
    %c0_i32 = arith.constant 0 : i32
    %c0_i32_0 = arith.constant 0 : i32
    %c0_i32_1 = arith.constant 0 : i32
    return %c0_i32, %c0_i32_0 : i32, i32
  }
  func.func @transform_11(%arg0: i32) -> (i32, i32) {
    %c0_i32 = arith.constant 0 : i32
    %c0_i32_0 = arith.constant 0 : i32
    return %arg0, %c0_i32 : i32, i32
  }
}

</mosaic_0001>

<llo_original>
// kernel: tile.19
$region0: #{tile.19}
  #allocation0 [shape = 's32[1]{0}', space=sflag, size = 0x4, scoped, tag = 'scoped memory for tile.19']
  %s0 = inlined_call_operand.vmem [shape: f32[16], index: 0, kind: input, shape index: {}]
  %s1 = inlined_call_operand.vmem [shape: f32[64,16], index: 1, kind: output, shape index: {}]
  // Predicated region
  $region2: #{tile.19} parent=0 // pred_check
    _
  $region3: #{tile.19} parent=0 // pred_check_branch
    %3 = sbr.rel (0) target = $region5
  $region4: #{tile.19} parent=0 // pred_region
    _
  $region5: #{tile.19} parent=0 // pred_fallthru
    _
  %v4 = vld [vmem:[%s0] ss:$0 sm:$0xff]
  %5 = vst [vmem:[%s1] sm:$0xff] %v4
  %s6 = scalar_lea.vmem %s1, 8
  %7 = vst [vmem:[%s6] sm:$0xff] %v4
  %s8 = scalar_lea.vmem %s1, 16
  %9 = vst [vmem:[%s8] sm:$0xff] %v4
  %s10 = scalar_lea.vmem %s1, 24
  %11 = vst [vmem:[%s10] sm:$0xff] %v4
  %s12 = scalar_lea.vmem %s1, 32
  %13 = vst [vmem:[%s12] sm:$0xff] %v4
  %s14 = scalar_lea.vmem %s1, 40
  %15 = vst [vmem:[%s14] sm:$0xff] %v4
  %s16 = scalar_lea.vmem %s1, 48
  %17 = vst [vmem:[%s16] sm:$0xff] %v4
  %s18 = scalar_lea.vmem %s1, 56
  %19 = vst [vmem:[%s18] sm:$0xff] %v4

// kernel: tile.20
$region0: #{tile.20}
  %s0 = inlined_call_operand.vmem [shape: f32[64,16], index: 0, kind: input, shape index: {}]
  %s1 = inlined_call_operand.vmem [shape: f32[1,1024], index: 1, kind: output, shape index: {}]
  $region1: #{tile.20} parent=0
    #allocation0 [shape = 'u8[32768]{0}', space=vmem, size = 0x8000, scoped, tag = 'scoped mem for output reshape']
    %v2 = vld [vmem:[%s0] ss:$8 sm:$0xf]
    %v3 = vld [vmem:[%s0] ss:$8 sm:$0xf0]
    %vm4 = vcmask 1047556
    %v5 = vsel %vm4, %v3, %v2
    %vm6 = vcmask 130048
    %7 = vst.msk [vmem:[#allocation0] ss:$8 sm:$0xf] %vm6, %v5
    %8 = vst.msk [vmem:[#allocation0] ss:$8 sm:$0xf0] %vm6, %v5
    %s9 = scalar_lea.vmem %s0, 7
    %v10 = vld [vmem:[%s9] ss:$8 sm:$0xf]
    %s11 = scalar_lea.vmem %s0, 7
    %v12 = vld [vmem:[%s11] ss:$8 sm:$0xf0]
    %vm13 = vcmask 1047556
    %v14 = vsel %vm13, %v12, %v10
    %15 = vrot.lane.b32.xlu0 %v14, 112
    %v16 = vpop.permute.xlu0 %15
    %vm17 = vcmask 1048448
    %18 = vst.msk [vmem:[#allocation0] ss:$8 sm:$0xf] %vm17, %v16
    %19 = vst.msk [vmem:[#allocation0] ss:$8 sm:$0xf0] %vm17, %v16
    %s20 = scalar_lea.vmem %s0, 6
    %v21 = vld [vmem:[%s20] ss:$8 sm:$0xf]
    %s22 = scalar_lea.vmem %s0, 6
    %v23 = vld [vmem:[%s22] ss:$8 sm:$0xf0]
    %vm24 = vcmask 1047556
    %v25 = vsel %vm24, %v23, %v21
    %26 = vrot.lane.b32.xlu0 %v25, 96
    %v27 = vpop.permute.xlu0 %26
    %vm28 = vcmask 917248
    %29 = vst.msk [vmem:[#allocation0] ss:$8 sm:$0xf] %vm28, %v27
    %30 = vst.msk [vmem:[#allocation0] ss:$8 sm:$0xf0] %vm28, %v27
    %s31 = scalar_lea.vmem %s0, 5
    %v32 = vld [vmem:[%s31] ss:$8 sm:$0xf]
    %s33 = scalar_lea.vmem %s0, 5
    %v34 = vld [vmem:[%s33] ss:$8 sm:$0xf0]
    %vm35 = vcmask 1047556
    %v36 = vsel %vm35, %v34, %v32
    %37 = vrot.lane.b32.xlu0 %v36, 80
    %v38 = vpop.permute.xlu0 %37
    %vm39 = vcmask 786048
    %40 = vst.msk [vmem:[#allocation0] ss:$8 sm:$0xf] %vm39, %v38
    %41 = vst.msk [vmem:[#allocation0] ss:$8 sm:$0xf0] %vm39, %v38
    %s42 = scalar_lea.vmem %s0, 4
    %v43 = vld [vmem:[%s42] ss:$8 sm:$0xf]
    %s44 = scalar_lea.vmem %s0, 4
    %v45 = vld [vmem:[%s44] ss:$8 sm:$0xf0]
    %vm46 = vcmask 1047556
    %v47 = vsel %vm46, %v45, %v43
    %48 = vrot.lane.b32.xlu0 %v47, 64
    %v49 = vpop.permute.xlu0 %48
    %vm50 = vcmask 654848
    %51 = vst.msk [vmem:[#allocation0] ss:$8 sm:$0xf] %vm50, %v49
    %52 = vst.msk [vmem:[#allocation0] ss:$8 sm:$0xf0] %vm50, %v49
    %s53 = scalar_lea.vmem %s0, 3
    %v54 = vld [vmem:[%s53] ss:$8 sm:$0xf]
    %s55 = scalar_lea.vmem %s0, 3
    %v56 = vld [vmem:[%s55] ss:$8 sm:$0xf0]
    %vm57 = vcmask 1047556
    %v58 = vsel %vm57, %v56, %v54
    %59 = vrot.lane.b32.xlu0 %v58, 48
    %v60 = vpop.permute.xlu0 %59
    %vm61 = vcmask 523648
    %62 = vst.msk [vmem:[#allocation0] ss:$8 sm:$0xf] %vm61, %v60
    %63 = vst.msk [vmem:[#allocation0] ss:$8 sm:$0xf0] %vm61, %v60
    %s64 = scalar_lea.vmem %s0, 2
    %v65 = vld [vmem:[%s64] ss:$8 sm:$0xf]
    %s66 = scalar_lea.vmem %s0, 2
    %v67 = vld [vmem:[%s66] ss:$8 sm:$0xf0]
    %vm68 = vcmask 1047556
    %v69 = vsel %vm68, %v67, %v65
    %70 = vrot.lane.b32.xlu0 %v69, 32
    %v71 = vpop.permute.xlu0 %70
    %vm72 = vcmask 392448
    %73 = vst.msk [vmem:[#allocation0] ss:$8 sm:$0xf] %vm72, %v71
    %74 = vst.msk [vmem:[#allocation0] ss:$8 sm:$0xf0] %vm72, %v71
    %s75 = scalar_lea.vmem %s0, 1
    %v76 = vld [vmem:[%s75] ss:$8 sm:$0xf]
    %s77 = scalar_lea.vmem %s0, 1
    %v78 = vld [vmem:[%s77] ss:$8 sm:$0xf0]
    %vm79 = vcmask 1047556
    %v80 = vsel %vm79, %v78, %v76
    %81 = vrot.lane.b32.xlu0 %v80, 16
    %v82 = vpop.permute.xlu0 %81
    %vm83 = vcmask 261248
    %84 = vst.msk [vmem:[#allocation0] ss:$8 sm:$0xf] %vm83, %v82
    %85 = vst.msk [vmem:[#allocation0] ss:$8 sm:$0xf0] %vm83, %v82
    %s87 = ssub.s32 2, 1
    %v88 = vld [vmem:[#allocation0] sm:%s87]
    %s90 = ssub.s32 2, 1
    %91 = vst [vmem:[%s1] sm:%s90] %v88
    %s92 = scalar_lea.vmem [#allocation0], 8
    %v93 = vld [vmem:[%s92] sm:%s87]
    %s95 = ssub.s32 2, 1
    %s96 = scalar_lea.vmem %s1, 1
    %97 = vst [vmem:[%s96] sm:%s95] %v93
    %s98 = scalar_lea.vmem [#allocation0], 16
    %v99 = vld [vmem:[%s98] sm:%s87]
    %s101 = ssub.s32 2, 1
    %s102 = scalar_lea.vmem %s1, 2
    %103 = vst [vmem:[%s102] sm:%s101] %v99
    %s104 = scalar_lea.vmem [#allocation0], 24
    %v105 = vld [vmem:[%s104] sm:%s87]
    %s107 = ssub.s32 2, 1
    %s108 = scalar_lea.vmem %s1, 3
    %109 = vst [vmem:[%s108] sm:%s107] %v105
    %s110 = scalar_lea.vmem [#allocation0], 32
    %v111 = vld [vmem:[%s110] sm:%s87]
    %s113 = ssub.s32 2, 1
    %s114 = scalar_lea.vmem %s1, 4
    %115 = vst [vmem:[%s114] sm:%s113] %v111
    %s116 = scalar_lea.vmem [#allocation0], 40
    %v117 = vld [vmem:[%s116] sm:%s87]
    %s119 = ssub.s32 2, 1
    %s120 = scalar_lea.vmem %s1, 5
    %121 = vst [vmem:[%s120] sm:%s119] %v117
    %s122 = scalar_lea.vmem [#allocation0], 48
    %v123 = vld [vmem:[%s122] sm:%s87]
    %s125 = ssub.s32 2, 1
    %s126 = scalar_lea.vmem %s1, 6
    %127 = vst [vmem:[%s126] sm:%s125] %v123
    %s128 = scalar_lea.vmem [#allocation0], 56
    %v129 = vld [vmem:[%s128] sm:%s87]
    %s131 = ssub.s32 2, 1
    %s132 = scalar_lea.vmem %s1, 7
    %133 = vst [vmem:[%s132] sm:%s131] %v129

// kernel: tile.24
$region0: #{tile.24}
  #allocation0 [shape = 's32[1]{0}', space=sflag, size = 0x4, scoped, tag = 'scoped memory for tile.24']
  %s0 = inlined_call_operand.vmem [shape: f32[32], index: 0, kind: input, shape index: {}]
  %s1 = inlined_call_operand.vmem [shape: f32[16,32], index: 1, kind: output, shape index: {}]
  // Predicated region
  $region2: #{tile.24} parent=0 // pred_check
    _
  $region3: #{tile.24} parent=0 // pred_check_branch
    %3 = sbr.rel (0) target = $region5
  $region4: #{tile.24} parent=0 // pred_region
    _
  $region5: #{tile.24} parent=0 // pred_fallthru
    _
  %v4 = vld [vmem:[%s0] ss:$0 sm:$0xff]
  %5 = vst [vmem:[%s1] sm:$0xff] %v4
  %s6 = scalar_lea.vmem %s1, 8
  %7 = vst [vmem:[%s6] sm:$0xff] %v4

// kernel: tile.25
$region0: #{tile.25}
  %s0 = inlined_call_operand.vmem [shape: f32[16,32], index: 0, kind: input, shape index: {}]
  %s1 = inlined_call_operand.vmem [shape: f32[1,512], index: 1, kind: output, shape index: {}]
  $region1: #{tile.25} parent=0
    #allocation0 [shape = 'u8[16384]{0}', space=vmem, size = 0x4000, scoped, tag = 'scoped mem for output reshape']
    %v2 = vld [vmem:[%s0] ss:$4 sm:$0xf]
    %vm3 = vcmask 261120
    %4 = vst.msk [vmem:[#allocation0] ss:$8 sm:$0xf] %vm3, %v2
    %s5 = scalar_lea.vmem %s0, 3
    %v6 = vld [vmem:[%s5] ss:$4 sm:$0xf]
    %7 = vrot.lane.b32.xlu0 %v6, 96
    %v8 = vpop.permute.xlu0 %7
    %vm9 = vcmask 1048320
    %10 = vst.msk [vmem:[#allocation0] ss:$8 sm:$0xf] %vm9, %v8
    %s11 = scalar_lea.vmem %s0, 2
    %v12 = vld [vmem:[%s11] ss:$4 sm:$0xf]
    %13 = vrot.lane.b32.xlu0 %v12, 64
    %v14 = vpop.permute.xlu0 %13
    %vm15 = vcmask 785920
    %16 = vst.msk [vmem:[#allocation0] ss:$8 sm:$0xf] %vm15, %v14
    %s17 = scalar_lea.vmem %s0, 1
    %v18 = vld [vmem:[%s17] ss:$4 sm:$0xf]
    %19 = vrot.lane.b32.xlu0 %v18, 32
    %v20 = vpop.permute.xlu0 %19
    %vm21 = vcmask 523520
    %22 = vst.msk [vmem:[#allocation0] ss:$8 sm:$0xf] %vm21, %v20
    %s24 = ssub.s32 2, 1
    %v25 = vld [vmem:[#allocation0] sm:%s24]
    %s27 = ssub.s32 2, 1
    %28 = vst [vmem:[%s1] sm:%s27] %v25
    %s29 = scalar_lea.vmem [#allocation0], 8
    %v30 = vld [vmem:[%s29] sm:%s24]
    %s32 = ssub.s32 2, 1
    %s33 = scalar_lea.vmem %s1, 1
    %34 = vst [vmem:[%s33] sm:%s32] %v30
    %s35 = scalar_lea.vmem [#allocation0], 16
    %v36 = vld [vmem:[%s35] sm:%s24]
    %s38 = ssub.s32 2, 1
    %s39 = scalar_lea.vmem %s1, 2
    %40 = vst [vmem:[%s39] sm:%s38] %v36
    %s41 = scalar_lea.vmem [#allocation0], 24
    %v42 = vld [vmem:[%s41] sm:%s24]
    %s44 = ssub.s32 2, 1
    %s45 = scalar_lea.vmem %s1, 3
    %46 = vst [vmem:[%s45] sm:%s44] %v42

// kernel: tile.29
$region0: #{tile.29}
  #allocation0 [shape = 's32[1]{0}', space=sflag, size = 0x4, scoped, tag = 'scoped memory for tile.29']
  %s0 = inlined_call_operand.vmem [shape: f32[64], index: 0, kind: input, shape index: {}]
  %s1 = inlined_call_operand.vmem [shape: f32[4,64], index: 1, kind: output, shape index: {}]
  // Predicated region
  $region2: #{tile.29} parent=0 // pred_check
    _
  $region3: #{tile.29} parent=0 // pred_check_branch
    %3 = sbr.rel (0) target = $region5
  $region4: #{tile.29} parent=0 // pred_region
    _
  $region5: #{tile.29} parent=0 // pred_fallthru
    _
  %v4 = vld [vmem:[%s0] ss:$0 sm:$0xff]
  %5 = vst [vmem:[%s1] sm:$0xf] %v4

// kernel: tile.30
$region0: #{tile.30}
  %s0 = inlined_call_operand.vmem [shape: f32[4,64], index: 0, kind: input, shape index: {}]
  %s1 = inlined_call_operand.vmem [shape: f32[1,256], index: 1, kind: output, shape index: {}]
  $region1: #{tile.30} parent=0
    #allocation0 [shape = 'u8[8192]{0}', space=vmem, size = 0x2000, scoped, tag = 'scoped mem for output reshape']
    #allocation1 [shape = 'u8[4096]{0}', space=vmem, size = 0x1000, scoped, tag = 'scoped mem for input reshape']
    %s3 = ssub.s32 16, 1
    %v4 = vld [vmem:[%s0] sm:%s3]
    %5 = vst [vmem:[#allocation1] sm:%s3] %v4
    %s6 = smov 3
    %v7 = vld [vmem:[#allocation1] ss:$2 sm:%s6]
    %vm8 = vcmask 523264
    %9 = vst.msk [vmem:[#allocation0] ss:$8 sm:$0x3] %vm8, %v7
    %s10 = scalar_lea.vmem [#allocation1], 1
    %s11 = smov 3
    %v12 = vld [vmem:[%s10] ss:$2 sm:%s11]
    %13 = vrot.lane.b32.xlu0 %v12, 64
    %v14 = vpop.permute.xlu0 %13
    %vm15 = vcmask 1048064
    %16 = vst.msk [vmem:[#allocation0] ss:$8 sm:$0x3] %vm15, %v14
    %s18 = ssub.s32 2, 1
    %v19 = vld [vmem:[#allocation0] sm:%s18]
    %s21 = ssub.s32 2, 1
    %22 = vst [vmem:[%s1] sm:%s21] %v19
    %s23 = scalar_lea.vmem [#allocation0], 8
    %v24 = vld [vmem:[%s23] sm:%s18]
    %s26 = ssub.s32 2, 1
    %s27 = scalar_lea.vmem %s1, 1
    %28 = vst [vmem:[%s27] sm:%s26] %v24

// kernel: discriminator_forward.1
$region0: #{discriminator_forward.1}
  #allocation0 [shape = 'u32[]', space=smem, size = 0x4, offset = 0x4, fixed_abs, tag = 'smem constant byte address 0x4 - core index']
  #allocation1 [shape = 'u32[72,128]{1,0:T(1,128)}', space=vmem, size = 0x9000, scoped, tag = 'internal scratch']
  #allocation2 [shape = 'f32[1,1]{1,0:T(1,128)S(1)}', space=vmem, size = 0x200, scoped, tag = 'scoped memory for discriminator_forward.1']
  %s0 = inlined_call_operand.vmem [shape: f32[16,1024], index: 0, kind: input, shape index: {}]
  %s1 = inlined_call_operand.vmem [shape: f32[1024,1024], index: 1, kind: input, shape index: {}]
  %s2 = inlined_call_operand.vmem [shape: f32[1,1024], index: 2, kind: input, shape index: {}]
  %s3 = inlined_call_operand.vmem [shape: f32[1024,512], index: 3, kind: input, shape index: {}]
  %s4 = inlined_call_operand.vmem [shape: f32[1,512], index: 4, kind: input, shape index: {}]
  %s5 = inlined_call_operand.vmem [shape: f32[512,256], index: 5, kind: input, shape index: {}]
  %s6 = inlined_call_operand.vmem [shape: f32[1,256], index: 6, kind: input, shape index: {}]
  %s7 = inlined_call_operand.vmem [shape: f32[256,128], index: 7, kind: input, shape index: {}]
  %s8 = inlined_call_operand.vmem [shape: f32[1,128], index: 8, kind: input, shape index: {}]
  %s9 = inlined_call_operand.vmem [shape: f32[1,128], index: 9, kind: input, shape index: {}]
  %s10 = inlined_call_operand.<no memory space> [shape: f32[1,1], index: 10, kind: input, shape index: {}]
  %s11 = inlined_call_operand.vmem [shape: f32[16,1], index: 11, kind: output, shape index: {}]
  %s12 = sld [smem:[#allocation0]]
  $region77: #{discriminator_forward.1} parent=0
    _
  %s14 = ssub.s32 1, %s12
  %s15 = scalar_select 0, %s14, %s12
  %v16 = vstv %s10
  %17 = vst [vmem:[#allocation2] sm:$0x1] %v16
  loop: start=0, step=1, limit=4
  $region2: #{discriminator_forward.1} parent=0 // loop_pre_header
    _
  $region3: #{discriminator_forward.1} parent=0 // loop_header
    %s19 = sphi 0, %s23
    %p20 = scmp.ge.s32.totalorder %s19, 4
    %s29 = sphi 0, %s31
    %s32 = sphi 0, %s29
    %s33 = sphi 0, %s32
    %s49 = sphi 0, %s33
    %s53 = sphi 0, %s53
    %s55 = sphi 0, %s53
    %s56 = sphi 0, %s55
    %s70 = sphi 0, %s56
    %s74 = sphi 0, %s74
    %s76 = sphi 0, %s74
    %s77 = sphi 0, %s76
    %s91 = sphi 0, %s77
    %s95 = sphi 0, %s95
    %s97 = sphi 0, %s95
    %s98 = sphi 0, %s97
    %s112 = sphi 0, %s98
    %s116 = sphi 0, %s116
    %s118 = sphi 0, %s116
    %s119 = sphi 0, %s118
    %s133 = sphi 0, %s119
    %s137 = sphi 0, %s137
    %s139 = sphi 0, %s137
    %s140 = sphi 0, %s139
    %s154 = sphi 0, %s140
    %s158 = sphi 0, %s158
    %s160 = sphi 0, %s158
    %s161 = sphi 0, %s160
    %s175 = sphi 0, %s161
    %s179 = sphi 0, %s179
    %s181 = sphi 0, %s179
    %s182 = sphi 0, %s181
    %s196 = sphi 0, %s182
    %s200 = sphi 0, %s200
    %s202 = sphi 0, %s200
    %s203 = sphi 0, %s202
    %s217 = sphi 0, %s203
    %s221 = sphi 0, %s221
    %s223 = sphi 0, %s221
    %s224 = sphi 0, %s223
    %s238 = sphi 0, %s224
    %s242 = sphi 0, %s242
    %s244 = sphi 0, %s242
    %s245 = sphi 0, %s244
    %s259 = sphi 0, %s245
    %s265 = sphi 0, %s267
    %s268 = sphi 0, %s265
    %s269 = sphi 0, %s268
    %s285 = sphi 0, %s269
  $region4: #{discriminator_forward.1} parent=0 // loop_header_branch
    %22 = sbr.rel (%p20) target = $region8
  $region5: #{discriminator_forward.1} parent=0 // loop_body
    %s24 = ssub.s32 %s19, 1
    %s25 = ssub.s32 %s19, 2
    %s26 = sadd.s32 %s19, 1
    %s27 = ssub.s32 %s19, %s26
    %p28 = scmp.eq.s32.totalorder %s27, 0
    %s30 = sadd.s32 %s29, 1
    %s31 = scalar_select %p28, %s29, %s30
    %p34 = pneg %p28
    %p35 = scmp.eq.s32.totalorder %s19, 1
    %p36 = por %p34, %p35
    %p37 = scmp.ne.s32.totalorder %s29, %s32
    %p38 = scmp.eq.s32.totalorder %s19, 0
    %p39 = por %p37, %p38
    %p40 = scmp.ne.s32.totalorder %s29, %s32
    %p41 = scmp.eq.s32.totalorder %s24, 1
    %p42 = por %p40, %p41
    %p43 = scmp.ne.s32.totalorder %s32, %s33
    %p44 = scmp.eq.s32.totalorder %s24, 0
    %p45 = por %p43, %p44
    %p46 = scmp.ne.s32.totalorder %s32, %s33
    %p47 = scmp.eq.s32.totalorder %s25, 1
    %p48 = por %p46, %p47
    %p50 = scmp.ne.s32.totalorder %s33, %s49
    %p51 = scmp.eq.s32.totalorder %s25, 0
    %p52 = por %p50, %p51
    %s54 = sadd.s32 %s53, 1
    %p57 = scmp.eq.s32.totalorder %s19, 1
    %p58 = scmp.ne.s32.totalorder %s53, %s55
    %p59 = scmp.eq.s32.totalorder %s19, 0
    %p60 = por %p58, %p59
    %p61 = scmp.ne.s32.totalorder %s53, %s55
    %p62 = scmp.eq.s32.totalorder %s24, 1
    %p63 = por %p61, %p62
    %p64 = scmp.ne.s32.totalorder %s55, %s56
    %p65 = scmp.eq.s32.totalorder %s24, 0
    %p66 = por %p64, %p65
    %p67 = scmp.ne.s32.totalorder %s55, %s56
    %p68 = scmp.eq.s32.totalorder %s25, 1
    %p69 = por %p67, %p68
    %p71 = scmp.ne.s32.totalorder %s56, %s70
    %p72 = scmp.eq.s32.totalorder %s25, 0
    %p73 = por %p71, %p72
    %s75 = sadd.s32 %s74, 1
    %p78 = scmp.eq.s32.totalorder %s19, 1
    %p79 = scmp.ne.s32.totalorder %s74, %s76
    %p80 = scmp.eq.s32.totalorder %s19, 0
    %p81 = por %p79, %p80
    %p82 = scmp.ne.s32.totalorder %s74, %s76
    %p83 = scmp.eq.s32.totalorder %s24, 1
    %p84 = por %p82, %p83
    %p85 = scmp.ne.s32.totalorder %s76, %s77
    %p86 = scmp.eq.s32.totalorder %s24, 0
    %p87 = por %p85, %p86
    %p88 = scmp.ne.s32.totalorder %s76, %s77
    %p89 = scmp.eq.s32.totalorder %s25, 1
    %p90 = por %p88, %p89
    %p92 = scmp.ne.s32.totalorder %s77, %s91
    %p93 = scmp.eq.s32.totalorder %s25, 0
    %p94 = por %p92, %p93
    %s96 = sadd.s32 %s95, 1
    %p99 = scmp.eq.s32.totalorder %s19, 1
    %p100 = scmp.ne.s32.totalorder %s95, %s97
    %p101 = scmp.eq.s32.totalorder %s19, 0
    %p102 = por %p100, %p101
    %p103 = scmp.ne.s32.totalorder %s95, %s97
    %p104 = scmp.eq.s32.totalorder %s24, 1
    %p105 = por %p103, %p104
    %p106 = scmp.ne.s32.totalorder %s97, %s98
    %p107 = scmp.eq.s32.totalorder %s24, 0
    %p108 = por %p106, %p107
    %p109 = scmp.ne.s32.totalorder %s97, %s98
    %p110 = scmp.eq.s32.totalorder %s25, 1
    %p111 = por %p109, %p110
    %p113 = scmp.ne.s32.totalorder %s98, %s112
    %p114 = scmp.eq.s32.totalorder %s25, 0
    %p115 = por %p113, %p114
    %s117 = sadd.s32 %s116, 1
    %p120 = scmp.eq.s32.totalorder %s19, 1
    %p121 = scmp.ne.s32.totalorder %s116, %s118
    %p122 = scmp.eq.s32.totalorder %s19, 0
    %p123 = por %p121, %p122
    %p124 = scmp.ne.s32.totalorder %s116, %s118
    %p125 = scmp.eq.s32.totalorder %s24, 1
    %p126 = por %p124, %p125
    %p127 = scmp.ne.s32.totalorder %s118, %s119
    %p128 = scmp.eq.s32.totalorder %s24, 0
    %p129 = por %p127, %p128
    %p130 = scmp.ne.s32.totalorder %s118, %s119
    %p131 = scmp.eq.s32.totalorder %s25, 1
    %p132 = por %p130, %p131
    %p134 = scmp.ne.s32.totalorder %s119, %s133
    %p135 = scmp.eq.s32.totalorder %s25, 0
    %p136 = por %p134, %p135
    %s138 = sadd.s32 %s137, 1
    %p141 = scmp.eq.s32.totalorder %s19, 1
    %p142 = scmp.ne.s32.totalorder %s137, %s139
    %p143 = scmp.eq.s32.totalorder %s19, 0
    %p144 = por %p142, %p143
    %p145 = scmp.ne.s32.totalorder %s137, %s139
    %p146 = scmp.eq.s32.totalorder %s24, 1
    %p147 = por %p145, %p146
    %p148 = scmp.ne.s32.totalorder %s139, %s140
    %p149 = scmp.eq.s32.totalorder %s24, 0
    %p150 = por %p148, %p149
    %p151 = scmp.ne.s32.totalorder %s139, %s140
    %p152 = scmp.eq.s32.totalorder %s25, 1
    %p153 = por %p151, %p152
    %p155 = scmp.ne.s32.totalorder %s140, %s154
    %p156 = scmp.eq.s32.totalorder %s25, 0
    %p157 = por %p155, %p156
    %s159 = sadd.s32 %s158, 1
    %p162 = scmp.eq.s32.totalorder %s19, 1
    %p163 = scmp.ne.s32.totalorder %s158, %s160
    %p164 = scmp.eq.s32.totalorder %s19, 0
    %p165 = por %p163, %p164
    %p166 = scmp.ne.s32.totalorder %s158, %s160
    %p167 = scmp.eq.s32.totalorder %s24, 1
    %p168 = por %p166, %p167
    %p169 = scmp.ne.s32.totalorder %s160, %s161
    %p170 = scmp.eq.s32.totalorder %s24, 0
    %p171 = por %p169, %p170
    %p172 = scmp.ne.s32.totalorder %s160, %s161
    %p173 = scmp.eq.s32.totalorder %s25, 1
    %p174 = por %p172, %p173
    %p176 = scmp.ne.s32.totalorder %s161, %s175
    %p177 = scmp.eq.s32.totalorder %s25, 0
    %p178 = por %p176, %p177
    %s180 = sadd.s32 %s179, 1
    %p183 = scmp.eq.s32.totalorder %s19, 1
    %p184 = scmp.ne.s32.totalorder %s179, %s181
    %p185 = scmp.eq.s32.totalorder %s19, 0
    %p186 = por %p184, %p185
    %p187 = scmp.ne.s32.totalorder %s179, %s181
    %p188 = scmp.eq.s32.totalorder %s24, 1
    %p189 = por %p187, %p188
    %p190 = scmp.ne.s32.totalorder %s181, %s182
    %p191 = scmp.eq.s32.totalorder %s24, 0
    %p192 = por %p190, %p191
    %p193 = scmp.ne.s32.totalorder %s181, %s182
    %p194 = scmp.eq.s32.totalorder %s25, 1
    %p195 = por %p193, %p194
    %p197 = scmp.ne.s32.totalorder %s182, %s196
    %p198 = scmp.eq.s32.totalorder %s25, 0
    %p199 = por %p197, %p198
    %s201 = sadd.s32 %s200, 1
    %p204 = scmp.eq.s32.totalorder %s19, 1
    %p205 = scmp.ne.s32.totalorder %s200, %s202
    %p206 = scmp.eq.s32.totalorder %s19, 0
    %p207 = por %p205, %p206
    %p208 = scmp.ne.s32.totalorder %s200, %s202
    %p209 = scmp.eq.s32.totalorder %s24, 1
    %p210 = por %p208, %p209
    %p211 = scmp.ne.s32.totalorder %s202, %s203
    %p212 = scmp.eq.s32.totalorder %s24, 0
    %p213 = por %p211, %p212
    %p214 = scmp.ne.s32.totalorder %s202, %s203
    %p215 = scmp.eq.s32.totalorder %s25, 1
    %p216 = por %p214, %p215
    %p218 = scmp.ne.s32.totalorder %s203, %s217
    %p219 = scmp.eq.s32.totalorder %s25, 0
    %p220 = por %p218, %p219
    %s222 = sadd.s32 %s221, 1
    %p225 = scmp.eq.s32.totalorder %s19, 1
    %p226 = scmp.ne.s32.totalorder %s221, %s223
    %p227 = scmp.eq.s32.totalorder %s19, 0
    %p228 = por %p226, %p227
    %p229 = scmp.ne.s32.totalorder %s221, %s223
    %p230 = scmp.eq.s32.totalorder %s24, 1
    %p231 = por %p229, %p230
    %p232 = scmp.ne.s32.totalorder %s223, %s224
    %p233 = scmp.eq.s32.totalorder %s24, 0
    %p234 = por %p232, %p233
    %p235 = scmp.ne.s32.totalorder %s223, %s224
    %p236 = scmp.eq.s32.totalorder %s25, 1
    %p237 = por %p235, %p236
    %p239 = scmp.ne.s32.totalorder %s224, %s238
    %p240 = scmp.eq.s32.totalorder %s25, 0
    %p241 = por %p239, %p240
    %s243 = sadd.s32 %s242, 1
    %p246 = scmp.eq.s32.totalorder %s19, 1
    %p247 = scmp.ne.s32.totalorder %s242, %s244
    %p248 = scmp.eq.s32.totalorder %s19, 0
    %p249 = por %p247, %p248
    %p250 = scmp.ne.s32.totalorder %s242, %s244
    %p251 = scmp.eq.s32.totalorder %s24, 1
    %p252 = por %p250, %p251
    %p253 = scmp.ne.s32.totalorder %s244, %s245
    %p254 = scmp.eq.s32.totalorder %s24, 0
    %p255 = por %p253, %p254
    %p256 = scmp.ne.s32.totalorder %s244, %s245
    %p257 = scmp.eq.s32.totalorder %s25, 1
    %p258 = por %p256, %p257
    %p260 = scmp.ne.s32.totalorder %s245, %s259
    %p261 = scmp.eq.s32.totalorder %s25, 0
    %p262 = por %p260, %p261
    %s263 = ssub.s32 %s19, %s26
    %p264 = scmp.eq.s32.totalorder %s263, 0
    %s266 = sadd.s32 %s265, 1
    %s267 = scalar_select %p264, %s265, %s266
    %p270 = pneg %p264
    %p271 = scmp.eq.s32.totalorder %s19, 1
    %p272 = por %p270, %p271
    %p273 = scmp.ne.s32.totalorder %s265, %s268
    %p274 = scmp.eq.s32.totalorder %s19, 0
    %p275 = por %p273, %p274
    %p276 = scmp.ne.s32.totalorder %s265, %s268
    %p277 = scmp.eq.s32.totalorder %s24, 1
    %p278 = por %p276, %p277
    %p279 = scmp.ne.s32.totalorder %s268, %s269
    %p280 = scmp.eq.s32.totalorder %s24, 0
    %p281 = por %p279, %p280
    %p282 = scmp.ne.s32.totalorder %s268, %s269
    %p283 = scmp.eq.s32.totalorder %s25, 1
    %p284 = por %p282, %p283
    %p286 = scmp.ne.s32.totalorder %s269, %s285
    %p287 = scmp.eq.s32.totalorder %s25, 0
    %p288 = por %p286, %p287
    %p289 = scmp.le.s32.totalorder 1, %s19
    %p290 = scmp.lt.s32.totalorder %s19, 3
    %p291 = pnand %p289, %p290
    %p292 = pneg %p291
    // Predicated region
    $region9: #{discriminator_forward.1} parent=5 // pred_check
      _
    $region10: #{discriminator_forward.1} parent=5 // pred_check_branch
      %294 = sbr.rel (%p291) target = $region12
    $region11: #{discriminator_forward.1} parent=5 // pred_region
      %s295 = ssub.s32 %s19, 1
      // Predicated region
      $region13: #{discriminator_forward.1} parent=11 // pred_check
        %p296 = pneg %p66
      $region14: #{discriminator_forward.1} parent=11 // pred_check_branch
        %298 = sbr.rel (%p296) target = $region16
      $region15: #{discriminator_forward.1} parent=11 // pred_region
        _
      $region16: #{discriminator_forward.1} parent=11 // pred_fallthru
        _
      // Predicated region
      $region17: #{discriminator_forward.1} parent=11 // pred_check
        %p299 = pneg %p87
      $region18: #{discriminator_forward.1} parent=11 // pred_check_branch
        %301 = sbr.rel (%p299) target = $region20
      $region19: #{discriminator_forward.1} parent=11 // pred_region
        _
      $region20: #{discriminator_forward.1} parent=11 // pred_fallthru
        _
      // Predicated region
      $region21: #{discriminator_forward.1} parent=11 // pred_check
        %p302 = pneg %p108
      $region22: #{discriminator_forward.1} parent=11 // pred_check_branch
        %304 = sbr.rel (%p302) target = $region24
      $region23: #{discriminator_forward.1} parent=11 // pred_region
        _
      $region24: #{discriminator_forward.1} parent=11 // pred_fallthru
        _
      // Predicated region
      $region25: #{discriminator_forward.1} parent=11 // pred_check
        %p305 = pneg %p129
      $region26: #{discriminator_forward.1} parent=11 // pred_check_branch
        %307 = sbr.rel (%p305) target = $region28
      $region27: #{discriminator_forward.1} parent=11 // pred_region
        _
      $region28: #{discriminator_forward.1} parent=11 // pred_fallthru
        _
      // Predicated region
      $region29: #{discriminator_forward.1} parent=11 // pred_check
        %p308 = pneg %p150
      $region30: #{discriminator_forward.1} parent=11 // pred_check_branch
        %310 = sbr.rel (%p308) target = $region32
      $region31: #{discriminator_forward.1} parent=11 // pred_region
        _
      $region32: #{discriminator_forward.1} parent=11 // pred_fallthru
        _
      // Predicated region
      $region33: #{discriminator_forward.1} parent=11 // pred_check
        %p311 = pneg %p171
      $region34: #{discriminator_forward.1} parent=11 // pred_check_branch
        %313 = sbr.rel (%p311) target = $region36
      $region35: #{discriminator_forward.1} parent=11 // pred_region
        _
      $region36: #{discriminator_forward.1} parent=11 // pred_fallthru
        _
      // Predicated region
      $region37: #{discriminator_forward.1} parent=11 // pred_check
        %p314 = pneg %p192
      $region38: #{discriminator_forward.1} parent=11 // pred_check_branch
        %316 = sbr.rel (%p314) target = $region40
      $region39: #{discriminator_forward.1} parent=11 // pred_region
        _
      $region40: #{discriminator_forward.1} parent=11 // pred_fallthru
        _
      // Predicated region
      $region41: #{discriminator_forward.1} parent=11 // pred_check
        %p317 = pneg %p213
      $region42: #{discriminator_forward.1} parent=11 // pred_check_branch
        %319 = sbr.rel (%p317) target = $region44
      $region43: #{discriminator_forward.1} parent=11 // pred_region
        _
      $region44: #{discriminator_forward.1} parent=11 // pred_fallthru
        _
      // Predicated region
      $region45: #{discriminator_forward.1} parent=11 // pred_check
        %p320 = pneg %p234
      $region46: #{discriminator_forward.1} parent=11 // pred_check_branch
        %322 = sbr.rel (%p320) target = $region48
      $region47: #{discriminator_forward.1} parent=11 // pred_region
        _
      $region48: #{discriminator_forward.1} parent=11 // pred_fallthru
        _
      // Predicated region
      $region49: #{discriminator_forward.1} parent=11 // pred_check
        %p323 = pneg %p255
      $region50: #{discriminator_forward.1} parent=11 // pred_check_branch
        %325 = sbr.rel (%p323) target = $region52
      $region51: #{discriminator_forward.1} parent=11 // pred_region
        _
      $region52: #{discriminator_forward.1} parent=11 // pred_fallthru
        _
    $region12: #{discriminator_forward.1} parent=5 // pred_fallthru
      _
    %p326 = scmp.lt.s32.totalorder %s19, 2
    // Predicated region
    $region53: #{discriminator_forward.1} parent=5 // pred_check
      %p327 = pneg %p326
    $region54: #{discriminator_forward.1} parent=5 // pred_check_branch
      %329 = sbr.rel (%p327) target = $region56
    $region55: #{discriminator_forward.1} parent=5 // pred_region
      // Predicated region
      $region57: #{discriminator_forward.1} parent=55 // pred_check
        %p330 = pneg %p39
      $region58: #{discriminator_forward.1} parent=55 // pred_check_branch
        %332 = sbr.rel (%p330) target = $region60
      $region59: #{discriminator_forward.1} parent=55 // pred_region
        %p333 = scmp.lt.s32.totalorder %s19, 1
        %s334 = scalar_select %p333, %s19, 1
        %s335 = smul.addr %s334, 8
        %s336 = smul.addr %s335, 8
        %s337 = scalar_lea.vmem %s0, %s336
      $region60: #{discriminator_forward.1} parent=55 // pred_fallthru
        _
    $region56: #{discriminator_forward.1} parent=5 // pred_fallthru
      _
    %p338 = scmp.le.s32.totalorder 1, %s19
    %p339 = scmp.lt.s32.totalorder %s19, 3
    %p340 = pnand %p338, %p339
    %p341 = pneg %p340
    // Predicated region
    $region61: #{discriminator_forward.1} parent=5 // pred_check
      _
    $region62: #{discriminator_forward.1} parent=5 // pred_check_branch
      %343 = sbr.rel (%p340) target = $region64
    $region63: #{discriminator_forward.1} parent=5 // pred_region
      %s344 = ssub.s32 %s19, 1
      %p345 = scmp.lt.s32.totalorder %s24, 1
      %s346 = scalar_select %p345, %s24, 1
      %s347 = smul.addr %s346, 8
      %s348 = smul.addr %s347, 8
      %s349 = scalar_lea.vmem %s0, %s348
      %p350 = pneg %p45
      %p351 = pneg %p42
      %p352 = pneg %p66
      %p353 = pneg %p63
      %p354 = pneg %p87
      %p355 = pneg %p84
      %p356 = pneg %p108
      %p357 = pneg %p105
      %p358 = pneg %p129
      %p359 = pneg %p126
      %p360 = pneg %p150
      %p361 = pneg %p147
      %p362 = pneg %p171
      %p363 = pneg %p168
      %p364 = pneg %p192
      %p365 = pneg %p189
      %p366 = pneg %p213
      %p367 = pneg %p210
      %p368 = pneg %p234
      %p369 = pneg %p231
      %p370 = pneg %p255
      %p371 = pneg %p252
      %p372 = pneg %p281
      %p373 = pneg %p278
      %p374 = scmp.lt.s32.totalorder %s24, 1
      %s375 = scalar_select %p374, %s24, 1
      %s376 = smul.addr %s375, 8
      %s377 = scalar_lea.vmem %s11, %s376
      %p378 = scmp.lt.s32.totalorder %s24, 1
      %s379 = scalar_select %p378, %s24, 1
      %s380 = smul.addr %s379, 8
      %s381 = smul.addr %s380, 8
      %s382 = scalar_lea.vmem %s0, %s381
      %p383 = scmp.lt.s32.totalorder %s24, 1
      %s384 = scalar_select %p383, %s24, 1
      %s385 = smul.addr %s384, 8
      %s386 = scalar_lea.vmem %s11, %s385
      %v387 = vld [vmem:[%s382] sm:$0xff]
      %v388 = vld [vmem:[%s382 + $0x8] sm:$0xff]
      %v389 = vld [vmem:[%s382 + $0x10] sm:$0xff]
      %v390 = vld [vmem:[%s382 + $0x18] sm:$0xff]
      %v391 = vld [vmem:[%s382 + $0x20] sm:$0xff]
      %v392 = vld [vmem:[%s382 + $0x28] sm:$0xff]
      %v393 = vld [vmem:[%s382 + $0x30] sm:$0xff]
      %v394 = vld [vmem:[%s382 + $0x38] sm:$0xff]
      %v395 = vld [vmem:[%s1] sm:$0xff]
      %v396 = vld [vmem:[%s1 + $0x8] sm:$0xff]
      %v397 = vld [vmem:[%s1 + $0x10] sm:$0xff]
      %v398 = vld [vmem:[%s1 + $0x18] sm:$0xff]
      %v399 = vld [vmem:[%s1 + $0x20] sm:$0xff]
      %v400 = vld [vmem:[%s1 + $0x28] sm:$0xff]
      %v401 = vld [vmem:[%s1 + $0x30] sm:$0xff]
      %v402 = vld [vmem:[%s1 + $0x38] sm:$0xff]
      %v403 = vld [vmem:[%s1 + $0x40] sm:$0xff]
      %v404 = vld [vmem:[%s1 + $0x48] sm:$0xff]
      %v405 = vld [vmem:[%s1 + $0x50] sm:$0xff]
      %v406 = vld [vmem:[%s1 + $0x58] sm:$0xff]
      %v407 = vld [vmem:[%s1 + $0x60] sm:$0xff]
      %v408 = vld [vmem:[%s1 + $0x68] sm:$0xff]
      %v409 = vld [vmem:[%s1 + $0x70] sm:$0xff]
      %v410 = vld [vmem:[%s1 + $0x78] sm:$0xff]
      %v411 = vld [vmem:[%s1 + $0x80] sm:$0xff]
      %v412 = vld [vmem:[%s1 + $0x88] sm:$0xff]
      %v413 = vld [vmem:[%s1 + $0x90] sm:$0xff]
      %v414 = vld [vmem:[%s1 + $0x98] sm:$0xff]
      %v415 = vld [vmem:[%s1 + $0xa0] sm:$0xff]
      %v416 = vld [vmem:[%s1 + $0xa8] sm:$0xff]
      %v417 = vld [vmem:[%s1 + $0xb0] sm:$0xff]
      %v418 = vld [vmem:[%s1 + $0xb8] sm:$0xff]
      %v419 = vld [vmem:[%s1 + $0xc0] sm:$0xff]
      %v420 = vld [vmem:[%s1 + $0xc8] sm:$0xff]
      %v421 = vld [vmem:[%s1 + $0xd0] sm:$0xff]
      %v422 = vld [vmem:[%s1 + $0xd8] sm:$0xff]
      %v423 = vld [vmem:[%s1 + $0xe0] sm:$0xff]
      %v424 = vld [vmem:[%s1 + $0xe8] sm:$0xff]
      %v425 = vld [vmem:[%s1 + $0xf0] sm:$0xff]
      %v426 = vld [vmem:[%s1 + $0xf8] sm:$0xff]
      %v427 = vld [vmem:[%s1 + $0x100] sm:$0xff]
      %v428 = vld [vmem:[%s1 + $0x108] sm:$0xff]
      %v429 = vld [vmem:[%s1 + $0x110] sm:$0xff]
      %v430 = vld [vmem:[%s1 + $0x118] sm:$0xff]
      %v431 = vld [vmem:[%s1 + $0x120] sm:$0xff]
      %v432 = vld [vmem:[%s1 + $0x128] sm:$0xff]
      %v433 = vld [vmem:[%s1 + $0x130] sm:$0xff]
      %v434 = vld [vmem:[%s1 + $0x138] sm:$0xff]
      %v435 = vld [vmem:[%s1 + $0x140] sm:$0xff]
      %v436 = vld [vmem:[%s1 + $0x148] sm:$0xff]
      %v437 = vld [vmem:[%s1 + $0x150] sm:$0xff]
      %v438 = vld [vmem:[%s1 + $0x158] sm:$0xff]
      %v439 = vld [vmem:[%s1 + $0x160] sm:$0xff]
      %v440 = vld [vmem:[%s1 + $0x168] sm:$0xff]
      %v441 = vld [vmem:[%s1 + $0x170] sm:$0xff]
      %v442 = vld [vmem:[%s1 + $0x178] sm:$0xff]
      %v443 = vld [vmem:[%s1 + $0x180] sm:$0xff]
      %v444 = vld [vmem:[%s1 + $0x188] sm:$0xff]
      %v445 = vld [vmem:[%s1 + $0x190] sm:$0xff]
      %v446 = vld [vmem:[%s1 + $0x198] sm:$0xff]
      %v447 = vld [vmem:[%s1 + $0x1a0] sm:$0xff]
      %v448 = vld [vmem:[%s1 + $0x1a8] sm:$0xff]
      %v449 = vld [vmem:[%s1 + $0x1b0] sm:$0xff]
      %v450 = vld [vmem:[%s1 + $0x1b8] sm:$0xff]
      %v451 = vld [vmem:[%s1 + $0x1c0] sm:$0xff]
      %v452 = vld [vmem:[%s1 + $0x1c8] sm:$0xff]
      %v453 = vld [vmem:[%s1 + $0x1d0] sm:$0xff]
      %v454 = vld [vmem:[%s1 + $0x1d8] sm:$0xff]
      %v455 = vld [vmem:[%s1 + $0x1e0] sm:$0xff]
      %v456 = vld [vmem:[%s1 + $0x1e8] sm:$0xff]
      %v457 = vld [vmem:[%s1 + $0x1f0] sm:$0xff]
      %v458 = vld [vmem:[%s1 + $0x1f8] sm:$0xff]
      %v459 = vld [vmem:[%s1 + $0x200] sm:$0xff]
      %v460 = vld [vmem:[%s1 + $0x208] sm:$0xff]
      %v461 = vld [vmem:[%s1 + $0x210] sm:$0xff]
      %v462 = vld [vmem:[%s1 + $0x218] sm:$0xff]
      %v463 = vld [vmem:[%s1 + $0x220] sm:$0xff]
      %v464 = vld [vmem:[%s1 + $0x228] sm:$0xff]
      %v465 = vld [vmem:[%s1 + $0x230] sm:$0xff]
      %v466 = vld [vmem:[%s1 + $0x238] sm:$0xff]
      %v467 = vld [vmem:[%s1 + $0x240] sm:$0xff]
      %v468 = vld [vmem:[%s1 + $0x248] sm:$0xff]
      %v469 = vld [vmem:[%s1 + $0x250] sm:$0xff]
      %v470 = vld [vmem:[%s1 + $0x258] sm:$0xff]
      %v471 = vld [vmem:[%s1 + $0x260] sm:$0xff]
      %v472 = vld [vmem:[%s1 + $0x268] sm:$0xff]
      %v473 = vld [vmem:[%s1 + $0x270] sm:$0xff]
      %v474 = vld [vmem:[%s1 + $0x278] sm:$0xff]
      %v475 = vld [vmem:[%s1 + $0x280] sm:$0xff]
      %v476 = vld [vmem:[%s1 + $0x288] sm:$0xff]
      %v477 = vld [vmem:[%s1 + $0x290] sm:$0xff]
      %v478 = vld [vmem:[%s1 + $0x298] sm:$0xff]
      %v479 = vld [vmem:[%s1 + $0x2a0] sm:$0xff]
      %v480 = vld [vmem:[%s1 + $0x2a8] sm:$0xff]
      %v481 = vld [vmem:[%s1 + $0x2b0] sm:$0xff]
      %v482 = vld [vmem:[%s1 + $0x2b8] sm:$0xff]
      %v483 = vld [vmem:[%s1 + $0x2c0] sm:$0xff]
      %v484 = vld [vmem:[%s1 + $0x2c8] sm:$0xff]
      %v485 = vld [vmem:[%s1 + $0x2d0] sm:$0xff]
      %v486 = vld [vmem:[%s1 + $0x2d8] sm:$0xff]
      %v487 = vld [vmem:[%s1 + $0x2e0] sm:$0xff]
      %v488 = vld [vmem:[%s1 + $0x2e8] sm:$0xff]
      %v489 = vld [vmem:[%s1 + $0x2f0] sm:$0xff]
      %v490 = vld [vmem:[%s1 + $0x2f8] sm:$0xff]
      %v491 = vld [vmem:[%s1 + $0x300] sm:$0xff]
      %v492 = vld [vmem:[%s1 + $0x308] sm:$0xff]
      %v493 = vld [vmem:[%s1 + $0x310] sm:$0xff]
      %v494 = vld [vmem:[%s1 + $0x318] sm:$0xff]
      %v495 = vld [vmem:[%s1 + $0x320] sm:$0xff]
      %v496 = vld [vmem:[%s1 + $0x328] sm:$0xff]
      %v497 = vld [vmem:[%s1 + $0x330] sm:$0xff]
      %v498 = vld [vmem:[%s1 + $0x338] sm:$0xff]
      %v499 = vld [vmem:[%s1 + $0x340] sm:$0xff]
      %v500 = vld [vmem:[%s1 + $0x348] sm:$0xff]
      %v501 = vld [vmem:[%s1 + $0x350] sm:$0xff]
      %v502 = vld [vmem:[%s1 + $0x358] sm:$0xff]
      %v503 = vld [vmem:[%s1 + $0x360] sm:$0xff]
      %v504 = vld [vmem:[%s1 + $0x368] sm:$0xff]
      %v505 = vld [vmem:[%s1 + $0x370] sm:$0xff]
      %v506 = vld [vmem:[%s1 + $0x378] sm:$0xff]
      %v507 = vld [vmem:[%s1 + $0x380] sm:$0xff]
      %v508 = vld [vmem:[%s1 + $0x388] sm:$0xff]
      %v509 = vld [vmem:[%s1 + $0x390] sm:$0xff]
      %v510 = vld [vmem:[%s1 + $0x398] sm:$0xff]
      %v511 = vld [vmem:[%s1 + $0x3a0] sm:$0xff]
      %v512 = vld [vmem:[%s1 + $0x3a8] sm:$0xff]
      %v513 = vld [vmem:[%s1 + $0x3b0] sm:$0xff]
      %v514 = vld [vmem:[%s1 + $0x3b8] sm:$0xff]
      %v515 = vld [vmem:[%s1 + $0x3c0] sm:$0xff]
      %v516 = vld [vmem:[%s1 + $0x3c8] sm:$0xff]
      %v517 = vld [vmem:[%s1 + $0x3d0] sm:$0xff]
      %v518 = vld [vmem:[%s1 + $0x3d8] sm:$0xff]
      %v519 = vld [vmem:[%s1 + $0x3e0] sm:$0xff]
      %v520 = vld [vmem:[%s1 + $0x3e8] sm:$0xff]
      %v521 = vld [vmem:[%s1 + $0x3f0] sm:$0xff]
      %v522 = vld [vmem:[%s1 + $0x3f8] sm:$0xff]
      %v523 = vld [vmem:[%s1 + $0x400] sm:$0xff]
      %v524 = vld [vmem:[%s1 + $0x408] sm:$0xff]
      %v525 = vld [vmem:[%s1 + $0x410] sm:$0xff]
      %v526 = vld [vmem:[%s1 + $0x418] sm:$0xff]
      %v527 = vld [vmem:[%s1 + $0x420] sm:$0xff]
      %v528 = vld [vmem:[%s1 + $0x428] sm:$0xff]
      %v529 = vld [vmem:[%s1 + $0x430] sm:$0xff]
      %v530 = vld [vmem:[%s1 + $0x438] sm:$0xff]
      %v531 = vld [vmem:[%s1 + $0x440] sm:$0xff]
      %v532 = vld [vmem:[%s1 + $0x448] sm:$0xff]
      %v533 = vld [vmem:[%s1 + $0x450] sm:$0xff]
      %v534 = vld [vmem:[%s1 + $0x458] sm:$0xff]
      %v535 = vld [vmem:[%s1 + $0x460] sm:$0xff]
      %v536 = vld [vmem:[%s1 + $0x468] sm:$0xff]
      %v537 = vld [vmem:[%s1 + $0x470] sm:$0xff]
      %v538 = vld [vmem:[%s1 + $0x478] sm:$0xff]
      %v539 = vld [vmem:[%s1 + $0x480] sm:$0xff]
      %v540 = vld [vmem:[%s1 + $0x488] sm:$0xff]
      %v541 = vld [vmem:[%s1 + $0x490] sm:$0xff]
      %v542 = vld [vmem:[%s1 + $0x498] sm:$0xff]
      %v543 = vld [vmem:[%s1 + $0x4a0] sm:$0xff]
      %v544 = vld [vmem:[%s1 + $0x4a8] sm:$0xff]
      %v545 = vld [vmem:[%s1 + $0x4b0] sm:$0xff]
      %v546 = vld [vmem:[%s1 + $0x4b8] sm:$0xff]
      %v547 = vld [vmem:[%s1 + $0x4c0] sm:$0xff]
      %v548 = vld [vmem:[%s1 + $0x4c8] sm:$0xff]
      %v549 = vld [vmem:[%s1 + $0x4d0] sm:$0xff]
      %v550 = vld [vmem:[%s1 + $0x4d8] sm:$0xff]
      %v551 = vld [vmem:[%s1 + $0x4e0] sm:$0xff]
      %v552 = vld [vmem:[%s1 + $0x4e8] sm:$0xff]
      %v553 = vld [vmem:[%s1 + $0x4f0] sm:$0xff]
      %v554 = vld [vmem:[%s1 + $0x4f8] sm:$0xff]
      %v555 = vld [vmem:[%s1 + $0x500] sm:$0xff]
      %v556 = vld [vmem:[%s1 + $0x508] sm:$0xff]
      %v557 = vld [vmem:[%s1 + $0x510] sm:$0xff]
      %v558 = vld [vmem:[%s1 + $0x518] sm:$0xff]
      %v559 = vld [vmem:[%s1 + $0x520] sm:$0xff]
      %v560 = vld [vmem:[%s1 + $0x528] sm:$0xff]
      %v561 = vld [vmem:[%s1 + $0x530] sm:$0xff]
      %v562 = vld [vmem:[%s1 + $0x538] sm:$0xff]
      %v563 = vld [vmem:[%s1 + $0x540] sm:$0xff]
      %v564 = vld [vmem:[%s1 + $0x548] sm:$0xff]
      %v565 = vld [vmem:[%s1 + $0x550] sm:$0xff]
      %v566 = vld [vmem:[%s1 + $0x558] sm:$0xff]
      %v567 = vld [vmem:[%s1 + $0x560] sm:$0xff]
      %v568 = vld [vmem:[%s1 + $0x568] sm:$0xff]
      %v569 = vld [vmem:[%s1 + $0x570] sm:$0xff]
      %v570 = vld [vmem:[%s1 + $0x578] sm:$0xff]
      %v571 = vld [vmem:[%s1 + $0x580] sm:$0xff]
      %v572 = vld [vmem:[%s1 + $0x588] sm:$0xff]
      %v573 = vld [vmem:[%s1 + $0x590] sm:$0xff]
      %v574 = vld [vmem:[%s1 + $0x598] sm:$0xff]
      %v575 = vld [vmem:[%s1 + $0x5a0] sm:$0xff]
      %v576 = vld [vmem:[%s1 + $0x5a8] sm:$0xff]
      %v577 = vld [vmem:[%s1 + $0x5b0] sm:$0xff]
      %v578 = vld [vmem:[%s1 + $0x5b8] sm:$0xff]
      %v579 = vld [vmem:[%s1 + $0x5c0] sm:$0xff]
      %v580 = vld [vmem:[%s1 + $0x5c8] sm:$0xff]
      %v581 = vld [vmem:[%s1 + $0x5d0] sm:$0xff]
      %v582 = vld [vmem:[%s1 + $0x5d8] sm:$0xff]
      %v583 = vld [vmem:[%s1 + $0x5e0] sm:$0xff]
      %v584 = vld [vmem:[%s1 + $0x5e8] sm:$0xff]
      %v585 = vld [vmem:[%s1 + $0x5f0] sm:$0xff]
      %v586 = vld [vmem:[%s1 + $0x5f8] sm:$0xff]
      %v587 = vld [vmem:[%s1 + $0x600] sm:$0xff]
      %v588 = vld [vmem:[%s1 + $0x608] sm:$0xff]
      %v589 = vld [vmem:[%s1 + $0x610] sm:$0xff]
      %v590 = vld [vmem:[%s1 + $0x618] sm:$0xff]
      %v591 = vld [vmem:[%s1 + $0x620] sm:$0xff]
      %v592 = vld [vmem:[%s1 + $0x628] sm:$0xff]
      %v593 = vld [vmem:[%s1 + $0x630] sm:$0xff]
      %v594 = vld [vmem:[%s1 + $0x638] sm:$0xff]
      %v595 = vld [vmem:[%s1 + $0x640] sm:$0xff]
      %v596 = vld [vmem:[%s1 + $0x648] sm:$0xff]
      %v597 = vld [vmem:[%s1 + $0x650] sm:$0xff]
      %v598 = vld [vmem:[%s1 + $0x658] sm:$0xff]
      %v599 = vld [vmem:[%s1 + $0x660] sm:$0xff]
      %v600 = vld [vmem:[%s1 + $0x668] sm:$0xff]
      %v601 = vld [vmem:[%s1 + $0x670] sm:$0xff]
      %v602 = vld [vmem:[%s1 + $0x678] sm:$0xff]
      %v603 = vld [vmem:[%s1 + $0x680] sm:$0xff]
      %v604 = vld [vmem:[%s1 + $0x688] sm:$0xff]
      %v605 = vld [vmem:[%s1 + $0x690] sm:$0xff]
      %v606 = vld [vmem:[%s1 + $0x698] sm:$0xff]
      %v607 = vld [vmem:[%s1 + $0x6a0] sm:$0xff]
      %v608 = vld [vmem:[%s1 + $0x6a8] sm:$0xff]
      %v609 = vld [vmem:[%s1 + $0x6b0] sm:$0xff]
      %v610 = vld [vmem:[%s1 + $0x6b8] sm:$0xff]
      %v611 = vld [vmem:[%s1 + $0x6c0] sm:$0xff]
      %v612 = vld [vmem:[%s1 + $0x6c8] sm:$0xff]
      %v613 = vld [vmem:[%s1 + $0x6d0] sm:$0xff]
      %v614 = vld [vmem:[%s1 + $0x6d8] sm:$0xff]
      %v615 = vld [vmem:[%s1 + $0x6e0] sm:$0xff]
      %v616 = vld [vmem:[%s1 + $0x6e8] sm:$0xff]
      %v617 = vld [vmem:[%s1 + $0x6f0] sm:$0xff]
      %v618 = vld [vmem:[%s1 + $0x6f8] sm:$0xff]
      %v619 = vld [vmem:[%s1 + $0x700] sm:$0xff]
      %v620 = vld [vmem:[%s1 + $0x708] sm:$0xff]
      %v621 = vld [vmem:[%s1 + $0x710] sm:$0xff]
      %v622 = vld [vmem:[%s1 + $0x718] sm:$0xff]
      %v623 = vld [vmem:[%s1 + $0x720] sm:$0xff]
      %v624 = vld [vmem:[%s1 + $0x728] sm:$0xff]
      %v625 = vld [vmem:[%s1 + $0x730] sm:$0xff]
      %v626 = vld [vmem:[%s1 + $0x738] sm:$0xff]
      %v627 = vld [vmem:[%s1 + $0x740] sm:$0xff]
      %v628 = vld [vmem:[%s1 + $0x748] sm:$0xff]
      %v629 = vld [vmem:[%s1 + $0x750] sm:$0xff]
      %v630 = vld [vmem:[%s1 + $0x758] sm:$0xff]
      %v631 = vld [vmem:[%s1 + $0x760] sm:$0xff]
      %v632 = vld [vmem:[%s1 + $0x768] sm:$0xff]
      %v633 = vld [vmem:[%s1 + $0x770] sm:$0xff]
      %v634 = vld [vmem:[%s1 + $0x778] sm:$0xff]
      %v635 = vld [vmem:[%s1 + $0x780] sm:$0xff]
      %v636 = vld [vmem:[%s1 + $0x788] sm:$0xff]
      %v637 = vld [vmem:[%s1 + $0x790] sm:$0xff]
      %v638 = vld [vmem:[%s1 + $0x798] sm:$0xff]
      %v639 = vld [vmem:[%s1 + $0x7a0] sm:$0xff]
      %v640 = vld [vmem:[%s1 + $0x7a8] sm:$0xff]
      %v641 = vld [vmem:[%s1 + $0x7b0] sm:$0xff]
      %v642 = vld [vmem:[%s1 + $0x7b8] sm:$0xff]
      %v643 = vld [vmem:[%s1 + $0x7c0] sm:$0xff]
      %v644 = vld [vmem:[%s1 + $0x7c8] sm:$0xff]
      %v645 = vld [vmem:[%s1 + $0x7d0] sm:$0xff]
      %v646 = vld [vmem:[%s1 + $0x7d8] sm:$0xff]
      %v647 = vld [vmem:[%s1 + $0x7e0] sm:$0xff]
      %v648 = vld [vmem:[%s1 + $0x7e8] sm:$0xff]
      %v649 = vld [vmem:[%s1 + $0x7f0] sm:$0xff]
      %v650 = vld [vmem:[%s1 + $0x7f8] sm:$0xff]
      %v651 = vld [vmem:[%s1 + $0x800] sm:$0xff]
      %v652 = vld [vmem:[%s1 + $0x808] sm:$0xff]
      %v653 = vld [vmem:[%s1 + $0x810] sm:$0xff]
      %v654 = vld [vmem:[%s1 + $0x818] sm:$0xff]
      %v655 = vld [vmem:[%s1 + $0x820] sm:$0xff]
      %v656 = vld [vmem:[%s1 + $0x828] sm:$0xff]
      %v657 = vld [vmem:[%s1 + $0x830] sm:$0xff]
      %v658 = vld [vmem:[%s1 + $0x838] sm:$0xff]
      %v659 = vld [vmem:[%s1 + $0x840] sm:$0xff]
      %v660 = vld [vmem:[%s1 + $0x848] sm:$0xff]
      %v661 = vld [vmem:[%s1 + $0x850] sm:$0xff]
      %v662 = vld [vmem:[%s1 + $0x858] sm:$0xff]
      %v663 = vld [vmem:[%s1 + $0x860] sm:$0xff]
      %v664 = vld [vmem:[%s1 + $0x868] sm:$0xff]
      %v665 = vld [vmem:[%s1 + $0x870] sm:$0xff]
      %v666 = vld [vmem:[%s1 + $0x878] sm:$0xff]
      %v667 = vld [vmem:[%s1 + $0x880] sm:$0xff]
      %v668 = vld [vmem:[%s1 + $0x888] sm:$0xff]
      %v669 = vld [vmem:[%s1 + $0x890] sm:$0xff]
      %v670 = vld [vmem:[%s1 + $0x898] sm:$0xff]
      %v671 = vld [vmem:[%s1 + $0x8a0] sm:$0xff]
      %v672 = vld [vmem:[%s1 + $0x8a8] sm:$0xff]
      %v673 = vld [vmem:[%s1 + $0x8b0] sm:$0xff]
      %v674 = vld [vmem:[%s1 + $0x8b8] sm:$0xff]
      %v675 = vld [vmem:[%s1 + $0x8c0] sm:$0xff]
      %v676 = vld [vmem:[%s1 + $0x8c8] sm:$0xff]
      %v677 = vld [vmem:[%s1 + $0x8d0] sm:$0xff]
      %v678 = vld [vmem:[%s1 + $0x8d8] sm:$0xff]
      %v679 = vld [vmem:[%s1 + $0x8e0] sm:$0xff]
      %v680 = vld [vmem:[%s1 + $0x8e8] sm:$0xff]
      %v681 = vld [vmem:[%s1 + $0x8f0] sm:$0xff]
      %v682 = vld [vmem:[%s1 + $0x8f8] sm:$0xff]
      %v683 = vld [vmem:[%s1 + $0x900] sm:$0xff]
      %v684 = vld [vmem:[%s1 + $0x908] sm:$0xff]
      %v685 = vld [vmem:[%s1 + $0x910] sm:$0xff]
      %v686 = vld [vmem:[%s1 + $0x918] sm:$0xff]
      %v687 = vld [vmem:[%s1 + $0x920] sm:$0xff]
      %v688 = vld [vmem:[%s1 + $0x928] sm:$0xff]
      %v689 = vld [vmem:[%s1 + $0x930] sm:$0xff]
      %v690 = vld [vmem:[%s1 + $0x938] sm:$0xff]
      %v691 = vld [vmem:[%s1 + $0x940] sm:$0xff]
      %v692 = vld [vmem:[%s1 + $0x948] sm:$0xff]
      %v693 = vld [vmem:[%s1 + $0x950] sm:$0xff]
      %v694 = vld [vmem:[%s1 + $0x958] sm:$0xff]
      %v695 = vld [vmem:[%s1 + $0x960] sm:$0xff]
      %v696 = vld [vmem:[%s1 + $0x968] sm:$0xff]
      %v697 = vld [vmem:[%s1 + $0x970] sm:$0xff]
      %v698 = vld [vmem:[%s1 + $0x978] sm:$0xff]
      %v699 = vld [vmem:[%s1 + $0x980] sm:$0xff]
      %v700 = vld [vmem:[%s1 + $0x988] sm:$0xff]
      %v701 = vld [vmem:[%s1 + $0x990] sm:$0xff]
      %v702 = vld [vmem:[%s1 + $0x998] sm:$0xff]
      %v703 = vld [vmem:[%s1 + $0x9a0] sm:$0xff]
      %v704 = vld [vmem:[%s1 + $0x9a8] sm:$0xff]
      %v705 = vld [vmem:[%s1 + $0x9b0] sm:$0xff]
      %v706 = vld [vmem:[%s1 + $0x9b8] sm:$0xff]
      %v707 = vld [vmem:[%s1 + $0x9c0] sm:$0xff]
      %v708 = vld [vmem:[%s1 + $0x9c8] sm:$0xff]
      %v709 = vld [vmem:[%s1 + $0x9d0] sm:$0xff]
      %v710 = vld [vmem:[%s1 + $0x9d8] sm:$0xff]
      %v711 = vld [vmem:[%s1 + $0x9e0] sm:$0xff]
      %v712 = vld [vmem:[%s1 + $0x9e8] sm:$0xff]
      %v713 = vld [vmem:[%s1 + $0x9f0] sm:$0xff]
      %v714 = vld [vmem:[%s1 + $0x9f8] sm:$0xff]
      %v715 = vld [vmem:[%s1 + $0xa00] sm:$0xff]
      %v716 = vld [vmem:[%s1 + $0xa08] sm:$0xff]
      %v717 = vld [vmem:[%s1 + $0xa10] sm:$0xff]
      %v718 = vld [vmem:[%s1 + $0xa18] sm:$0xff]
      %v719 = vld [vmem:[%s1 + $0xa20] sm:$0xff]
      %v720 = vld [vmem:[%s1 + $0xa28] sm:$0xff]
      %v721 = vld [vmem:[%s1 + $0xa30] sm:$0xff]
      %v722 = vld [vmem:[%s1 + $0xa38] sm:$0xff]
      %v723 = vld [vmem:[%s1 + $0xa40] sm:$0xff]
      %v724 = vld [vmem:[%s1 + $0xa48] sm:$0xff]
      %v725 = vld [vmem:[%s1 + $0xa50] sm:$0xff]
      %v726 = vld [vmem:[%s1 + $0xa58] sm:$0xff]
      %v727 = vld [vmem:[%s1 + $0xa60] sm:$0xff]
      %v728 = vld [vmem:[%s1 + $0xa68] sm:$0xff]
      %v729 = vld [vmem:[%s1 + $0xa70] sm:$0xff]
      %v730 = vld [vmem:[%s1 + $0xa78] sm:$0xff]
      %v731 = vld [vmem:[%s1 + $0xa80] sm:$0xff]
      %v732 = vld [vmem:[%s1 + $0xa88] sm:$0xff]
      %v733 = vld [vmem:[%s1 + $0xa90] sm:$0xff]
      %v734 = vld [vmem:[%s1 + $0xa98] sm:$0xff]
      %v735 = vld [vmem:[%s1 + $0xaa0] sm:$0xff]
      %v736 = vld [vmem:[%s1 + $0xaa8] sm:$0xff]
      %v737 = vld [vmem:[%s1 + $0xab0] sm:$0xff]
      %v738 = vld [vmem:[%s1 + $0xab8] sm:$0xff]
      %v739 = vld [vmem:[%s1 + $0xac0] sm:$0xff]
      %v740 = vld [vmem:[%s1 + $0xac8] sm:$0xff]
      %v741 = vld [vmem:[%s1 + $0xad0] sm:$0xff]
      %v742 = vld [vmem:[%s1 + $0xad8] sm:$0xff]
      %v743 = vld [vmem:[%s1 + $0xae0] sm:$0xff]
      %v744 = vld [vmem:[%s1 + $0xae8] sm:$0xff]
      %v745 = vld [vmem:[%s1 + $0xaf0] sm:$0xff]
      %v746 = vld [vmem:[%s1 + $0xaf8] sm:$0xff]
      %v747 = vld [vmem:[%s1 + $0xb00] sm:$0xff]
      %v748 = vld [vmem:[%s1 + $0xb08] sm:$0xff]
      %v749 = vld [vmem:[%s1 + $0xb10] sm:$0xff]
      %v750 = vld [vmem:[%s1 + $0xb18] sm:$0xff]
      %v751 = vld [vmem:[%s1 + $0xb20] sm:$0xff]
      %v752 = vld [vmem:[%s1 + $0xb28] sm:$0xff]
      %v753 = vld [vmem:[%s1 + $0xb30] sm:$0xff]
      %v754 = vld [vmem:[%s1 + $0xb38] sm:$0xff]
      %v755 = vld [vmem:[%s1 + $0xb40] sm:$0xff]
      %v756 = vld [vmem:[%s1 + $0xb48] sm:$0xff]
      %v757 = vld [vmem:[%s1 + $0xb50] sm:$0xff]
      %v758 = vld [vmem:[%s1 + $0xb58] sm:$0xff]
      %v759 = vld [vmem:[%s1 + $0xb60] sm:$0xff]
      %v760 = vld [vmem:[%s1 + $0xb68] sm:$0xff]
      %v761 = vld [vmem:[%s1 + $0xb70] sm:$0xff]
      %v762 = vld [vmem:[%s1 + $0xb78] sm:$0xff]
      %v763 = vld [vmem:[%s1 + $0xb80] sm:$0xff]
      %v764 = vld [vmem:[%s1 + $0xb88] sm:$0xff]
      %v765 = vld [vmem:[%s1 + $0xb90] sm:$0xff]
      %v766 = vld [vmem:[%s1 + $0xb98] sm:$0xff]
      %v767 = vld [vmem:[%s1 + $0xba0] sm:$0xff]
      %v768 = vld [vmem:[%s1 + $0xba8] sm:$0xff]
      %v769 = vld [vmem:[%s1 + $0xbb0] sm:$0xff]
      %v770 = vld [vmem:[%s1 + $0xbb8] sm:$0xff]
      %v771 = vld [vmem:[%s1 + $0xbc0] sm:$0xff]
      %v772 = vld [vmem:[%s1 + $0xbc8] sm:$0xff]
      %v773 = vld [vmem:[%s1 + $0xbd0] sm:$0xff]
      %v774 = vld [vmem:[%s1 + $0xbd8] sm:$0xff]
      %v775 = vld [vmem:[%s1 + $0xbe0] sm:$0xff]
      %v776 = vld [vmem:[%s1 + $0xbe8] sm:$0xff]
      %v777 = vld [vmem:[%s1 + $0xbf0] sm:$0xff]
      %v778 = vld [vmem:[%s1 + $0xbf8] sm:$0xff]
      %v779 = vld [vmem:[%s1 + $0xc00] sm:$0xff]
      %v780 = vld [vmem:[%s1 + $0xc08] sm:$0xff]
      %v781 = vld [vmem:[%s1 + $0xc10] sm:$0xff]
      %v782 = vld [vmem:[%s1 + $0xc18] sm:$0xff]
      %v783 = vld [vmem:[%s1 + $0xc20] sm:$0xff]
      %v784 = vld [vmem:[%s1 + $0xc28] sm:$0xff]
      %v785 = vld [vmem:[%s1 + $0xc30] sm:$0xff]
      %v786 = vld [vmem:[%s1 + $0xc38] sm:$0xff]
      %v787 = vld [vmem:[%s1 + $0xc40] sm:$0xff]
      %v788 = vld [vmem:[%s1 + $0xc48] sm:$0xff]
      %v789 = vld [vmem:[%s1 + $0xc50] sm:$0xff]
      %v790 = vld [vmem:[%s1 + $0xc58] sm:$0xff]
      %v791 = vld [vmem:[%s1 + $0xc60] sm:$0xff]
      %v792 = vld [vmem:[%s1 + $0xc68] sm:$0xff]
      %v793 = vld [vmem:[%s1 + $0xc70] sm:$0xff]
      %v794 = vld [vmem:[%s1 + $0xc78] sm:$0xff]
      %v795 = vld [vmem:[%s1 + $0xc80] sm:$0xff]
      %v796 = vld [vmem:[%s1 + $0xc88] sm:$0xff]
      %v797 = vld [vmem:[%s1 + $0xc90] sm:$0xff]
      %v798 = vld [vmem:[%s1 + $0xc98] sm:$0xff]
      %v799 = vld [vmem:[%s1 + $0xca0] sm:$0xff]
      %v800 = vld [vmem:[%s1 + $0xca8] sm:$0xff]
      %v801 = vld [vmem:[%s1 + $0xcb0] sm:$0xff]
      %v802 = vld [vmem:[%s1 + $0xcb8] sm:$0xff]
      %v803 = vld [vmem:[%s1 + $0xcc0] sm:$0xff]
      %v804 = vld [vmem:[%s1 + $0xcc8] sm:$0xff]
      %v805 = vld [vmem:[%s1 + $0xcd0] sm:$0xff]
      %v806 = vld [vmem:[%s1 + $0xcd8] sm:$0xff]
      %v807 = vld [vmem:[%s1 + $0xce0] sm:$0xff]
      %v808 = vld [vmem:[%s1 + $0xce8] sm:$0xff]
      %v809 = vld [vmem:[%s1 + $0xcf0] sm:$0xff]
      %v810 = vld [vmem:[%s1 + $0xcf8] sm:$0xff]
      %v811 = vld [vmem:[%s1 + $0xd00] sm:$0xff]
      %v812 = vld [vmem:[%s1 + $0xd08] sm:$0xff]
      %v813 = vld [vmem:[%s1 + $0xd10] sm:$0xff]
      %v814 = vld [vmem:[%s1 + $0xd18] sm:$0xff]
      %v815 = vld [vmem:[%s1 + $0xd20] sm:$0xff]
      %v816 = vld [vmem:[%s1 + $0xd28] sm:$0xff]
      %v817 = vld [vmem:[%s1 + $0xd30] sm:$0xff]
      %v818 = vld [vmem:[%s1 + $0xd38] sm:$0xff]
      %v819 = vld [vmem:[%s1 + $0xd40] sm:$0xff]
      %v820 = vld [vmem:[%s1 + $0xd48] sm:$0xff]
      %v821 = vld [vmem:[%s1 + $0xd50] sm:$0xff]
      %v822 = vld [vmem:[%s1 + $0xd58] sm:$0xff]
      %v823 = vld [vmem:[%s1 + $0xd60] sm:$0xff]
      %v824 = vld [vmem:[%s1 + $0xd68] sm:$0xff]
      %v825 = vld [vmem:[%s1 + $0xd70] sm:$0xff]
      %v826 = vld [vmem:[%s1 + $0xd78] sm:$0xff]
      %v827 = vld [vmem:[%s1 + $0xd80] sm:$0xff]
      %v828 = vld [vmem:[%s1 + $0xd88] sm:$0xff]
      %v829 = vld [vmem:[%s1 + $0xd90] sm:$0xff]
      %v830 = vld [vmem:[%s1 + $0xd98] sm:$0xff]
      %v831 = vld [vmem:[%s1 + $0xda0] sm:$0xff]
      %v832 = vld [vmem:[%s1 + $0xda8] sm:$0xff]
      %v833 = vld [vmem:[%s1 + $0xdb0] sm:$0xff]
      %v834 = vld [vmem:[%s1 + $0xdb8] sm:$0xff]
      %v835 = vld [vmem:[%s1 + $0xdc0] sm:$0xff]
      %v836 = vld [vmem:[%s1 + $0xdc8] sm:$0xff]
      %v837 = vld [vmem:[%s1 + $0xdd0] sm:$0xff]
      %v838 = vld [vmem:[%s1 + $0xdd8] sm:$0xff]
      %v839 = vld [vmem:[%s1 + $0xde0] sm:$0xff]
      %v840 = vld [vmem:[%s1 + $0xde8] sm:$0xff]
      %v841 = vld [vmem:[%s1 + $0xdf0] sm:$0xff]
      %v842 = vld [vmem:[%s1 + $0xdf8] sm:$0xff]
      %v843 = vld [vmem:[%s1 + $0xe00] sm:$0xff]
      %v844 = vld [vmem:[%s1 + $0xe08] sm:$0xff]
      %v845 = vld [vmem:[%s1 + $0xe10] sm:$0xff]
      %v846 = vld [vmem:[%s1 + $0xe18] sm:$0xff]
      %v847 = vld [vmem:[%s1 + $0xe20] sm:$0xff]
      %v848 = vld [vmem:[%s1 + $0xe28] sm:$0xff]
      %v849 = vld [vmem:[%s1 + $0xe30] sm:$0xff]
      %v850 = vld [vmem:[%s1 + $0xe38] sm:$0xff]
      %v851 = vld [vmem:[%s1 + $0xe40] sm:$0xff]
      %v852 = vld [vmem:[%s1 + $0xe48] sm:$0xff]
      %v853 = vld [vmem:[%s1 + $0xe50] sm:$0xff]
      %v854 = vld [vmem:[%s1 + $0xe58] sm:$0xff]
      %v855 = vld [vmem:[%s1 + $0xe60] sm:$0xff]
      %v856 = vld [vmem:[%s1 + $0xe68] sm:$0xff]
      %v857 = vld [vmem:[%s1 + $0xe70] sm:$0xff]
      %v858 = vld [vmem:[%s1 + $0xe78] sm:$0xff]
      %v859 = vld [vmem:[%s1 + $0xe80] sm:$0xff]
      %v860 = vld [vmem:[%s1 + $0xe88] sm:$0xff]
      %v861 = vld [vmem:[%s1 + $0xe90] sm:$0xff]
      %v862 = vld [vmem:[%s1 + $0xe98] sm:$0xff]
      %v863 = vld [vmem:[%s1 + $0xea0] sm:$0xff]
      %v864 = vld [vmem:[%s1 + $0xea8] sm:$0xff]
      %v865 = vld [vmem:[%s1 + $0xeb0] sm:$0xff]
      %v866 = vld [vmem:[%s1 + $0xeb8] sm:$0xff]
      %v867 = vld [vmem:[%s1 + $0xec0] sm:$0xff]
      %v868 = vld [vmem:[%s1 + $0xec8] sm:$0xff]
      %v869 = vld [vmem:[%s1 + $0xed0] sm:$0xff]
      %v870 = vld [vmem:[%s1 + $0xed8] sm:$0xff]
      %v871 = vld [vmem:[%s1 + $0xee0] sm:$0xff]
      %v872 = vld [vmem:[%s1 + $0xee8] sm:$0xff]
      %v873 = vld [vmem:[%s1 + $0xef0] sm:$0xff]
      %v874 = vld [vmem:[%s1 + $0xef8] sm:$0xff]
      %v875 = vld [vmem:[%s1 + $0xf00] sm:$0xff]
      %v876 = vld [vmem:[%s1 + $0xf08] sm:$0xff]
      %v877 = vld [vmem:[%s1 + $0xf10] sm:$0xff]
      %v878 = vld [vmem:[%s1 + $0xf18] sm:$0xff]
      %v879 = vld [vmem:[%s1 + $0xf20] sm:$0xff]
      %v880 = vld [vmem:[%s1 + $0xf28] sm:$0xff]
      %v881 = vld [vmem:[%s1 + $0xf30] sm:$0xff]
      %v882 = vld [vmem:[%s1 + $0xf38] sm:$0xff]
      %v883 = vld [vmem:[%s1 + $0xf40] sm:$0xff]
      %v884 = vld [vmem:[%s1 + $0xf48] sm:$0xff]
      %v885 = vld [vmem:[%s1 + $0xf50] sm:$0xff]
      %v886 = vld [vmem:[%s1 + $0xf58] sm:$0xff]
      %v887 = vld [vmem:[%s1 + $0xf60] sm:$0xff]
      %v888 = vld [vmem:[%s1 + $0xf68] sm:$0xff]
      %v889 = vld [vmem:[%s1 + $0xf70] sm:$0xff]
      %v890 = vld [vmem:[%s1 + $0xf78] sm:$0xff]
      %v891 = vld [vmem:[%s1 + $0xf80] sm:$0xff]
      %v892 = vld [vmem:[%s1 + $0xf88] sm:$0xff]
      %v893 = vld [vmem:[%s1 + $0xf90] sm:$0xff]
      %v894 = vld [vmem:[%s1 + $0xf98] sm:$0xff]
      %v895 = vld [vmem:[%s1 + $0xfa0] sm:$0xff]
      %v896 = vld [vmem:[%s1 + $0xfa8] sm:$0xff]
      %v897 = vld [vmem:[%s1 + $0xfb0] sm:$0xff]
      %v898 = vld [vmem:[%s1 + $0xfb8] sm:$0xff]
      %v899 = vld [vmem:[%s1 + $0xfc0] sm:$0xff]
      %v900 = vld [vmem:[%s1 + $0xfc8] sm:$0xff]
      %v901 = vld [vmem:[%s1 + $0xfd0] sm:$0xff]
      %v902 = vld [vmem:[%s1 + $0xfd8] sm:$0xff]
      %v903 = vld [vmem:[%s1 + $0xfe0] sm:$0xff]
      %v904 = vld [vmem:[%s1 + $0xfe8] sm:$0xff]
      %v905 = vld [vmem:[%s1 + $0xff0] sm:$0xff]
      %v906 = vld [vmem:[%s1 + $0xff8] sm:$0xff]
      %v907 = vld [vmem:[%s1 + $0x1000] sm:$0xff]
      %v908 = vld [vmem:[%s1 + $0x1008] sm:$0xff]
      %v909 = vld [vmem:[%s1 + $0x1010] sm:$0xff]
      %v910 = vld [vmem:[%s1 + $0x1018] sm:$0xff]
      %v911 = vld [vmem:[%s1 + $0x1020] sm:$0xff]
      %v912 = vld [vmem:[%s1 + $0x1028] sm:$0xff]
      %v913 = vld [vmem:[%s1 + $0x1030] sm:$0xff]
      %v914 = vld [vmem:[%s1 + $0x1038] sm:$0xff]
      %v915 = vld [vmem:[%s1 + $0x1040] sm:$0xff]
      %v916 = vld [vmem:[%s1 + $0x1048] sm:$0xff]
      %v917 = vld [vmem:[%s1 + $0x1050] sm:$0xff]
      %v918 = vld [vmem:[%s1 + $0x1058] sm:$0xff]
      %v919 = vld [vmem:[%s1 + $0x1060] sm:$0xff]
      %v920 = vld [vmem:[%s1 + $0x1068] sm:$0xff]
      %v921 = vld [vmem:[%s1 + $0x1070] sm:$0xff]
      %v922 = vld [vmem:[%s1 + $0x1078] sm:$0xff]
      %v923 = vld [vmem:[%s1 + $0x1080] sm:$0xff]
      %v924 = vld [vmem:[%s1 + $0x1088] sm:$0xff]
      %v925 = vld [vmem:[%s1 + $0x1090] sm:$0xff]
      %v926 = vld [vmem:[%s1 + $0x1098] sm:$0xff]
      %v927 = vld [vmem:[%s1 + $0x10a0] sm:$0xff]
      %v928 = vld [vmem:[%s1 + $0x10a8] sm:$0xff]
      %v929 = vld [vmem:[%s1 + $0x10b0] sm:$0xff]
      %v930 = vld [vmem:[%s1 + $0x10b8] sm:$0xff]
      %v931 = vld [vmem:[%s1 + $0x10c0] sm:$0xff]
      %v932 = vld [vmem:[%s1 + $0x10c8] sm:$0xff]
      %v933 = vld [vmem:[%s1 + $0x10d0] sm:$0xff]
      %v934 = vld [vmem:[%s1 + $0x10d8] sm:$0xff]
      %v935 = vld [vmem:[%s1 + $0x10e0] sm:$0xff]
      %v936 = vld [vmem:[%s1 + $0x10e8] sm:$0xff]
      %v937 = vld [vmem:[%s1 + $0x10f0] sm:$0xff]
      %v938 = vld [vmem:[%s1 + $0x10f8] sm:$0xff]
      %v939 = vld [vmem:[%s1 + $0x1100] sm:$0xff]
      %v940 = vld [vmem:[%s1 + $0x1108] sm:$0xff]
      %v941 = vld [vmem:[%s1 + $0x1110] sm:$0xff]
      %v942 = vld [vmem:[%s1 + $0x1118] sm:$0xff]
      %v943 = vld [vmem:[%s1 + $0x1120] sm:$0xff]
      %v944 = vld [vmem:[%s1 + $0x1128] sm:$0xff]
      %v945 = vld [vmem:[%s1 + $0x1130] sm:$0xff]
      %v946 = vld [vmem:[%s1 + $0x1138] sm:$0xff]
      %v947 = vld [vmem:[%s1 + $0x1140] sm:$0xff]
      %v948 = vld [vmem:[%s1 + $0x1148] sm:$0xff]
      %v949 = vld [vmem:[%s1 + $0x1150] sm:$0xff]
      %v950 = vld [vmem:[%s1 + $0x1158] sm:$0xff]
      %v951 = vld [vmem:[%s1 + $0x1160] sm:$0xff]
      %v952 = vld [vmem:[%s1 + $0x1168] sm:$0xff]
      %v953 = vld [vmem:[%s1 + $0x1170] sm:$0xff]
      %v954 = vld [vmem:[%s1 + $0x1178] sm:$0xff]
      %v955 = vld [vmem:[%s1 + $0x1180] sm:$0xff]
      %v956 = vld [vmem:[%s1 + $0x1188] sm:$0xff]
      %v957 = vld [vmem:[%s1 + $0x1190] sm:$0xff]
      %v958 = vld [vmem:[%s1 + $0x1198] sm:$0xff]
      %v959 = vld [vmem:[%s1 + $0x11a0] sm:$0xff]
      %v960 = vld [vmem:[%s1 + $0x11a8] sm:$0xff]
      %v961 = vld [vmem:[%s1 + $0x11b0] sm:$0xff]
      %v962 = vld [vmem:[%s1 + $0x11b8] sm:$0xff]
      %v963 = vld [vmem:[%s1 + $0x11c0] sm:$0xff]
      %v964 = vld [vmem:[%s1 + $0x11c8] sm:$0xff]
      %v965 = vld [vmem:[%s1 + $0x11d0] sm:$0xff]
      %v966 = vld [vmem:[%s1 + $0x11d8] sm:$0xff]
      %v967 = vld [vmem:[%s1 + $0x11e0] sm:$0xff]
      %v968 = vld [vmem:[%s1 + $0x11e8] sm:$0xff]
      %v969 = vld [vmem:[%s1 + $0x11f0] sm:$0xff]
      %v970 = vld [vmem:[%s1 + $0x11f8] sm:$0xff]
      %v971 = vld [vmem:[%s1 + $0x1200] sm:$0xff]
      %v972 = vld [vmem:[%s1 + $0x1208] sm:$0xff]
      %v973 = vld [vmem:[%s1 + $0x1210] sm:$0xff]
      %v974 = vld [vmem:[%s1 + $0x1218] sm:$0xff]
      %v975 = vld [vmem:[%s1 + $0x1220] sm:$0xff]
      %v976 = vld [vmem:[%s1 + $0x1228] sm:$0xff]
      %v977 = vld [vmem:[%s1 + $0x1230] sm:$0xff]
      %v978 = vld [vmem:[%s1 + $0x1238] sm:$0xff]
      %v979 = vld [vmem:[%s1 + $0x1240] sm:$0xff]
      %v980 = vld [vmem:[%s1 + $0x1248] sm:$0xff]
      %v981 = vld [vmem:[%s1 + $0x1250] sm:$0xff]
      %v982 = vld [vmem:[%s1 + $0x1258] sm:$0xff]
      %v983 = vld [vmem:[%s1 + $0x1260] sm:$0xff]
      %v984 = vld [vmem:[%s1 + $0x1268] sm:$0xff]
      %v985 = vld [vmem:[%s1 + $0x1270] sm:$0xff]
      %v986 = vld [vmem:[%s1 + $0x1278] sm:$0xff]
      %v987 = vld [vmem:[%s1 + $0x1280] sm:$0xff]
      %v988 = vld [vmem:[%s1 + $0x1288] sm:$0xff]
      %v989 = vld [vmem:[%s1 + $0x1290] sm:$0xff]
      %v990 = vld [vmem:[%s1 + $0x1298] sm:$0xff]
      %v991 = vld [vmem:[%s1 + $0x12a0] sm:$0xff]
      %v992 = vld [vmem:[%s1 + $0x12a8] sm:$0xff]
      %v993 = vld [vmem:[%s1 + $0x12b0] sm:$0xff]
      %v994 = vld [vmem:[%s1 + $0x12b8] sm:$0xff]
      %v995 = vld [vmem:[%s1 + $0x12c0] sm:$0xff]
      %v996 = vld [vmem:[%s1 + $0x12c8] sm:$0xff]
      %v997 = vld [vmem:[%s1 + $0x12d0] sm:$0xff]
      %v998 = vld [vmem:[%s1 + $0x12d8] sm:$0xff]
      %v999 = vld [vmem:[%s1 + $0x12e0] sm:$0xff]
      %v1000 = vld [vmem:[%s1 + $0x12e8] sm:$0xff]
      %v1001 = vld [vmem:[%s1 + $0x12f0] sm:$0xff]
      %v1002 = vld [vmem:[%s1 + $0x12f8] sm:$0xff]
      %v1003 = vld [vmem:[%s1 + $0x1300] sm:$0xff]
      %v1004 = vld [vmem:[%s1 + $0x1308] sm:$0xff]
      %v1005 = vld [vmem:[%s1 + $0x1310] sm:$0xff]
      %v1006 = vld [vmem:[%s1 + $0x1318] sm:$0xff]
      %v1007 = vld [vmem:[%s1 + $0x1320] sm:$0xff]
      %v1008 = vld [vmem:[%s1 + $0x1328] sm:$0xff]
      %v1009 = vld [vmem:[%s1 + $0x1330] sm:$0xff]
      %v1010 = vld [vmem:[%s1 + $0x1338] sm:$0xff]
      %v1011 = vld [vmem:[%s1 + $0x1340] sm:$0xff]
      %v1012 = vld [vmem:[%s1 + $0x1348] sm:$0xff]
      %v1013 = vld [vmem:[%s1 + $0x1350] sm:$0xff]
      %v1014 = vld [vmem:[%s1 + $0x1358] sm:$0xff]
      %v1015 = vld [vmem:[%s1 + $0x1360] sm:$0xff]
      %v1016 = vld [vmem:[%s1 + $0x1368] sm:$0xff]
      %v1017 = vld [vmem:[%s1 + $0x1370] sm:$0xff]
      %v1018 = vld [vmem:[%s1 + $0x1378] sm:$0xff]
      %v1019 = vld [vmem:[%s1 + $0x1380] sm:$0xff]
      %v1020 = vld [vmem:[%s1 + $0x1388] sm:$0xff]
      %v1021 = vld [vmem:[%s1 + $0x1390] sm:$0xff]
      %v1022 = vld [vmem:[%s1 + $0x1398] sm:$0xff]
      %v1023 = vld [vmem:[%s1 + $0x13a0] sm:$0xff]
      %v1024 = vld [vmem:[%s1 + $0x13a8] sm:$0xff]
      %v1025 = vld [vmem:[%s1 + $0x13b0] sm:$0xff]
      %v1026 = vld [vmem:[%s1 + $0x13b8] sm:$0xff]
      %v1027 = vld [vmem:[%s1 + $0x13c0] sm:$0xff]
      %v1028 = vld [vmem:[%s1 + $0x13c8] sm:$0xff]
      %v1029 = vld [vmem:[%s1 + $0x13d0] sm:$0xff]
      %v1030 = vld [vmem:[%s1 + $0x13d8] sm:$0xff]
      %v1031 = vld [vmem:[%s1 + $0x13e0] sm:$0xff]
      %v1032 = vld [vmem:[%s1 + $0x13e8] sm:$0xff]
      %v1033 = vld [vmem:[%s1 + $0x13f0] sm:$0xff]
      %v1034 = vld [vmem:[%s1 + $0x13f8] sm:$0xff]
      %v1035 = vld [vmem:[%s1 + $0x1400] sm:$0xff]
      %v1036 = vld [vmem:[%s1 + $0x1408] sm:$0xff]
      %v1037 = vld [vmem:[%s1 + $0x1410] sm:$0xff]
      %v1038 = vld [vmem:[%s1 + $0x1418] sm:$0xff]
      %v1039 = vld [vmem:[%s1 + $0x1420] sm:$0xff]
      %v1040 = vld [vmem:[%s1 + $0x1428] sm:$0xff]
      %v1041 = vld [vmem:[%s1 + $0x1430] sm:$0xff]
      %v1042 = vld [vmem:[%s1 + $0x1438] sm:$0xff]
      %v1043 = vld [vmem:[%s1 + $0x1440] sm:$0xff]
      %v1044 = vld [vmem:[%s1 + $0x1448] sm:$0xff]
      %v1045 = vld [vmem:[%s1 + $0x1450] sm:$0xff]
      %v1046 = vld [vmem:[%s1 + $0x1458] sm:$0xff]
      %v1047 = vld [vmem:[%s1 + $0x1460] sm:$0xff]
      %v1048 = vld [vmem:[%s1 + $0x1468] sm:$0xff]
      %v1049 = vld [vmem:[%s1 + $0x1470] sm:$0xff]
      %v1050 = vld [vmem:[%s1 + $0x1478] sm:$0xff]
      %v1051 = vld [vmem:[%s1 + $0x1480] sm:$0xff]
      %v1052 = vld [vmem:[%s1 + $0x1488] sm:$0xff]
      %v1053 = vld [vmem:[%s1 + $0x1490] sm:$0xff]
      %v1054 = vld [vmem:[%s1 + $0x1498] sm:$0xff]
      %v1055 = vld [vmem:[%s1 + $0x14a0] sm:$0xff]
      %v1056 = vld [vmem:[%s1 + $0x14a8] sm:$0xff]
      %v1057 = vld [vmem:[%s1 + $0x14b0] sm:$0xff]
      %v1058 = vld [vmem:[%s1 + $0x14b8] sm:$0xff]
      %v1059 = vld [vmem:[%s1 + $0x14c0] sm:$0xff]
      %v1060 = vld [vmem:[%s1 + $0x14c8] sm:$0xff]
      %v1061 = vld [vmem:[%s1 + $0x14d0] sm:$0xff]
      %v1062 = vld [vmem:[%s1 + $0x14d8] sm:$0xff]
      %v1063 = vld [vmem:[%s1 + $0x14e0] sm:$0xff]
      %v1064 = vld [vmem:[%s1 + $0x14e8] sm:$0xff]
      %v1065 = vld [vmem:[%s1 + $0x14f0] sm:$0xff]
      %v1066 = vld [vmem:[%s1 + $0x14f8] sm:$0xff]
      %v1067 = vld [vmem:[%s1 + $0x1500] sm:$0xff]
      %v1068 = vld [vmem:[%s1 + $0x1508] sm:$0xff]
      %v1069 = vld [vmem:[%s1 + $0x1510] sm:$0xff]
      %v1070 = vld [vmem:[%s1 + $0x1518] sm:$0xff]
      %v1071 = vld [vmem:[%s1 + $0x1520] sm:$0xff]
      %v1072 = vld [vmem:[%s1 + $0x1528] sm:$0xff]
      %v1073 = vld [vmem:[%s1 + $0x1530] sm:$0xff]
      %v1074 = vld [vmem:[%s1 + $0x1538] sm:$0xff]
      %v1075 = vld [vmem:[%s1 + $0x1540] sm:$0xff]
      %v1076 = vld [vmem:[%s1 + $0x1548] sm:$0xff]
      %v1077 = vld [vmem:[%s1 + $0x1550] sm:$0xff]
      %v1078 = vld [vmem:[%s1 + $0x1558] sm:$0xff]
      %v1079 = vld [vmem:[%s1 + $0x1560] sm:$0xff]
      %v1080 = vld [vmem:[%s1 + $0x1568] sm:$0xff]
      %v1081 = vld [vmem:[%s1 + $0x1570] sm:$0xff]
      %v1082 = vld [vmem:[%s1 + $0x1578] sm:$0xff]
      %v1083 = vld [vmem:[%s1 + $0x1580] sm:$0xff]
      %v1084 = vld [vmem:[%s1 + $0x1588] sm:$0xff]
      %v1085 = vld [vmem:[%s1 + $0x1590] sm:$0xff]
      %v1086 = vld [vmem:[%s1 + $0x1598] sm:$0xff]
      %v1087 = vld [vmem:[%s1 + $0x15a0] sm:$0xff]
      %v1088 = vld [vmem:[%s1 + $0x15a8] sm:$0xff]
      %v1089 = vld [vmem:[%s1 + $0x15b0] sm:$0xff]
      %v1090 = vld [vmem:[%s1 + $0x15b8] sm:$0xff]
      %v1091 = vld [vmem:[%s1 + $0x15c0] sm:$0xff]
      %v1092 = vld [vmem:[%s1 + $0x15c8] sm:$0xff]
      %v1093 = vld [vmem:[%s1 + $0x15d0] sm:$0xff]
      %v1094 = vld [vmem:[%s1 + $0x15d8] sm:$0xff]
      %v1095 = vld [vmem:[%s1 + $0x15e0] sm:$0xff]
      %v1096 = vld [vmem:[%s1 + $0x15e8] sm:$0xff]
      %v1097 = vld [vmem:[%s1 + $0x15f0] sm:$0xff]
      %v1098 = vld [vmem:[%s1 + $0x15f8] sm:$0xff]
      %v1099 = vld [vmem:[%s1 + $0x1600] sm:$0xff]
      %v1100 = vld [vmem:[%s1 + $0x1608] sm:$0xff]
      %v1101 = vld [vmem:[%s1 + $0x1610] sm:$0xff]
      %v1102 = vld [vmem:[%s1 + $0x1618] sm:$0xff]
      %v1103 = vld [vmem:[%s1 + $0x1620] sm:$0xff]
      %v1104 = vld [vmem:[%s1 + $0x1628] sm:$0xff]
      %v1105 = vld [vmem:[%s1 + $0x1630] sm:$0xff]
      %v1106 = vld [vmem:[%s1 + $0x1638] sm:$0xff]
      %v1107 = vld [vmem:[%s1 + $0x1640] sm:$0xff]
      %v1108 = vld [vmem:[%s1 + $0x1648] sm:$0xff]
      %v1109 = vld [vmem:[%s1 + $0x1650] sm:$0xff]
      %v1110 = vld [vmem:[%s1 + $0x1658] sm:$0xff]
      %v1111 = vld [vmem:[%s1 + $0x1660] sm:$0xff]
      %v1112 = vld [vmem:[%s1 + $0x1668] sm:$0xff]
      %v1113 = vld [vmem:[%s1 + $0x1670] sm:$0xff]
      %v1114 = vld [vmem:[%s1 + $0x1678] sm:$0xff]
      %v1115 = vld [vmem:[%s1 + $0x1680] sm:$0xff]
      %v1116 = vld [vmem:[%s1 + $0x1688] sm:$0xff]
      %v1117 = vld [vmem:[%s1 + $0x1690] sm:$0xff]
      %v1118 = vld [vmem:[%s1 + $0x1698] sm:$0xff]
      %v1119 = vld [vmem:[%s1 + $0x16a0] sm:$0xff]
      %v1120 = vld [vmem:[%s1 + $0x16a8] sm:$0xff]
      %v1121 = vld [vmem:[%s1 + $0x16b0] sm:$0xff]
      %v1122 = vld [vmem:[%s1 + $0x16b8] sm:$0xff]
      %v1123 = vld [vmem:[%s1 + $0x16c0] sm:$0xff]
      %v1124 = vld [vmem:[%s1 + $0x16c8] sm:$0xff]
      %v1125 = vld [vmem:[%s1 + $0x16d0] sm:$0xff]
      %v1126 = vld [vmem:[%s1 + $0x16d8] sm:$0xff]
      %v1127 = vld [vmem:[%s1 + $0x16e0] sm:$0xff]
      %v1128 = vld [vmem:[%s1 + $0x16e8] sm:$0xff]
      %v1129 = vld [vmem:[%s1 + $0x16f0] sm:$0xff]
      %v1130 = vld [vmem:[%s1 + $0x16f8] sm:$0xff]
      %v1131 = vld [vmem:[%s1 + $0x1700] sm:$0xff]
      %v1132 = vld [vmem:[%s1 + $0x1708] sm:$0xff]
      %v1133 = vld [vmem:[%s1 + $0x1710] sm:$0xff]
      %v1134 = vld [vmem:[%s1 + $0x1718] sm:$0xff]
      %v1135 = vld [vmem:[%s1 + $0x1720] sm:$0xff]
      %v1136 = vld [vmem:[%s1 + $0x1728] sm:$0xff]
      %v1137 = vld [vmem:[%s1 + $0x1730] sm:$0xff]
      %v1138 = vld [vmem:[%s1 + $0x1738] sm:$0xff]
      %v1139 = vld [vmem:[%s1 + $0x1740] sm:$0xff]
      %v1140 = vld [vmem:[%s1 + $0x1748] sm:$0xff]
      %v1141 = vld [vmem:[%s1 + $0x1750] sm:$0xff]
      %v1142 = vld [vmem:[%s1 + $0x1758] sm:$0xff]
      %v1143 = vld [vmem:[%s1 + $0x1760] sm:$0xff]
      %v1144 = vld [vmem:[%s1 + $0x1768] sm:$0xff]
      %v1145 = vld [vmem:[%s1 + $0x1770] sm:$0xff]
      %v1146 = vld [vmem:[%s1 + $0x1778] sm:$0xff]
      %v1147 = vld [vmem:[%s1 + $0x1780] sm:$0xff]
      %v1148 = vld [vmem:[%s1 + $0x1788] sm:$0xff]
      %v1149 = vld [vmem:[%s1 + $0x1790] sm:$0xff]
      %v1150 = vld [vmem:[%s1 + $0x1798] sm:$0xff]
      %v1151 = vld [vmem:[%s1 + $0x17a0] sm:$0xff]
      %v1152 = vld [vmem:[%s1 + $0x17a8] sm:$0xff]
      %v1153 = vld [vmem:[%s1 + $0x17b0] sm:$0xff]
      %v1154 = vld [vmem:[%s1 + $0x17b8] sm:$0xff]
      %v1155 = vld [vmem:[%s1 + $0x17c0] sm:$0xff]
      %v1156 = vld [vmem:[%s1 + $0x17c8] sm:$0xff]
      %v1157 = vld [vmem:[%s1 + $0x17d0] sm:$0xff]
      %v1158 = vld [vmem:[%s1 + $0x17d8] sm:$0xff]
      %v1159 = vld [vmem:[%s1 + $0x17e0] sm:$0xff]
      %v1160 = vld [vmem:[%s1 + $0x17e8] sm:$0xff]
      %v1161 = vld [vmem:[%s1 + $0x17f0] sm:$0xff]
      %v1162 = vld [vmem:[%s1 + $0x17f8] sm:$0xff]
      %v1163 = vld [vmem:[%s1 + $0x1800] sm:$0xff]
      %v1164 = vld [vmem:[%s1 + $0x1808] sm:$0xff]
      %v1165 = vld [vmem:[%s1 + $0x1810] sm:$0xff]
      %v1166 = vld [vmem:[%s1 + $0x1818] sm:$0xff]
      %v1167 = vld [vmem:[%s1 + $0x1820] sm:$0xff]
      %v1168 = vld [vmem:[%s1 + $0x1828] sm:$0xff]
      %v1169 = vld [vmem:[%s1 + $0x1830] sm:$0xff]
      %v1170 = vld [vmem:[%s1 + $0x1838] sm:$0xff]
      %v1171 = vld [vmem:[%s1 + $0x1840] sm:$0xff]
      %v1172 = vld [vmem:[%s1 + $0x1848] sm:$0xff]
      %v1173 = vld [vmem:[%s1 + $0x1850] sm:$0xff]
      %v1174 = vld [vmem:[%s1 + $0x1858] sm:$0xff]
      %v1175 = vld [vmem:[%s1 + $0x1860] sm:$0xff]
      %v1176 = vld [vmem:[%s1 + $0x1868] sm:$0xff]
      %v1177 = vld [vmem:[%s1 + $0x1870] sm:$0xff]
      %v1178 = vld [vmem:[%s1 + $0x1878] sm:$0xff]
      %v1179 = vld [vmem:[%s1 + $0x1880] sm:$0xff]
      %v1180 = vld [vmem:[%s1 + $0x1888] sm:$0xff]
      %v1181 = vld [vmem:[%s1 + $0x1890] sm:$0xff]
      %v1182 = vld [vmem:[%s1 + $0x1898] sm:$0xff]
      %v1183 = vld [vmem:[%s1 + $0x18a0] sm:$0xff]
      %v1184 = vld [vmem:[%s1 + $0x18a8] sm:$0xff]
      %v1185 = vld [vmem:[%s1 + $0x18b0] sm:$0xff]
      %v1186 = vld [vmem:[%s1 + $0x18b8] sm:$0xff]
      %v1187 = vld [vmem:[%s1 + $0x18c0] sm:$0xff]
      %v1188 = vld [vmem:[%s1 + $0x18c8] sm:$0xff]
      %v1189 = vld [vmem:[%s1 + $0x18d0] sm:$0xff]
      %v1190 = vld [vmem:[%s1 + $0x18d8] sm:$0xff]
      %v1191 = vld [vmem:[%s1 + $0x18e0] sm:$0xff]
      %v1192 = vld [vmem:[%s1 + $0x18e8] sm:$0xff]
      %v1193 = vld [vmem:[%s1 + $0x18f0] sm:$0xff]
      %v1194 = vld [vmem:[%s1 + $0x18f8] sm:$0xff]
      %v1195 = vld [vmem:[%s1 + $0x1900] sm:$0xff]
      %v1196 = vld [vmem:[%s1 + $0x1908] sm:$0xff]
      %v1197 = vld [vmem:[%s1 + $0x1910] sm:$0xff]
      %v1198 = vld [vmem:[%s1 + $0x1918] sm:$0xff]
      %v1199 = vld [vmem:[%s1 + $0x1920] sm:$0xff]
      %v1200 = vld [vmem:[%s1 + $0x1928] sm:$0xff]
      %v1201 = vld [vmem:[%s1 + $0x1930] sm:$0xff]
      %v1202 = vld [vmem:[%s1 + $0x1938] sm:$0xff]
      %v1203 = vld [vmem:[%s1 + $0x1940] sm:$0xff]
      %v1204 = vld [vmem:[%s1 + $0x1948] sm:$0xff]
      %v1205 = vld [vmem:[%s1 + $0x1950] sm:$0xff]
      %v1206 = vld [vmem:[%s1 + $0x1958] sm:$0xff]
      %v1207 = vld [vmem:[%s1 + $0x1960] sm:$0xff]
      %v1208 = vld [vmem:[%s1 + $0x1968] sm:$0xff]
      %v1209 = vld [vmem:[%s1 + $0x1970] sm:$0xff]
      %v1210 = vld [vmem:[%s1 + $0x1978] sm:$0xff]
      %v1211 = vld [vmem:[%s1 + $0x1980] sm:$0xff]
      %v1212 = vld [vmem:[%s1 + $0x1988] sm:$0xff]
      %v1213 = vld [vmem:[%s1 + $0x1990] sm:$0xff]
      %v1214 = vld [vmem:[%s1 + $0x1998] sm:$0xff]
      %v1215 = vld [vmem:[%s1 + $0x19a0] sm:$0xff]
      %v1216 = vld [vmem:[%s1 + $0x19a8] sm:$0xff]
      %v1217 = vld [vmem:[%s1 + $0x19b0] sm:$0xff]
      %v1218 = vld [vmem:[%s1 + $0x19b8] sm:$0xff]
      %v1219 = vld [vmem:[%s1 + $0x19c0] sm:$0xff]
      %v1220 = vld [vmem:[%s1 + $0x19c8] sm:$0xff]
      %v1221 = vld [vmem:[%s1 + $0x19d0] sm:$0xff]
      %v1222 = vld [vmem:[%s1 + $0x19d8] sm:$0xff]
      %v1223 = vld [vmem:[%s1 + $0x19e0] sm:$0xff]
      %v1224 = vld [vmem:[%s1 + $0x19e8] sm:$0xff]
      %v1225 = vld [vmem:[%s1 + $0x19f0] sm:$0xff]
      %v1226 = vld [vmem:[%s1 + $0x19f8] sm:$0xff]
      %v1227 = vld [vmem:[%s1 + $0x1a00] sm:$0xff]
      %v1228 = vld [vmem:[%s1 + $0x1a08] sm:$0xff]
      %v1229 = vld [vmem:[%s1 + $0x1a10] sm:$0xff]
      %v1230 = vld [vmem:[%s1 + $0x1a18] sm:$0xff]
      %v1231 = vld [vmem:[%s1 + $0x1a20] sm:$0xff]
      %v1232 = vld [vmem:[%s1 + $0x1a28] sm:$0xff]
      %v1233 = vld [vmem:[%s1 + $0x1a30] sm:$0xff]
      %v1234 = vld [vmem:[%s1 + $0x1a38] sm:$0xff]
      %v1235 = vld [vmem:[%s1 + $0x1a40] sm:$0xff]
      %v1236 = vld [vmem:[%s1 + $0x1a48] sm:$0xff]
      %v1237 = vld [vmem:[%s1 + $0x1a50] sm:$0xff]
      %v1238 = vld [vmem:[%s1 + $0x1a58] sm:$0xff]
      %v1239 = vld [vmem:[%s1 + $0x1a60] sm:$0xff]
      %v1240 = vld [vmem:[%s1 + $0x1a68] sm:$0xff]
      %v1241 = vld [vmem:[%s1 + $0x1a70] sm:$0xff]
      %v1242 = vld [vmem:[%s1 + $0x1a78] sm:$0xff]
      %v1243 = vld [vmem:[%s1 + $0x1a80] sm:$0xff]
      %v1244 = vld [vmem:[%s1 + $0x1a88] sm:$0xff]
      %v1245 = vld [vmem:[%s1 + $0x1a90] sm:$0xff]
      %v1246 = vld [vmem:[%s1 + $0x1a98] sm:$0xff]
      %v1247 = vld [vmem:[%s1 + $0x1aa0] sm:$0xff]
      %v1248 = vld [vmem:[%s1 + $0x1aa8] sm:$0xff]
      %v1249 = vld [vmem:[%s1 + $0x1ab0] sm:$0xff]
      %v1250 = vld [vmem:[%s1 + $0x1ab8] sm:$0xff]
      %v1251 = vld [vmem:[%s1 + $0x1ac0] sm:$0xff]
      %v1252 = vld [vmem:[%s1 + $0x1ac8] sm:$0xff]
      %v1253 = vld [vmem:[%s1 + $0x1ad0] sm:$0xff]
      %v1254 = vld [vmem:[%s1 + $0x1ad8] sm:$0xff]
      %v1255 = vld [vmem:[%s1 + $0x1ae0] sm:$0xff]
      %v1256 = vld [vmem:[%s1 + $0x1ae8] sm:$0xff]
      %v1257 = vld [vmem:[%s1 + $0x1af0] sm:$0xff]
      %v1258 = vld [vmem:[%s1 + $0x1af8] sm:$0xff]
      %v1259 = vld [vmem:[%s1 + $0x1b00] sm:$0xff]
      %v1260 = vld [vmem:[%s1 + $0x1b08] sm:$0xff]
      %v1261 = vld [vmem:[%s1 + $0x1b10] sm:$0xff]
      %v1262 = vld [vmem:[%s1 + $0x1b18] sm:$0xff]
      %v1263 = vld [vmem:[%s1 + $0x1b20] sm:$0xff]
      %v1264 = vld [vmem:[%s1 + $0x1b28] sm:$0xff]
      %v1265 = vld [vmem:[%s1 + $0x1b30] sm:$0xff]
      %v1266 = vld [vmem:[%s1 + $0x1b38] sm:$0xff]
      %v1267 = vld [vmem:[%s1 + $0x1b40] sm:$0xff]
      %v1268 = vld [vmem:[%s1 + $0x1b48] sm:$0xff]
      %v1269 = vld [vmem:[%s1 + $0x1b50] sm:$0xff]
      %v1270 = vld [vmem:[%s1 + $0x1b58] sm:$0xff]
      %v1271 = vld [vmem:[%s1 + $0x1b60] sm:$0xff]
      %v1272 = vld [vmem:[%s1 + $0x1b68] sm:$0xff]
      %v1273 = vld [vmem:[%s1 + $0x1b70] sm:$0xff]
      %v1274 = vld [vmem:[%s1 + $0x1b78] sm:$0xff]
      %v1275 = vld [vmem:[%s1 + $0x1b80] sm:$0xff]
      %v1276 = vld [vmem:[%s1 + $0x1b88] sm:$0xff]
      %v1277 = vld [vmem:[%s1 + $0x1b90] sm:$0xff]
      %v1278 = vld [vmem:[%s1 + $0x1b98] sm:$0xff]
      %v1279 = vld [vmem:[%s1 + $0x1ba0] sm:$0xff]
      %v1280 = vld [vmem:[%s1 + $0x1ba8] sm:$0xff]
      %v1281 = vld [vmem:[%s1 + $0x1bb0] sm:$0xff]
      %v1282 = vld [vmem:[%s1 + $0x1bb8] sm:$0xff]
      %v1283 = vld [vmem:[%s1 + $0x1bc0] sm:$0xff]
      %v1284 = vld [vmem:[%s1 + $0x1bc8] sm:$0xff]
      %v1285 = vld [vmem:[%s1 + $0x1bd0] sm:$0xff]
      %v1286 = vld [vmem:[%s1 + $0x1bd8] sm:$0xff]
      %v1287 = vld [vmem:[%s1 + $0x1be0] sm:$0xff]
      %v1288 = vld [vmem:[%s1 + $0x1be8] sm:$0xff]
      %v1289 = vld [vmem:[%s1 + $0x1bf0] sm:$0xff]
      %v1290 = vld [vmem:[%s1 + $0x1bf8] sm:$0xff]
      %v1291 = vld [vmem:[%s1 + $0x1c00] sm:$0xff]
      %v1292 = vld [vmem:[%s1 + $0x1c08] sm:$0xff]
      %v1293 = vld [vmem:[%s1 + $0x1c10] sm:$0xff]
      %v1294 = vld [vmem:[%s1 + $0x1c18] sm:$0xff]
      %v1295 = vld [vmem:[%s1 + $0x1c20] sm:$0xff]
      %v1296 = vld [vmem:[%s1 + $0x1c28] sm:$0xff]
      %v1297 = vld [vmem:[%s1 + $0x1c30] sm:$0xff]
      %v1298 = vld [vmem:[%s1 + $0x1c38] sm:$0xff]
      %v1299 = vld [vmem:[%s1 + $0x1c40] sm:$0xff]
      %v1300 = vld [vmem:[%s1 + $0x1c48] sm:$0xff]
      %v1301 = vld [vmem:[%s1 + $0x1c50] sm:$0xff]
      %v1302 = vld [vmem:[%s1 + $0x1c58] sm:$0xff]
      %v1303 = vld [vmem:[%s1 + $0x1c60] sm:$0xff]
      %v1304 = vld [vmem:[%s1 + $0x1c68] sm:$0xff]
      %v1305 = vld [vmem:[%s1 + $0x1c70] sm:$0xff]
      %v1306 = vld [vmem:[%s1 + $0x1c78] sm:$0xff]
      %v1307 = vld [vmem:[%s1 + $0x1c80] sm:$0xff]
      %v1308 = vld [vmem:[%s1 + $0x1c88] sm:$0xff]
      %v1309 = vld [vmem:[%s1 + $0x1c90] sm:$0xff]
      %v1310 = vld [vmem:[%s1 + $0x1c98] sm:$0xff]
      %v1311 = vld [vmem:[%s1 + $0x1ca0] sm:$0xff]
      %v1312 = vld [vmem:[%s1 + $0x1ca8] sm:$0xff]
      %v1313 = vld [vmem:[%s1 + $0x1cb0] sm:$0xff]
      %v1314 = vld [vmem:[%s1 + $0x1cb8] sm:$0xff]
      %v1315 = vld [vmem:[%s1 + $0x1cc0] sm:$0xff]
      %v1316 = vld [vmem:[%s1 + $0x1cc8] sm:$0xff]
      %v1317 = vld [vmem:[%s1 + $0x1cd0] sm:$0xff]
      %v1318 = vld [vmem:[%s1 + $0x1cd8] sm:$0xff]
      %v1319 = vld [vmem:[%s1 + $0x1ce0] sm:$0xff]
      %v1320 = vld [vmem:[%s1 + $0x1ce8] sm:$0xff]
      %v1321 = vld [vmem:[%s1 + $0x1cf0] sm:$0xff]
      %v1322 = vld [vmem:[%s1 + $0x1cf8] sm:$0xff]
      %v1323 = vld [vmem:[%s1 + $0x1d00] sm:$0xff]
      %v1324 = vld [vmem:[%s1 + $0x1d08] sm:$0xff]
      %v1325 = vld [vmem:[%s1 + $0x1d10] sm:$0xff]
      %v1326 = vld [vmem:[%s1 + $0x1d18] sm:$0xff]
      %v1327 = vld [vmem:[%s1 + $0x1d20] sm:$0xff]
      %v1328 = vld [vmem:[%s1 + $0x1d28] sm:$0xff]
      %v1329 = vld [vmem:[%s1 + $0x1d30] sm:$0xff]
      %v1330 = vld [vmem:[%s1 + $0x1d38] sm:$0xff]
      %v1331 = vld [vmem:[%s1 + $0x1d40] sm:$0xff]
      %v1332 = vld [vmem:[%s1 + $0x1d48] sm:$0xff]
      %v1333 = vld [vmem:[%s1 + $0x1d50] sm:$0xff]
      %v1334 = vld [vmem:[%s1 + $0x1d58] sm:$0xff]
      %v1335 = vld [vmem:[%s1 + $0x1d60] sm:$0xff]
      %v1336 = vld [vmem:[%s1 + $0x1d68] sm:$0xff]
      %v1337 = vld [vmem:[%s1 + $0x1d70] sm:$0xff]
      %v1338 = vld [vmem:[%s1 + $0x1d78] sm:$0xff]
      %v1339 = vld [vmem:[%s1 + $0x1d80] sm:$0xff]
      %v1340 = vld [vmem:[%s1 + $0x1d88] sm:$0xff]
      %v1341 = vld [vmem:[%s1 + $0x1d90] sm:$0xff]
      %v1342 = vld [vmem:[%s1 + $0x1d98] sm:$0xff]
      %v1343 = vld [vmem:[%s1 + $0x1da0] sm:$0xff]
      %v1344 = vld [vmem:[%s1 + $0x1da8] sm:$0xff]
      %v1345 = vld [vmem:[%s1 + $0x1db0] sm:$0xff]
      %v1346 = vld [vmem:[%s1 + $0x1db8] sm:$0xff]
      %v1347 = vld [vmem:[%s1 + $0x1dc0] sm:$0xff]
      %v1348 = vld [vmem:[%s1 + $0x1dc8] sm:$0xff]
      %v1349 = vld [vmem:[%s1 + $0x1dd0] sm:$0xff]
      %v1350 = vld [vmem:[%s1 + $0x1dd8] sm:$0xff]
      %v1351 = vld [vmem:[%s1 + $0x1de0] sm:$0xff]
      %v1352 = vld [vmem:[%s1 + $0x1de8] sm:$0xff]
      %v1353 = vld [vmem:[%s1 + $0x1df0] sm:$0xff]
      %v1354 = vld [vmem:[%s1 + $0x1df8] sm:$0xff]
      %v1355 = vld [vmem:[%s1 + $0x1e00] sm:$0xff]
      %v1356 = vld [vmem:[%s1 + $0x1e08] sm:$0xff]
      %v1357 = vld [vmem:[%s1 + $0x1e10] sm:$0xff]
      %v1358 = vld [vmem:[%s1 + $0x1e18] sm:$0xff]
      %v1359 = vld [vmem:[%s1 + $0x1e20] sm:$0xff]
      %v1360 = vld [vmem:[%s1 + $0x1e28] sm:$0xff]
      %v1361 = vld [vmem:[%s1 + $0x1e30] sm:$0xff]
      %v1362 = vld [vmem:[%s1 + $0x1e38] sm:$0xff]
      %v1363 = vld [vmem:[%s1 + $0x1e40] sm:$0xff]
      %v1364 = vld [vmem:[%s1 + $0x1e48] sm:$0xff]
      %v1365 = vld [vmem:[%s1 + $0x1e50] sm:$0xff]
      %v1366 = vld [vmem:[%s1 + $0x1e58] sm:$0xff]
      %v1367 = vld [vmem:[%s1 + $0x1e60] sm:$0xff]
      %v1368 = vld [vmem:[%s1 + $0x1e68] sm:$0xff]
      %v1369 = vld [vmem:[%s1 + $0x1e70] sm:$0xff]
      %v1370 = vld [vmem:[%s1 + $0x1e78] sm:$0xff]
      %v1371 = vld [vmem:[%s1 + $0x1e80] sm:$0xff]
      %v1372 = vld [vmem:[%s1 + $0x1e88] sm:$0xff]
      %v1373 = vld [vmem:[%s1 + $0x1e90] sm:$0xff]
      %v1374 = vld [vmem:[%s1 + $0x1e98] sm:$0xff]
      %v1375 = vld [vmem:[%s1 + $0x1ea0] sm:$0xff]
      %v1376 = vld [vmem:[%s1 + $0x1ea8] sm:$0xff]
      %v1377 = vld [vmem:[%s1 + $0x1eb0] sm:$0xff]
      %v1378 = vld [vmem:[%s1 + $0x1eb8] sm:$0xff]
      %v1379 = vld [vmem:[%s1 + $0x1ec0] sm:$0xff]
      %v1380 = vld [vmem:[%s1 + $0x1ec8] sm:$0xff]
      %v1381 = vld [vmem:[%s1 + $0x1ed0] sm:$0xff]
      %v1382 = vld [vmem:[%s1 + $0x1ed8] sm:$0xff]
      %v1383 = vld [vmem:[%s1 + $0x1ee0] sm:$0xff]
      %v1384 = vld [vmem:[%s1 + $0x1ee8] sm:$0xff]
      %v1385 = vld [vmem:[%s1 + $0x1ef0] sm:$0xff]
      %v1386 = vld [vmem:[%s1 + $0x1ef8] sm:$0xff]
      %v1387 = vld [vmem:[%s1 + $0x1f00] sm:$0xff]
      %v1388 = vld [vmem:[%s1 + $0x1f08] sm:$0xff]
      %v1389 = vld [vmem:[%s1 + $0x1f10] sm:$0xff]
      %v1390 = vld [vmem:[%s1 + $0x1f18] sm:$0xff]
      %v1391 = vld [vmem:[%s1 + $0x1f20] sm:$0xff]
      %v1392 = vld [vmem:[%s1 + $0x1f28] sm:$0xff]
      %v1393 = vld [vmem:[%s1 + $0x1f30] sm:$0xff]
      %v1394 = vld [vmem:[%s1 + $0x1f38] sm:$0xff]
      %v1395 = vld [vmem:[%s1 + $0x1f40] sm:$0xff]
      %v1396 = vld [vmem:[%s1 + $0x1f48] sm:$0xff]
      %v1397 = vld [vmem:[%s1 + $0x1f50] sm:$0xff]
      %v1398 = vld [vmem:[%s1 + $0x1f58] sm:$0xff]
      %v1399 = vld [vmem:[%s1 + $0x1f60] sm:$0xff]
      %v1400 = vld [vmem:[%s1 + $0x1f68] sm:$0xff]
      %v1401 = vld [vmem:[%s1 + $0x1f70] sm:$0xff]
      %v1402 = vld [vmem:[%s1 + $0x1f78] sm:$0xff]
      %v1403 = vld [vmem:[%s1 + $0x1f80] sm:$0xff]
      %v1404 = vld [vmem:[%s1 + $0x1f88] sm:$0xff]
      %v1405 = vld [vmem:[%s1 + $0x1f90] sm:$0xff]
      %v1406 = vld [vmem:[%s1 + $0x1f98] sm:$0xff]
      %v1407 = vld [vmem:[%s1 + $0x1fa0] sm:$0xff]
      %v1408 = vld [vmem:[%s1 + $0x1fa8] sm:$0xff]
      %v1409 = vld [vmem:[%s1 + $0x1fb0] sm:$0xff]
      %v1410 = vld [vmem:[%s1 + $0x1fb8] sm:$0xff]
      %v1411 = vld [vmem:[%s1 + $0x1fc0] sm:$0xff]
      %v1412 = vld [vmem:[%s1 + $0x1fc8] sm:$0xff]
      %v1413 = vld [vmem:[%s1 + $0x1fd0] sm:$0xff]
      %v1414 = vld [vmem:[%s1 + $0x1fd8] sm:$0xff]
      %v1415 = vld [vmem:[%s1 + $0x1fe0] sm:$0xff]
      %v1416 = vld [vmem:[%s1 + $0x1fe8] sm:$0xff]
      %v1417 = vld [vmem:[%s1 + $0x1ff0] sm:$0xff]
      %v1418 = vld [vmem:[%s1 + $0x1ff8] sm:$0xff]
      %v1419 = vld [vmem:[%s2] sm:$0xff]
      %v1421 = vperm.slane %v1419, 0
      %v1422 = vperm.slane %v1419, 1
      %v1423 = vperm.slane %v1419, 2
      %v1424 = vperm.slane %v1419, 3
      %v1425 = vperm.slane %v1419, 4
      %v1426 = vperm.slane %v1419, 5
      %v1427 = vperm.slane %v1419, 6
      %v1428 = vperm.slane %v1419, 7
      %1437 = vmatpush.msra.mxu0 %v515
      %1438 = vmatpush.msra.mxu0 %v507
      %1439 = vmatpush.msra.mxu0 %v499
      %1440 = vmatpush.msra.mxu0 %v491
      %1441 = vmatpush.msra.mxu0 %v483
      %1442 = vmatpush.msra.mxu0 %v475
      %1443 = vmatpush.msra.mxu0 %v467
      %1444 = vmatpush.msra.mxu0 %v459
      %1445 = vmatpush.msra.mxu0 %v451
      %1446 = vmatpush.msra.mxu0 %v443
      %1447 = vmatpush.msra.mxu0 %v435
      %1448 = vmatpush.msra.mxu0 %v427
      %1449 = vmatpush.msra.mxu0 %v419
      %1450 = vmatpush.msra.mxu0 %v411
      %1451 = vmatpush.msra.mxu0 %v403
      %1452 = vmatpush.msra.mxu0 %v395
      %1453 = vmatmul.f32.gmra.mxu0 %v387
      %v1454 = vpop.f32.mrf.mxu0
      %v1455 = vadd.f32 %v1421, %v1454
      %1456 = vdwg.mxu0
      %1457 = vmatpush.msra.mxu0 %v643
      %1458 = vmatpush.msra.mxu0 %v635
      %1459 = vmatpush.msra.mxu0 %v627
      %1460 = vmatpush.msra.mxu0 %v619
      %1461 = vmatpush.msra.mxu0 %v611
      %1462 = vmatpush.msra.mxu0 %v603
      %1463 = vmatpush.msra.mxu0 %v595
      %1464 = vmatpush.msra.mxu0 %v587
      %1465 = vmatpush.msra.mxu0 %v579
      %1466 = vmatpush.msra.mxu0 %v571
      %1467 = vmatpush.msra.mxu0 %v563
      %1468 = vmatpush.msra.mxu0 %v555
      %1469 = vmatpush.msra.mxu0 %v547
      %1470 = vmatpush.msra.mxu0 %v539
      %1471 = vmatpush.msra.mxu0 %v531
      %1472 = vmatpush.msra.mxu0 %v523
      %1473 = vmatmul.f32.gmra.mxu0 %v388
      %v1474 = vpop.f32.mrf.mxu0
      %v1475 = vadd.f32 %v1455, %v1474
      %1476 = vdwg.mxu0
      %1477 = vmatpush.msra.mxu0 %v771
      %1478 = vmatpush.msra.mxu0 %v763
      %1479 = vmatpush.msra.mxu0 %v755
      %1480 = vmatpush.msra.mxu0 %v747
      %1481 = vmatpush.msra.mxu0 %v739
      %1482 = vmatpush.msra.mxu0 %v731
      %1483 = vmatpush.msra.mxu0 %v723
      %1484 = vmatpush.msra.mxu0 %v715
      %1485 = vmatpush.msra.mxu0 %v707
      %1486 = vmatpush.msra.mxu0 %v699
      %1487 = vmatpush.msra.mxu0 %v691
      %1488 = vmatpush.msra.mxu0 %v683
      %1489 = vmatpush.msra.mxu0 %v675
      %1490 = vmatpush.msra.mxu0 %v667
      %1491 = vmatpush.msra.mxu0 %v659
      %1492 = vmatpush.msra.mxu0 %v651
      %1493 = vmatmul.f32.gmra.mxu0 %v389
      %v1494 = vpop.f32.mrf.mxu0
      %v1495 = vadd.f32 %v1475, %v1494
      %1496 = vdwg.mxu0
      %1497 = vmatpush.msra.mxu0 %v899
      %1498 = vmatpush.msra.mxu0 %v891
      %1499 = vmatpush.msra.mxu0 %v883
      %1500 = vmatpush.msra.mxu0 %v875
      %1501 = vmatpush.msra.mxu0 %v867
      %1502 = vmatpush.msra.mxu0 %v859
      %1503 = vmatpush.msra.mxu0 %v851
      %1504 = vmatpush.msra.mxu0 %v843
      %1505 = vmatpush.msra.mxu0 %v835
      %1506 = vmatpush.msra.mxu0 %v827
      %1507 = vmatpush.msra.mxu0 %v819
      %1508 = vmatpush.msra.mxu0 %v811
      %1509 = vmatpush.msra.mxu0 %v803
      %1510 = vmatpush.msra.mxu0 %v795
      %1511 = vmatpush.msra.mxu0 %v787
      %1512 = vmatpush.msra.mxu0 %v779
      %1513 = vmatmul.f32.gmra.mxu0 %v390
      %v1514 = vpop.f32.mrf.mxu0
      %v1515 = vadd.f32 %v1495, %v1514
      %1516 = vdwg.mxu0
      %1517 = vmatpush.msra.mxu0 %v1027
      %1518 = vmatpush.msra.mxu0 %v1019
      %1519 = vmatpush.msra.mxu0 %v1011
      %1520 = vmatpush.msra.mxu0 %v1003
      %1521 = vmatpush.msra.mxu0 %v995
      %1522 = vmatpush.msra.mxu0 %v987
      %1523 = vmatpush.msra.mxu0 %v979
      %1524 = vmatpush.msra.mxu0 %v971
      %1525 = vmatpush.msra.mxu0 %v963
      %1526 = vmatpush.msra.mxu0 %v955
      %1527 = vmatpush.msra.mxu0 %v947
      %1528 = vmatpush.msra.mxu0 %v939
      %1529 = vmatpush.msra.mxu0 %v931
      %1530 = vmatpush.msra.mxu0 %v923
      %1531 = vmatpush.msra.mxu0 %v915
      %1532 = vmatpush.msra.mxu0 %v907
      %1533 = vmatmul.f32.gmra.mxu0 %v391
      %v1534 = vpop.f32.mrf.mxu0
      %v1535 = vadd.f32 %v1515, %v1534
      %1536 = vdwg.mxu0
      %1537 = vmatpush.msra.mxu0 %v1155
      %1538 = vmatpush.msra.mxu0 %v1147
      %1539 = vmatpush.msra.mxu0 %v1139
      %1540 = vmatpush.msra.mxu0 %v1131
      %1541 = vmatpush.msra.mxu0 %v1123
      %1542 = vmatpush.msra.mxu0 %v1115
      %1543 = vmatpush.msra.mxu0 %v1107
      %1544 = vmatpush.msra.mxu0 %v1099
      %1545 = vmatpush.msra.mxu0 %v1091
      %1546 = vmatpush.msra.mxu0 %v1083
      %1547 = vmatpush.msra.mxu0 %v1075
      %1548 = vmatpush.msra.mxu0 %v1067
      %1549 = vmatpush.msra.mxu0 %v1059
      %1550 = vmatpush.msra.mxu0 %v1051
      %1551 = vmatpush.msra.mxu0 %v1043
      %1552 = vmatpush.msra.mxu0 %v1035
      %1553 = vmatmul.f32.gmra.mxu0 %v392
      %v1554 = vpop.f32.mrf.mxu0
      %v1555 = vadd.f32 %v1535, %v1554
      %1556 = vdwg.mxu0
      %1557 = vmatpush.msra.mxu0 %v1283
      %1558 = vmatpush.msra.mxu0 %v1275
      %1559 = vmatpush.msra.mxu0 %v1267
      %1560 = vmatpush.msra.mxu0 %v1259
      %1561 = vmatpush.msra.mxu0 %v1251
      %1562 = vmatpush.msra.mxu0 %v1243
      %1563 = vmatpush.msra.mxu0 %v1235
      %1564 = vmatpush.msra.mxu0 %v1227
      %1565 = vmatpush.msra.mxu0 %v1219
      %1566 = vmatpush.msra.mxu0 %v1211
      %1567 = vmatpush.msra.mxu0 %v1203
      %1568 = vmatpush.msra.mxu0 %v1195
      %1569 = vmatpush.msra.mxu0 %v1187
      %1570 = vmatpush.msra.mxu0 %v1179
      %1571 = vmatpush.msra.mxu0 %v1171
      %1572 = vmatpush.msra.mxu0 %v1163
      %1573 = vmatmul.f32.gmra.mxu0 %v393
      %v1574 = vpop.f32.mrf.mxu0
      %v1575 = vadd.f32 %v1555, %v1574
      %1576 = vdwg.mxu0
      %1577 = vmatpush.msra.mxu0 %v1411
      %1578 = vmatpush.msra.mxu0 %v1403
      %1579 = vmatpush.msra.mxu0 %v1395
      %1580 = vmatpush.msra.mxu0 %v1387
      %1581 = vmatpush.msra.mxu0 %v1379
      %1582 = vmatpush.msra.mxu0 %v1371
      %1583 = vmatpush.msra.mxu0 %v1363
      %1584 = vmatpush.msra.mxu0 %v1355
      %1585 = vmatpush.msra.mxu0 %v1347
      %1586 = vmatpush.msra.mxu0 %v1339
      %1587 = vmatpush.msra.mxu0 %v1331
      %1588 = vmatpush.msra.mxu0 %v1323
      %1589 = vmatpush.msra.mxu0 %v1315
      %1590 = vmatpush.msra.mxu0 %v1307
      %1591 = vmatpush.msra.mxu0 %v1299
      %1592 = vmatpush.msra.mxu0 %v1291
      %1593 = vmatmul.f32.gmra.mxu0 %v394
      %v1594 = vpop.f32.mrf.mxu0
      %v1595 = vadd.f32 %v1575, %v1594
      %1596 = vdwg.mxu0
      %1597 = vmatpush.msra.mxu0 %v516
      %1598 = vmatpush.msra.mxu0 %v508
      %1599 = vmatpush.msra.mxu0 %v500
      %1600 = vmatpush.msra.mxu0 %v492
      %1601 = vmatpush.msra.mxu0 %v484
      %1602 = vmatpush.msra.mxu0 %v476
      %1603 = vmatpush.msra.mxu0 %v468
      %1604 = vmatpush.msra.mxu0 %v460
      %1605 = vmatpush.msra.mxu0 %v452
      %1606 = vmatpush.msra.mxu0 %v444
      %1607 = vmatpush.msra.mxu0 %v436
      %1608 = vmatpush.msra.mxu0 %v428
      %1609 = vmatpush.msra.mxu0 %v420
      %1610 = vmatpush.msra.mxu0 %v412
      %1611 = vmatpush.msra.mxu0 %v404
      %1612 = vmatpush.msra.mxu0 %v396
      %1613 = vmatmul.f32.gmra.mxu0 %v387
      %v1614 = vpop.f32.mrf.mxu0
      %v1615 = vadd.f32 %v1422, %v1614
      %1616 = vdwg.mxu0
      %1617 = vmatpush.msra.mxu0 %v644
      %1618 = vmatpush.msra.mxu0 %v636
      %1619 = vmatpush.msra.mxu0 %v628
      %1620 = vmatpush.msra.mxu0 %v620
      %1621 = vmatpush.msra.mxu0 %v612
      %1622 = vmatpush.msra.mxu0 %v604
      %1623 = vmatpush.msra.mxu0 %v596
      %1624 = vmatpush.msra.mxu0 %v588
      %1625 = vmatpush.msra.mxu0 %v580
      %1626 = vmatpush.msra.mxu0 %v572
      %1627 = vmatpush.msra.mxu0 %v564
      %1628 = vmatpush.msra.mxu0 %v556
      %1629 = vmatpush.msra.mxu0 %v548
      %1630 = vmatpush.msra.mxu0 %v540
      %1631 = vmatpush.msra.mxu0 %v532
      %1632 = vmatpush.msra.mxu0 %v524
      %1633 = vmatmul.f32.gmra.mxu0 %v388
      %v1634 = vpop.f32.mrf.mxu0
      %v1635 = vadd.f32 %v1615, %v1634
      %1636 = vdwg.mxu0
      %1637 = vmatpush.msra.mxu0 %v772
      %1638 = vmatpush.msra.mxu0 %v764
      %1639 = vmatpush.msra.mxu0 %v756
      %1640 = vmatpush.msra.mxu0 %v748
      %1641 = vmatpush.msra.mxu0 %v740
      %1642 = vmatpush.msra.mxu0 %v732
      %1643 = vmatpush.msra.mxu0 %v724
      %1644 = vmatpush.msra.mxu0 %v716
      %1645 = vmatpush.msra.mxu0 %v708
      %1646 = vmatpush.msra.mxu0 %v700
      %1647 = vmatpush.msra.mxu0 %v692
      %1648 = vmatpush.msra.mxu0 %v684
      %1649 = vmatpush.msra.mxu0 %v676
      %1650 = vmatpush.msra.mxu0 %v668
      %1651 = vmatpush.msra.mxu0 %v660
      %1652 = vmatpush.msra.mxu0 %v652
      %1653 = vmatmul.f32.gmra.mxu0 %v389
      %v1654 = vpop.f32.mrf.mxu0
      %v1655 = vadd.f32 %v1635, %v1654
      %1656 = vdwg.mxu0
      %1657 = vmatpush.msra.mxu0 %v900
      %1658 = vmatpush.msra.mxu0 %v892
      %1659 = vmatpush.msra.mxu0 %v884
      %1660 = vmatpush.msra.mxu0 %v876
      %1661 = vmatpush.msra.mxu0 %v868
      %1662 = vmatpush.msra.mxu0 %v860
      %1663 = vmatpush.msra.mxu0 %v852
      %1664 = vmatpush.msra.mxu0 %v844
      %1665 = vmatpush.msra.mxu0 %v836
      %1666 = vmatpush.msra.mxu0 %v828
      %1667 = vmatpush.msra.mxu0 %v820
      %1668 = vmatpush.msra.mxu0 %v812
      %1669 = vmatpush.msra.mxu0 %v804
      %1670 = vmatpush.msra.mxu0 %v796
      %1671 = vmatpush.msra.mxu0 %v788
      %1672 = vmatpush.msra.mxu0 %v780
      %1673 = vmatmul.f32.gmra.mxu0 %v390
      %v1674 = vpop.f32.mrf.mxu0
      %v1675 = vadd.f32 %v1655, %v1674
      %1676 = vdwg.mxu0
      %1677 = vmatpush.msra.mxu0 %v1028
      %1678 = vmatpush.msra.mxu0 %v1020
      %1679 = vmatpush.msra.mxu0 %v1012
      %1680 = vmatpush.msra.mxu0 %v1004
      %1681 = vmatpush.msra.mxu0 %v996
      %1682 = vmatpush.msra.mxu0 %v988
      %1683 = vmatpush.msra.mxu0 %v980
      %1684 = vmatpush.msra.mxu0 %v972
      %1685 = vmatpush.msra.mxu0 %v964
      %1686 = vmatpush.msra.mxu0 %v956
      %1687 = vmatpush.msra.mxu0 %v948
      %1688 = vmatpush.msra.mxu0 %v940
      %1689 = vmatpush.msra.mxu0 %v932
      %1690 = vmatpush.msra.mxu0 %v924
      %1691 = vmatpush.msra.mxu0 %v916
      %1692 = vmatpush.msra.mxu0 %v908
      %1693 = vmatmul.f32.gmra.mxu0 %v391
      %v1694 = vpop.f32.mrf.mxu0
      %v1695 = vadd.f32 %v1675, %v1694
      %1696 = vdwg.mxu0
      %1697 = vmatpush.msra.mxu0 %v1156
      %1698 = vmatpush.msra.mxu0 %v1148
      %1699 = vmatpush.msra.mxu0 %v1140
      %1700 = vmatpush.msra.mxu0 %v1132
      %1701 = vmatpush.msra.mxu0 %v1124
      %1702 = vmatpush.msra.mxu0 %v1116
      %1703 = vmatpush.msra.mxu0 %v1108
      %1704 = vmatpush.msra.mxu0 %v1100
      %1705 = vmatpush.msra.mxu0 %v1092
      %1706 = vmatpush.msra.mxu0 %v1084
      %1707 = vmatpush.msra.mxu0 %v1076
      %1708 = vmatpush.msra.mxu0 %v1068
      %1709 = vmatpush.msra.mxu0 %v1060
      %1710 = vmatpush.msra.mxu0 %v1052
      %1711 = vmatpush.msra.mxu0 %v1044
      %1712 = vmatpush.msra.mxu0 %v1036
      %1713 = vmatmul.f32.gmra.mxu0 %v392
      %v1714 = vpop.f32.mrf.mxu0
      %v1715 = vadd.f32 %v1695, %v1714
      %1716 = vdwg.mxu0
      %1717 = vmatpush.msra.mxu0 %v1284
      %1718 = vmatpush.msra.mxu0 %v1276
      %1719 = vmatpush.msra.mxu0 %v1268
      %1720 = vmatpush.msra.mxu0 %v1260
      %1721 = vmatpush.msra.mxu0 %v1252
      %1722 = vmatpush.msra.mxu0 %v1244
      %1723 = vmatpush.msra.mxu0 %v1236
      %1724 = vmatpush.msra.mxu0 %v1228
      %1725 = vmatpush.msra.mxu0 %v1220
      %1726 = vmatpush.msra.mxu0 %v1212
      %1727 = vmatpush.msra.mxu0 %v1204
      %1728 = vmatpush.msra.mxu0 %v1196
      %1729 = vmatpush.msra.mxu0 %v1188
      %1730 = vmatpush.msra.mxu0 %v1180
      %1731 = vmatpush.msra.mxu0 %v1172
      %1732 = vmatpush.msra.mxu0 %v1164
      %1733 = vmatmul.f32.gmra.mxu0 %v393
      %v1734 = vpop.f32.mrf.mxu0
      %v1735 = vadd.f32 %v1715, %v1734
      %1736 = vdwg.mxu0
      %1737 = vmatpush.msra.mxu0 %v1412
      %1738 = vmatpush.msra.mxu0 %v1404
      %1739 = vmatpush.msra.mxu0 %v1396
      %1740 = vmatpush.msra.mxu0 %v1388
      %1741 = vmatpush.msra.mxu0 %v1380
      %1742 = vmatpush.msra.mxu0 %v1372
      %1743 = vmatpush.msra.mxu0 %v1364
      %1744 = vmatpush.msra.mxu0 %v1356
      %1745 = vmatpush.msra.mxu0 %v1348
      %1746 = vmatpush.msra.mxu0 %v1340
      %1747 = vmatpush.msra.mxu0 %v1332
      %1748 = vmatpush.msra.mxu0 %v1324
      %1749 = vmatpush.msra.mxu0 %v1316
      %1750 = vmatpush.msra.mxu0 %v1308
      %1751 = vmatpush.msra.mxu0 %v1300
      %1752 = vmatpush.msra.mxu0 %v1292
      %1753 = vmatmul.f32.gmra.mxu0 %v394
      %v1754 = vpop.f32.mrf.mxu0
      %v1755 = vadd.f32 %v1735, %v1754
      %1756 = vdwg.mxu0
      %1757 = vmatpush.msra.mxu0 %v517
      %1758 = vmatpush.msra.mxu0 %v509
      %1759 = vmatpush.msra.mxu0 %v501
      %1760 = vmatpush.msra.mxu0 %v493
      %1761 = vmatpush.msra.mxu0 %v485
      %1762 = vmatpush.msra.mxu0 %v477
      %1763 = vmatpush.msra.mxu0 %v469
      %1764 = vmatpush.msra.mxu0 %v461
      %1765 = vmatpush.msra.mxu0 %v453
      %1766 = vmatpush.msra.mxu0 %v445
      %1767 = vmatpush.msra.mxu0 %v437
      %1768 = vmatpush.msra.mxu0 %v429
      %1769 = vmatpush.msra.mxu0 %v421
      %1770 = vmatpush.msra.mxu0 %v413
      %1771 = vmatpush.msra.mxu0 %v405
      %1772 = vmatpush.msra.mxu0 %v397
      %1773 = vmatmul.f32.gmra.mxu0 %v387
      %v1774 = vpop.f32.mrf.mxu0
      %v1775 = vadd.f32 %v1423, %v1774
      %1776 = vdwg.mxu0
      %1777 = vmatpush.msra.mxu0 %v645
      %1778 = vmatpush.msra.mxu0 %v637
      %1779 = vmatpush.msra.mxu0 %v629
      %1780 = vmatpush.msra.mxu0 %v621
      %1781 = vmatpush.msra.mxu0 %v613
      %1782 = vmatpush.msra.mxu0 %v605
      %1783 = vmatpush.msra.mxu0 %v597
      %1784 = vmatpush.msra.mxu0 %v589
      %1785 = vmatpush.msra.mxu0 %v581
      %1786 = vmatpush.msra.mxu0 %v573
      %1787 = vmatpush.msra.mxu0 %v565
      %1788 = vmatpush.msra.mxu0 %v557
      %1789 = vmatpush.msra.mxu0 %v549
      %1790 = vmatpush.msra.mxu0 %v541
      %1791 = vmatpush.msra.mxu0 %v533
      %1792 = vmatpush.msra.mxu0 %v525
      %1793 = vmatmul.f32.gmra.mxu0 %v388
      %v1794 = vpop.f32.mrf.mxu0
      %v1795 = vadd.f32 %v1775, %v1794
      %1796 = vdwg.mxu0
      %1797 = vmatpush.msra.mxu0 %v773
      %1798 = vmatpush.msra.mxu0 %v765
      %1799 = vmatpush.msra.mxu0 %v757
      %1800 = vmatpush.msra.mxu0 %v749
      %1801 = vmatpush.msra.mxu0 %v741
      %1802 = vmatpush.msra.mxu0 %v733
      %1803 = vmatpush.msra.mxu0 %v725
      %1804 = vmatpush.msra.mxu0 %v717
      %1805 = vmatpush.msra.mxu0 %v709
      %1806 = vmatpush.msra.mxu0 %v701
      %1807 = vmatpush.msra.mxu0 %v693
      %1808 = vmatpush.msra.mxu0 %v685
      %1809 = vmatpush.msra.mxu0 %v677
      %1810 = vmatpush.msra.mxu0 %v669
      %1811 = vmatpush.msra.mxu0 %v661
      %1812 = vmatpush.msra.mxu0 %v653
      %1813 = vmatmul.f32.gmra.mxu0 %v389
      %v1814 = vpop.f32.mrf.mxu0
      %v1815 = vadd.f32 %v1795, %v1814
      %1816 = vdwg.mxu0
      %1817 = vmatpush.msra.mxu0 %v901
      %1818 = vmatpush.msra.mxu0 %v893
      %1819 = vmatpush.msra.mxu0 %v885
      %1820 = vmatpush.msra.mxu0 %v877
      %1821 = vmatpush.msra.mxu0 %v869
      %1822 = vmatpush.msra.mxu0 %v861
      %1823 = vmatpush.msra.mxu0 %v853
      %1824 = vmatpush.msra.mxu0 %v845
      %1825 = vmatpush.msra.mxu0 %v837
      %1826 = vmatpush.msra.mxu0 %v829
      %1827 = vmatpush.msra.mxu0 %v821
      %1828 = vmatpush.msra.mxu0 %v813
      %1829 = vmatpush.msra.mxu0 %v805
      %1830 = vmatpush.msra.mxu0 %v797
      %1831 = vmatpush.msra.mxu0 %v789
      %1832 = vmatpush.msra.mxu0 %v781
      %1833 = vmatmul.f32.gmra.mxu0 %v390
      %v1834 = vpop.f32.mrf.mxu0
      %v1835 = vadd.f32 %v1815, %v1834
      %1836 = vdwg.mxu0
      %1837 = vmatpush.msra.mxu0 %v1029
      %1838 = vmatpush.msra.mxu0 %v1021
      %1839 = vmatpush.msra.mxu0 %v1013
      %1840 = vmatpush.msra.mxu0 %v1005
      %1841 = vmatpush.msra.mxu0 %v997
      %1842 = vmatpush.msra.mxu0 %v989
      %1843 = vmatpush.msra.mxu0 %v981
      %1844 = vmatpush.msra.mxu0 %v973
      %1845 = vmatpush.msra.mxu0 %v965
      %1846 = vmatpush.msra.mxu0 %v957
      %1847 = vmatpush.msra.mxu0 %v949
      %1848 = vmatpush.msra.mxu0 %v941
      %1849 = vmatpush.msra.mxu0 %v933
      %1850 = vmatpush.msra.mxu0 %v925
      %1851 = vmatpush.msra.mxu0 %v917
      %1852 = vmatpush.msra.mxu0 %v909
      %1853 = vmatmul.f32.gmra.mxu0 %v391
      %v1854 = vpop.f32.mrf.mxu0
      %v1855 = vadd.f32 %v1835, %v1854
      %1856 = vdwg.mxu0
      %1857 = vmatpush.msra.mxu0 %v1157
      %1858 = vmatpush.msra.mxu0 %v1149
      %1859 = vmatpush.msra.mxu0 %v1141
      %1860 = vmatpush.msra.mxu0 %v1133
      %1861 = vmatpush.msra.mxu0 %v1125
      %1862 = vmatpush.msra.mxu0 %v1117
      %1863 = vmatpush.msra.mxu0 %v1109
      %1864 = vmatpush.msra.mxu0 %v1101
      %1865 = vmatpush.msra.mxu0 %v1093
      %1866 = vmatpush.msra.mxu0 %v1085
      %1867 = vmatpush.msra.mxu0 %v1077
      %1868 = vmatpush.msra.mxu0 %v1069
      %1869 = vmatpush.msra.mxu0 %v1061
      %1870 = vmatpush.msra.mxu0 %v1053
      %1871 = vmatpush.msra.mxu0 %v1045
      %1872 = vmatpush.msra.mxu0 %v1037
      %1873 = vmatmul.f32.gmra.mxu0 %v392
      %v1874 = vpop.f32.mrf.mxu0
      %v1875 = vadd.f32 %v1855, %v1874
      %1876 = vdwg.mxu0
      %1877 = vmatpush.msra.mxu0 %v1285
      %1878 = vmatpush.msra.mxu0 %v1277
      %1879 = vmatpush.msra.mxu0 %v1269
      %1880 = vmatpush.msra.mxu0 %v1261
      %1881 = vmatpush.msra.mxu0 %v1253
      %1882 = vmatpush.msra.mxu0 %v1245
      %1883 = vmatpush.msra.mxu0 %v1237
      %1884 = vmatpush.msra.mxu0 %v1229
      %1885 = vmatpush.msra.mxu0 %v1221
      %1886 = vmatpush.msra.mxu0 %v1213
      %1887 = vmatpush.msra.mxu0 %v1205
      %1888 = vmatpush.msra.mxu0 %v1197
      %1889 = vmatpush.msra.mxu0 %v1189
      %1890 = vmatpush.msra.mxu0 %v1181
      %1891 = vmatpush.msra.mxu0 %v1173
      %1892 = vmatpush.msra.mxu0 %v1165
      %1893 = vmatmul.f32.gmra.mxu0 %v393
      %v1894 = vpop.f32.mrf.mxu0
      %v1895 = vadd.f32 %v1875, %v1894
      %1896 = vdwg.mxu0
      %1897 = vmatpush.msra.mxu0 %v1413
      %1898 = vmatpush.msra.mxu0 %v1405
      %1899 = vmatpush.msra.mxu0 %v1397
      %1900 = vmatpush.msra.mxu0 %v1389
      %1901 = vmatpush.msra.mxu0 %v1381
      %1902 = vmatpush.msra.mxu0 %v1373
      %1903 = vmatpush.msra.mxu0 %v1365
      %1904 = vmatpush.msra.mxu0 %v1357
      %1905 = vmatpush.msra.mxu0 %v1349
      %1906 = vmatpush.msra.mxu0 %v1341
      %1907 = vmatpush.msra.mxu0 %v1333
      %1908 = vmatpush.msra.mxu0 %v1325
      %1909 = vmatpush.msra.mxu0 %v1317
      %1910 = vmatpush.msra.mxu0 %v1309
      %1911 = vmatpush.msra.mxu0 %v1301
      %1912 = vmatpush.msra.mxu0 %v1293
      %1913 = vmatmul.f32.gmra.mxu0 %v394
      %v1914 = vpop.f32.mrf.mxu0
      %v1915 = vadd.f32 %v1895, %v1914
      %1916 = vdwg.mxu0
      %1917 = vmatpush.msra.mxu0 %v518
      %1918 = vmatpush.msra.mxu0 %v510
      %1919 = vmatpush.msra.mxu0 %v502
      %1920 = vmatpush.msra.mxu0 %v494
      %1921 = vmatpush.msra.mxu0 %v486
      %1922 = vmatpush.msra.mxu0 %v478
      %1923 = vmatpush.msra.mxu0 %v470
      %1924 = vmatpush.msra.mxu0 %v462
      %1925 = vmatpush.msra.mxu0 %v454
      %1926 = vmatpush.msra.mxu0 %v446
      %1927 = vmatpush.msra.mxu0 %v438
      %1928 = vmatpush.msra.mxu0 %v430
      %1929 = vmatpush.msra.mxu0 %v422
      %1930 = vmatpush.msra.mxu0 %v414
      %1931 = vmatpush.msra.mxu0 %v406
      %1932 = vmatpush.msra.mxu0 %v398
      %1933 = vmatmul.f32.gmra.mxu0 %v387
      %v1934 = vpop.f32.mrf.mxu0
      %v1935 = vadd.f32 %v1424, %v1934
      %1936 = vdwg.mxu0
      %1937 = vmatpush.msra.mxu0 %v646
      %1938 = vmatpush.msra.mxu0 %v638
      %1939 = vmatpush.msra.mxu0 %v630
      %1940 = vmatpush.msra.mxu0 %v622
      %1941 = vmatpush.msra.mxu0 %v614
      %1942 = vmatpush.msra.mxu0 %v606
      %1943 = vmatpush.msra.mxu0 %v598
      %1944 = vmatpush.msra.mxu0 %v590
      %1945 = vmatpush.msra.mxu0 %v582
      %1946 = vmatpush.msra.mxu0 %v574
      %1947 = vmatpush.msra.mxu0 %v566
      %1948 = vmatpush.msra.mxu0 %v558
      %1949 = vmatpush.msra.mxu0 %v550
      %1950 = vmatpush.msra.mxu0 %v542
      %1951 = vmatpush.msra.mxu0 %v534
      %1952 = vmatpush.msra.mxu0 %v526
      %1953 = vmatmul.f32.gmra.mxu0 %v388
      %v1954 = vpop.f32.mrf.mxu0
      %v1955 = vadd.f32 %v1935, %v1954
      %1956 = vdwg.mxu0
      %1957 = vmatpush.msra.mxu0 %v774
      %1958 = vmatpush.msra.mxu0 %v766
      %1959 = vmatpush.msra.mxu0 %v758
      %1960 = vmatpush.msra.mxu0 %v750
      %1961 = vmatpush.msra.mxu0 %v742
      %1962 = vmatpush.msra.mxu0 %v734
      %1963 = vmatpush.msra.mxu0 %v726
      %1964 = vmatpush.msra.mxu0 %v718
      %1965 = vmatpush.msra.mxu0 %v710
      %1966 = vmatpush.msra.mxu0 %v702
      %1967 = vmatpush.msra.mxu0 %v694
      %1968 = vmatpush.msra.mxu0 %v686
      %1969 = vmatpush.msra.mxu0 %v678
      %1970 = vmatpush.msra.mxu0 %v670
      %1971 = vmatpush.msra.mxu0 %v662
      %1972 = vmatpush.msra.mxu0 %v654
      %1973 = vmatmul.f32.gmra.mxu0 %v389
      %v1974 = vpop.f32.mrf.mxu0
      %v1975 = vadd.f32 %v1955, %v1974
      %1976 = vdwg.mxu0
      %1977 = vmatpush.msra.mxu0 %v902
      %1978 = vmatpush.msra.mxu0 %v894
      %1979 = vmatpush.msra.mxu0 %v886
      %1980 = vmatpush.msra.mxu0 %v878
      %1981 = vmatpush.msra.mxu0 %v870
      %1982 = vmatpush.msra.mxu0 %v862
      %1983 = vmatpush.msra.mxu0 %v854
      %1984 = vmatpush.msra.mxu0 %v846
      %1985 = vmatpush.msra.mxu0 %v838
      %1986 = vmatpush.msra.mxu0 %v830
      %1987 = vmatpush.msra.mxu0 %v822
      %1988 = vmatpush.msra.mxu0 %v814
      %1989 = vmatpush.msra.mxu0 %v806
      %1990 = vmatpush.msra.mxu0 %v798
      %1991 = vmatpush.msra.mxu0 %v790
      %1992 = vmatpush.msra.mxu0 %v782
      %1993 = vmatmul.f32.gmra.mxu0 %v390
      %v1994 = vpop.f32.mrf.mxu0
      %v1995 = vadd.f32 %v1975, %v1994
      %1996 = vdwg.mxu0
      %1997 = vmatpush.msra.mxu0 %v1030
      %1998 = vmatpush.msra.mxu0 %v1022
      %1999 = vmatpush.msra.mxu0 %v1014
      %2000 = vmatpush.msra.mxu0 %v1006
      %2001 = vmatpush.msra.mxu0 %v998
      %2002 = vmatpush.msra.mxu0 %v990
      %2003 = vmatpush.msra.mxu0 %v982
      %2004 = vmatpush.msra.mxu0 %v974
      %2005 = vmatpush.msra.mxu0 %v966
      %2006 = vmatpush.msra.mxu0 %v958
      %2007 = vmatpush.msra.mxu0 %v950
      %2008 = vmatpush.msra.mxu0 %v942
      %2009 = vmatpush.msra.mxu0 %v934
      %2010 = vmatpush.msra.mxu0 %v926
      %2011 = vmatpush.msra.mxu0 %v918
      %2012 = vmatpush.msra.mxu0 %v910
      %2013 = vmatmul.f32.gmra.mxu0 %v391
      %v2014 = vpop.f32.mrf.mxu0
      %v2015 = vadd.f32 %v1995, %v2014
      %2016 = vdwg.mxu0
      %2017 = vmatpush.msra.mxu0 %v1158
      %2018 = vmatpush.msra.mxu0 %v1150
      %2019 = vmatpush.msra.mxu0 %v1142
      %2020 = vmatpush.msra.mxu0 %v1134
      %2021 = vmatpush.msra.mxu0 %v1126
      %2022 = vmatpush.msra.mxu0 %v1118
      %2023 = vmatpush.msra.mxu0 %v1110
      %2024 = vmatpush.msra.mxu0 %v1102
      %2025 = vmatpush.msra.mxu0 %v1094
      %2026 = vmatpush.msra.mxu0 %v1086
      %2027 = vmatpush.msra.mxu0 %v1078
      %2028 = vmatpush.msra.mxu0 %v1070
      %2029 = vmatpush.msra.mxu0 %v1062
      %2030 = vmatpush.msra.mxu0 %v1054
      %2031 = vmatpush.msra.mxu0 %v1046
      %2032 = vmatpush.msra.mxu0 %v1038
      %2033 = vmatmul.f32.gmra.mxu0 %v392
      %v2034 = vpop.f32.mrf.mxu0
      %v2035 = vadd.f32 %v2015, %v2034
      %2036 = vdwg.mxu0
      %2037 = vmatpush.msra.mxu0 %v1286
      %2038 = vmatpush.msra.mxu0 %v1278
      %2039 = vmatpush.msra.mxu0 %v1270
      %2040 = vmatpush.msra.mxu0 %v1262
      %2041 = vmatpush.msra.mxu0 %v1254
      %2042 = vmatpush.msra.mxu0 %v1246
      %2043 = vmatpush.msra.mxu0 %v1238
      %2044 = vmatpush.msra.mxu0 %v1230
      %2045 = vmatpush.msra.mxu0 %v1222
      %2046 = vmatpush.msra.mxu0 %v1214
      %2047 = vmatpush.msra.mxu0 %v1206
      %2048 = vmatpush.msra.mxu0 %v1198
      %2049 = vmatpush.msra.mxu0 %v1190
      %2050 = vmatpush.msra.mxu0 %v1182
      %2051 = vmatpush.msra.mxu0 %v1174
      %2052 = vmatpush.msra.mxu0 %v1166
      %2053 = vmatmul.f32.gmra.mxu0 %v393
      %v2054 = vpop.f32.mrf.mxu0
      %v2055 = vadd.f32 %v2035, %v2054
      %2056 = vdwg.mxu0
      %2057 = vmatpush.msra.mxu0 %v1414
      %2058 = vmatpush.msra.mxu0 %v1406
      %2059 = vmatpush.msra.mxu0 %v1398
      %2060 = vmatpush.msra.mxu0 %v1390
      %2061 = vmatpush.msra.mxu0 %v1382
      %2062 = vmatpush.msra.mxu0 %v1374
      %2063 = vmatpush.msra.mxu0 %v1366
      %2064 = vmatpush.msra.mxu0 %v1358
      %2065 = vmatpush.msra.mxu0 %v1350
      %2066 = vmatpush.msra.mxu0 %v1342
      %2067 = vmatpush.msra.mxu0 %v1334
      %2068 = vmatpush.msra.mxu0 %v1326
      %2069 = vmatpush.msra.mxu0 %v1318
      %2070 = vmatpush.msra.mxu0 %v1310
      %2071 = vmatpush.msra.mxu0 %v1302
      %2072 = vmatpush.msra.mxu0 %v1294
      %2073 = vmatmul.f32.gmra.mxu0 %v394
      %v2074 = vpop.f32.mrf.mxu0
      %v2075 = vadd.f32 %v2055, %v2074
      %2076 = vdwg.mxu0
      %2077 = vmatpush.msra.mxu0 %v519
      %2078 = vmatpush.msra.mxu0 %v511
      %2079 = vmatpush.msra.mxu0 %v503
      %2080 = vmatpush.msra.mxu0 %v495
      %2081 = vmatpush.msra.mxu0 %v487
      %2082 = vmatpush.msra.mxu0 %v479
      %2083 = vmatpush.msra.mxu0 %v471
      %2084 = vmatpush.msra.mxu0 %v463
      %2085 = vmatpush.msra.mxu0 %v455
      %2086 = vmatpush.msra.mxu0 %v447
      %2087 = vmatpush.msra.mxu0 %v439
      %2088 = vmatpush.msra.mxu0 %v431
      %2089 = vmatpush.msra.mxu0 %v423
      %2090 = vmatpush.msra.mxu0 %v415
      %2091 = vmatpush.msra.mxu0 %v407
      %2092 = vmatpush.msra.mxu0 %v399
      %2093 = vmatmul.f32.gmra.mxu0 %v387
      %v2094 = vpop.f32.mrf.mxu0
      %v2095 = vadd.f32 %v1425, %v2094
      %2096 = vdwg.mxu0
      %2097 = vmatpush.msra.mxu0 %v647
      %2098 = vmatpush.msra.mxu0 %v639
      %2099 = vmatpush.msra.mxu0 %v631
      %2100 = vmatpush.msra.mxu0 %v623
      %2101 = vmatpush.msra.mxu0 %v615
      %2102 = vmatpush.msra.mxu0 %v607
      %2103 = vmatpush.msra.mxu0 %v599
      %2104 = vmatpush.msra.mxu0 %v591
      %2105 = vmatpush.msra.mxu0 %v583
      %2106 = vmatpush.msra.mxu0 %v575
      %2107 = vmatpush.msra.mxu0 %v567
      %2108 = vmatpush.msra.mxu0 %v559
      %2109 = vmatpush.msra.mxu0 %v551
      %2110 = vmatpush.msra.mxu0 %v543
      %2111 = vmatpush.msra.mxu0 %v535
      %2112 = vmatpush.msra.mxu0 %v527
      %2113 = vmatmul.f32.gmra.mxu0 %v388
      %v2114 = vpop.f32.mrf.mxu0
      %v2115 = vadd.f32 %v2095, %v2114
      %2116 = vdwg.mxu0
      %2117 = vmatpush.msra.mxu0 %v775
      %2118 = vmatpush.msra.mxu0 %v767
      %2119 = vmatpush.msra.mxu0 %v759
      %2120 = vmatpush.msra.mxu0 %v751
      %2121 = vmatpush.msra.mxu0 %v743
      %2122 = vmatpush.msra.mxu0 %v735
      %2123 = vmatpush.msra.mxu0 %v727
      %2124 = vmatpush.msra.mxu0 %v719
      %2125 = vmatpush.msra.mxu0 %v711
      %2126 = vmatpush.msra.mxu0 %v703
      %2127 = vmatpush.msra.mxu0 %v695
      %2128 = vmatpush.msra.mxu0 %v687
      %2129 = vmatpush.msra.mxu0 %v679
      %2130 = vmatpush.msra.mxu0 %v671
      %2131 = vmatpush.msra.mxu0 %v663
      %2132 = vmatpush.msra.mxu0 %v655
      %2133 = vmatmul.f32.gmra.mxu0 %v389
      %v2134 = vpop.f32.mrf.mxu0
      %v2135 = vadd.f32 %v2115, %v2134
      %2136 = vdwg.mxu0
      %2137 = vmatpush.msra.mxu0 %v903
      %2138 = vmatpush.msra.mxu0 %v895
      %2139 = vmatpush.msra.mxu0 %v887
      %2140 = vmatpush.msra.mxu0 %v879
      %2141 = vmatpush.msra.mxu0 %v871
      %2142 = vmatpush.msra.mxu0 %v863
      %2143 = vmatpush.msra.mxu0 %v855
      %2144 = vmatpush.msra.mxu0 %v847
      %2145 = vmatpush.msra.mxu0 %v839
      %2146 = vmatpush.msra.mxu0 %v831
      %2147 = vmatpush.msra.mxu0 %v823
      %2148 = vmatpush.msra.mxu0 %v815
      %2149 = vmatpush.msra.mxu0 %v807
      %2150 = vmatpush.msra.mxu0 %v799
      %2151 = vmatpush.msra.mxu0 %v791
      %2152 = vmatpush.msra.mxu0 %v783
      %2153 = vmatmul.f32.gmra.mxu0 %v390
      %v2154 = vpop.f32.mrf.mxu0
      %v2155 = vadd.f32 %v2135, %v2154
      %2156 = vdwg.mxu0
      %2157 = vmatpush.msra.mxu0 %v1031
      %2158 = vmatpush.msra.mxu0 %v1023
      %2159 = vmatpush.msra.mxu0 %v1015
      %2160 = vmatpush.msra.mxu0 %v1007
      %2161 = vmatpush.msra.mxu0 %v999
      %2162 = vmatpush.msra.mxu0 %v991
      %2163 = vmatpush.msra.mxu0 %v983
      %2164 = vmatpush.msra.mxu0 %v975
      %2165 = vmatpush.msra.mxu0 %v967
      %2166 = vmatpush.msra.mxu0 %v959
      %2167 = vmatpush.msra.mxu0 %v951
      %2168 = vmatpush.msra.mxu0 %v943
      %2169 = vmatpush.msra.mxu0 %v935
      %2170 = vmatpush.msra.mxu0 %v927
      %2171 = vmatpush.msra.mxu0 %v919
      %2172 = vmatpush.msra.mxu0 %v911
      %2173 = vmatmul.f32.gmra.mxu0 %v391
      %v2174 = vpop.f32.mrf.mxu0
      %v2175 = vadd.f32 %v2155, %v2174
      %2176 = vdwg.mxu0
      %2177 = vmatpush.msra.mxu0 %v1159
      %2178 = vmatpush.msra.mxu0 %v1151
      %2179 = vmatpush.msra.mxu0 %v1143
      %2180 = vmatpush.msra.mxu0 %v1135
      %2181 = vmatpush.msra.mxu0 %v1127
      %2182 = vmatpush.msra.mxu0 %v1119
      %2183 = vmatpush.msra.mxu0 %v1111
      %2184 = vmatpush.msra.mxu0 %v1103
      %2185 = vmatpush.msra.mxu0 %v1095
      %2186 = vmatpush.msra.mxu0 %v1087
      %2187 = vmatpush.msra.mxu0 %v1079
      %2188 = vmatpush.msra.mxu0 %v1071
      %2189 = vmatpush.msra.mxu0 %v1063
      %2190 = vmatpush.msra.mxu0 %v1055
      %2191 = vmatpush.msra.mxu0 %v1047
      %2192 = vmatpush.msra.mxu0 %v1039
      %2193 = vmatmul.f32.gmra.mxu0 %v392
      %v2194 = vpop.f32.mrf.mxu0
      %v2195 = vadd.f32 %v2175, %v2194
      %2196 = vdwg.mxu0
      %2197 = vmatpush.msra.mxu0 %v1287
      %2198 = vmatpush.msra.mxu0 %v1279
      %2199 = vmatpush.msra.mxu0 %v1271
      %2200 = vmatpush.msra.mxu0 %v1263
      %2201 = vmatpush.msra.mxu0 %v1255
      %2202 = vmatpush.msra.mxu0 %v1247
      %2203 = vmatpush.msra.mxu0 %v1239
      %2204 = vmatpush.msra.mxu0 %v1231
      %2205 = vmatpush.msra.mxu0 %v1223
      %2206 = vmatpush.msra.mxu0 %v1215
      %2207 = vmatpush.msra.mxu0 %v1207
      %2208 = vmatpush.msra.mxu0 %v1199
      %2209 = vmatpush.msra.mxu0 %v1191
      %2210 = vmatpush.msra.mxu0 %v1183
      %2211 = vmatpush.msra.mxu0 %v1175
      %2212 = vmatpush.msra.mxu0 %v1167
      %2213 = vmatmul.f32.gmra.mxu0 %v393
      %v2214 = vpop.f32.mrf.mxu0
      %v2215 = vadd.f32 %v2195, %v2214
      %2216 = vdwg.mxu0
      %2217 = vmatpush.msra.mxu0 %v1415
      %2218 = vmatpush.msra.mxu0 %v1407
      %2219 = vmatpush.msra.mxu0 %v1399
      %2220 = vmatpush.msra.mxu0 %v1391
      %2221 = vmatpush.msra.mxu0 %v1383
      %2222 = vmatpush.msra.mxu0 %v1375
      %2223 = vmatpush.msra.mxu0 %v1367
      %2224 = vmatpush.msra.mxu0 %v1359
      %2225 = vmatpush.msra.mxu0 %v1351
      %2226 = vmatpush.msra.mxu0 %v1343
      %2227 = vmatpush.msra.mxu0 %v1335
      %2228 = vmatpush.msra.mxu0 %v1327
      %2229 = vmatpush.msra.mxu0 %v1319
      %2230 = vmatpush.msra.mxu0 %v1311
      %2231 = vmatpush.msra.mxu0 %v1303
      %2232 = vmatpush.msra.mxu0 %v1295
      %2233 = vmatmul.f32.gmra.mxu0 %v394
      %v2234 = vpop.f32.mrf.mxu0
      %v2235 = vadd.f32 %v2215, %v2234
      %2236 = vdwg.mxu0
      %2237 = vmatpush.msra.mxu0 %v520
      %2238 = vmatpush.msra.mxu0 %v512
      %2239 = vmatpush.msra.mxu0 %v504
      %2240 = vmatpush.msra.mxu0 %v496
      %2241 = vmatpush.msra.mxu0 %v488
      %2242 = vmatpush.msra.mxu0 %v480
      %2243 = vmatpush.msra.mxu0 %v472
      %2244 = vmatpush.msra.mxu0 %v464
      %2245 = vmatpush.msra.mxu0 %v456
      %2246 = vmatpush.msra.mxu0 %v448
      %2247 = vmatpush.msra.mxu0 %v440
      %2248 = vmatpush.msra.mxu0 %v432
      %2249 = vmatpush.msra.mxu0 %v424
      %2250 = vmatpush.msra.mxu0 %v416
      %2251 = vmatpush.msra.mxu0 %v408
      %2252 = vmatpush.msra.mxu0 %v400
      %2253 = vmatmul.f32.gmra.mxu0 %v387
      %v2254 = vpop.f32.mrf.mxu0
      %v2255 = vadd.f32 %v1426, %v2254
      %2256 = vdwg.mxu0
      %2257 = vmatpush.msra.mxu0 %v648
      %2258 = vmatpush.msra.mxu0 %v640
      %2259 = vmatpush.msra.mxu0 %v632
      %2260 = vmatpush.msra.mxu0 %v624
      %2261 = vmatpush.msra.mxu0 %v616
      %2262 = vmatpush.msra.mxu0 %v608
      %2263 = vmatpush.msra.mxu0 %v600
      %2264 = vmatpush.msra.mxu0 %v592
      %2265 = vmatpush.msra.mxu0 %v584
      %2266 = vmatpush.msra.mxu0 %v576
      %2267 = vmatpush.msra.mxu0 %v568
      %2268 = vmatpush.msra.mxu0 %v560
      %2269 = vmatpush.msra.mxu0 %v552
      %2270 = vmatpush.msra.mxu0 %v544
      %2271 = vmatpush.msra.mxu0 %v536
      %2272 = vmatpush.msra.mxu0 %v528
      %2273 = vmatmul.f32.gmra.mxu0 %v388
      %v2274 = vpop.f32.mrf.mxu0
      %v2275 = vadd.f32 %v2255, %v2274
      %2276 = vdwg.mxu0
      %2277 = vmatpush.msra.mxu0 %v776
      %2278 = vmatpush.msra.mxu0 %v768
      %2279 = vmatpush.msra.mxu0 %v760
      %2280 = vmatpush.msra.mxu0 %v752
      %2281 = vmatpush.msra.mxu0 %v744
      %2282 = vmatpush.msra.mxu0 %v736
      %2283 = vmatpush.msra.mxu0 %v728
      %2284 = vmatpush.msra.mxu0 %v720
      %2285 = vmatpush.msra.mxu0 %v712
      %2286 = vmatpush.msra.mxu0 %v704
      %2287 = vmatpush.msra.mxu0 %v696
      %2288 = vmatpush.msra.mxu0 %v688
      %2289 = vmatpush.msra.mxu0 %v680
      %2290 = vmatpush.msra.mxu0 %v672
      %2291 = vmatpush.msra.mxu0 %v664
      %2292 = vmatpush.msra.mxu0 %v656
      %2293 = vmatmul.f32.gmra.mxu0 %v389
      %v2294 = vpop.f32.mrf.mxu0
      %v2295 = vadd.f32 %v2275, %v2294
      %2296 = vdwg.mxu0
      %2297 = vmatpush.msra.mxu0 %v904
      %2298 = vmatpush.msra.mxu0 %v896
      %2299 = vmatpush.msra.mxu0 %v888
      %2300 = vmatpush.msra.mxu0 %v880
      %2301 = vmatpush.msra.mxu0 %v872
      %2302 = vmatpush.msra.mxu0 %v864
      %2303 = vmatpush.msra.mxu0 %v856
      %2304 = vmatpush.msra.mxu0 %v848
      %2305 = vmatpush.msra.mxu0 %v840
      %2306 = vmatpush.msra.mxu0 %v832
      %2307 = vmatpush.msra.mxu0 %v824
      %2308 = vmatpush.msra.mxu0 %v816
      %2309 = vmatpush.msra.mxu0 %v808
      %2310 = vmatpush.msra.mxu0 %v800
      %2311 = vmatpush.msra.mxu0 %v792
      %2312 = vmatpush.msra.mxu0 %v784
      %2313 = vmatmul.f32.gmra.mxu0 %v390
      %v2314 = vpop.f32.mrf.mxu0
      %v2315 = vadd.f32 %v2295, %v2314
      %2316 = vdwg.mxu0
      %2317 = vmatpush.msra.mxu0 %v1032
      %2318 = vmatpush.msra.mxu0 %v1024
      %2319 = vmatpush.msra.mxu0 %v1016
      %2320 = vmatpush.msra.mxu0 %v1008
      %2321 = vmatpush.msra.mxu0 %v1000
      %2322 = vmatpush.msra.mxu0 %v992
      %2323 = vmatpush.msra.mxu0 %v984
      %2324 = vmatpush.msra.mxu0 %v976
      %2325 = vmatpush.msra.mxu0 %v968
      %2326 = vmatpush.msra.mxu0 %v960
      %2327 = vmatpush.msra.mxu0 %v952
      %2328 = vmatpush.msra.mxu0 %v944
      %2329 = vmatpush.msra.mxu0 %v936
      %2330 = vmatpush.msra.mxu0 %v928
      %2331 = vmatpush.msra.mxu0 %v920
      %2332 = vmatpush.msra.mxu0 %v912
      %2333 = vmatmul.f32.gmra.mxu0 %v391
      %v2334 = vpop.f32.mrf.mxu0
      %v2335 = vadd.f32 %v2315, %v2334
      %2336 = vdwg.mxu0
      %2337 = vmatpush.msra.mxu0 %v1160
      %2338 = vmatpush.msra.mxu0 %v1152
      %2339 = vmatpush.msra.mxu0 %v1144
      %2340 = vmatpush.msra.mxu0 %v1136
      %2341 = vmatpush.msra.mxu0 %v1128
      %2342 = vmatpush.msra.mxu0 %v1120
      %2343 = vmatpush.msra.mxu0 %v1112
      %2344 = vmatpush.msra.mxu0 %v1104
      %2345 = vmatpush.msra.mxu0 %v1096
      %2346 = vmatpush.msra.mxu0 %v1088
      %2347 = vmatpush.msra.mxu0 %v1080
      %2348 = vmatpush.msra.mxu0 %v1072
      %2349 = vmatpush.msra.mxu0 %v1064
      %2350 = vmatpush.msra.mxu0 %v1056
      %2351 = vmatpush.msra.mxu0 %v1048
      %2352 = vmatpush.msra.mxu0 %v1040
      %2353 = vmatmul.f32.gmra.mxu0 %v392
      %v2354 = vpop.f32.mrf.mxu0
      %v2355 = vadd.f32 %v2335, %v2354
      %2356 = vdwg.mxu0
      %2357 = vmatpush.msra.mxu0 %v1288
      %2358 = vmatpush.msra.mxu0 %v1280
      %2359 = vmatpush.msra.mxu0 %v1272
      %2360 = vmatpush.msra.mxu0 %v1264
      %2361 = vmatpush.msra.mxu0 %v1256
      %2362 = vmatpush.msra.mxu0 %v1248
      %2363 = vmatpush.msra.mxu0 %v1240
      %2364 = vmatpush.msra.mxu0 %v1232
      %2365 = vmatpush.msra.mxu0 %v1224
      %2366 = vmatpush.msra.mxu0 %v1216
      %2367 = vmatpush.msra.mxu0 %v1208
      %2368 = vmatpush.msra.mxu0 %v1200
      %2369 = vmatpush.msra.mxu0 %v1192
      %2370 = vmatpush.msra.mxu0 %v1184
      %2371 = vmatpush.msra.mxu0 %v1176
      %2372 = vmatpush.msra.mxu0 %v1168
      %2373 = vmatmul.f32.gmra.mxu0 %v393
      %v2374 = vpop.f32.mrf.mxu0
      %v2375 = vadd.f32 %v2355, %v2374
      %2376 = vdwg.mxu0
      %2377 = vmatpush.msra.mxu0 %v1416
      %2378 = vmatpush.msra.mxu0 %v1408
      %2379 = vmatpush.msra.mxu0 %v1400
      %2380 = vmatpush.msra.mxu0 %v1392
      %2381 = vmatpush.msra.mxu0 %v1384
      %2382 = vmatpush.msra.mxu0 %v1376
      %2383 = vmatpush.msra.mxu0 %v1368
      %2384 = vmatpush.msra.mxu0 %v1360
      %2385 = vmatpush.msra.mxu0 %v1352
      %2386 = vmatpush.msra.mxu0 %v1344
      %2387 = vmatpush.msra.mxu0 %v1336
      %2388 = vmatpush.msra.mxu0 %v1328
      %2389 = vmatpush.msra.mxu0 %v1320
      %2390 = vmatpush.msra.mxu0 %v1312
      %2391 = vmatpush.msra.mxu0 %v1304
      %2392 = vmatpush.msra.mxu0 %v1296
      %2393 = vmatmul.f32.gmra.mxu0 %v394
      %v2394 = vpop.f32.mrf.mxu0
      %v2395 = vadd.f32 %v2375, %v2394
      %2396 = vdwg.mxu0
      %2397 = vmatpush.msra.mxu0 %v521
      %2398 = vmatpush.msra.mxu0 %v513
      %2399 = vmatpush.msra.mxu0 %v505
      %2400 = vmatpush.msra.mxu0 %v497
      %2401 = vmatpush.msra.mxu0 %v489
      %2402 = vmatpush.msra.mxu0 %v481
      %2403 = vmatpush.msra.mxu0 %v473
      %2404 = vmatpush.msra.mxu0 %v465
      %2405 = vmatpush.msra.mxu0 %v457
      %2406 = vmatpush.msra.mxu0 %v449
      %2407 = vmatpush.msra.mxu0 %v441
      %2408 = vmatpush.msra.mxu0 %v433
      %2409 = vmatpush.msra.mxu0 %v425
      %2410 = vmatpush.msra.mxu0 %v417
      %2411 = vmatpush.msra.mxu0 %v409
      %2412 = vmatpush.msra.mxu0 %v401
      %2413 = vmatmul.f32.gmra.mxu0 %v387
      %v2414 = vpop.f32.mrf.mxu0
      %v2415 = vadd.f32 %v1427, %v2414
      %2416 = vdwg.mxu0
      %2417 = vmatpush.msra.mxu0 %v649
      %2418 = vmatpush.msra.mxu0 %v641
      %2419 = vmatpush.msra.mxu0 %v633
      %2420 = vmatpush.msra.mxu0 %v625
      %2421 = vmatpush.msra.mxu0 %v617
      %2422 = vmatpush.msra.mxu0 %v609
      %2423 = vmatpush.msra.mxu0 %v601
      %2424 = vmatpush.msra.mxu0 %v593
      %2425 = vmatpush.msra.mxu0 %v585
      %2426 = vmatpush.msra.mxu0 %v577
      %2427 = vmatpush.msra.mxu0 %v569
      %2428 = vmatpush.msra.mxu0 %v561
      %2429 = vmatpush.msra.mxu0 %v553
      %2430 = vmatpush.msra.mxu0 %v545
      %2431 = vmatpush.msra.mxu0 %v537
      %2432 = vmatpush.msra.mxu0 %v529
      %2433 = vmatmul.f32.gmra.mxu0 %v388
      %v2434 = vpop.f32.mrf.mxu0
      %v2435 = vadd.f32 %v2415, %v2434
      %2436 = vdwg.mxu0
      %2437 = vmatpush.msra.mxu0 %v777
      %2438 = vmatpush.msra.mxu0 %v769
      %2439 = vmatpush.msra.mxu0 %v761
      %2440 = vmatpush.msra.mxu0 %v753
      %2441 = vmatpush.msra.mxu0 %v745
      %2442 = vmatpush.msra.mxu0 %v737
      %2443 = vmatpush.msra.mxu0 %v729
      %2444 = vmatpush.msra.mxu0 %v721
      %2445 = vmatpush.msra.mxu0 %v713
      %2446 = vmatpush.msra.mxu0 %v705
      %2447 = vmatpush.msra.mxu0 %v697
      %2448 = vmatpush.msra.mxu0 %v689
      %2449 = vmatpush.msra.mxu0 %v681
      %2450 = vmatpush.msra.mxu0 %v673
      %2451 = vmatpush.msra.mxu0 %v665
      %2452 = vmatpush.msra.mxu0 %v657
      %2453 = vmatmul.f32.gmra.mxu0 %v389
      %v2454 = vpop.f32.mrf.mxu0
      %v2455 = vadd.f32 %v2435, %v2454
      %2456 = vdwg.mxu0
      %2457 = vmatpush.msra.mxu0 %v905
      %2458 = vmatpush.msra.mxu0 %v897
      %2459 = vmatpush.msra.mxu0 %v889
      %2460 = vmatpush.msra.mxu0 %v881
      %2461 = vmatpush.msra.mxu0 %v873
      %2462 = vmatpush.msra.mxu0 %v865
      %2463 = vmatpush.msra.mxu0 %v857
      %2464 = vmatpush.msra.mxu0 %v849
      %2465 = vmatpush.msra.mxu0 %v841
      %2466 = vmatpush.msra.mxu0 %v833
      %2467 = vmatpush.msra.mxu0 %v825
      %2468 = vmatpush.msra.mxu0 %v817
      %2469 = vmatpush.msra.mxu0 %v809
      %2470 = vmatpush.msra.mxu0 %v801
      %2471 = vmatpush.msra.mxu0 %v793
      %2472 = vmatpush.msra.mxu0 %v785
      %2473 = vmatmul.f32.gmra.mxu0 %v390
      %v2474 = vpop.f32.mrf.mxu0
      %v2475 = vadd.f32 %v2455, %v2474
      %2476 = vdwg.mxu0
      %2477 = vmatpush.msra.mxu0 %v1033
      %2478 = vmatpush.msra.mxu0 %v1025
      %2479 = vmatpush.msra.mxu0 %v1017
      %2480 = vmatpush.msra.mxu0 %v1009
      %2481 = vmatpush.msra.mxu0 %v1001
      %2482 = vmatpush.msra.mxu0 %v993
      %2483 = vmatpush.msra.mxu0 %v985
      %2484 = vmatpush.msra.mxu0 %v977
      %2485 = vmatpush.msra.mxu0 %v969
      %2486 = vmatpush.msra.mxu0 %v961
      %2487 = vmatpush.msra.mxu0 %v953
      %2488 = vmatpush.msra.mxu0 %v945
      %2489 = vmatpush.msra.mxu0 %v937
      %2490 = vmatpush.msra.mxu0 %v929
      %2491 = vmatpush.msra.mxu0 %v921
      %2492 = vmatpush.msra.mxu0 %v913
      %2493 = vmatmul.f32.gmra.mxu0 %v391
      %v2494 = vpop.f32.mrf.mxu0
      %v2495 = vadd.f32 %v2475, %v2494
      %2496 = vdwg.mxu0
      %2497 = vmatpush.msra.mxu0 %v1161
      %2498 = vmatpush.msra.mxu0 %v1153
      %2499 = vmatpush.msra.mxu0 %v1145
      %2500 = vmatpush.msra.mxu0 %v1137
      %2501 = vmatpush.msra.mxu0 %v1129
      %2502 = vmatpush.msra.mxu0 %v1121
      %2503 = vmatpush.msra.mxu0 %v1113
      %2504 = vmatpush.msra.mxu0 %v1105
      %2505 = vmatpush.msra.mxu0 %v1097
      %2506 = vmatpush.msra.mxu0 %v1089
      %2507 = vmatpush.msra.mxu0 %v1081
      %2508 = vmatpush.msra.mxu0 %v1073
      %2509 = vmatpush.msra.mxu0 %v1065
      %2510 = vmatpush.msra.mxu0 %v1057
      %2511 = vmatpush.msra.mxu0 %v1049
      %2512 = vmatpush.msra.mxu0 %v1041
      %2513 = vmatmul.f32.gmra.mxu0 %v392
      %v2514 = vpop.f32.mrf.mxu0
      %v2515 = vadd.f32 %v2495, %v2514
      %2516 = vdwg.mxu0
      %2517 = vmatpush.msra.mxu0 %v1289
      %2518 = vmatpush.msra.mxu0 %v1281
      %2519 = vmatpush.msra.mxu0 %v1273
      %2520 = vmatpush.msra.mxu0 %v1265
      %2521 = vmatpush.msra.mxu0 %v1257
      %2522 = vmatpush.msra.mxu0 %v1249
      %2523 = vmatpush.msra.mxu0 %v1241
      %2524 = vmatpush.msra.mxu0 %v1233
      %2525 = vmatpush.msra.mxu0 %v1225
      %2526 = vmatpush.msra.mxu0 %v1217
      %2527 = vmatpush.msra.mxu0 %v1209
      %2528 = vmatpush.msra.mxu0 %v1201
      %2529 = vmatpush.msra.mxu0 %v1193
      %2530 = vmatpush.msra.mxu0 %v1185
      %2531 = vmatpush.msra.mxu0 %v1177
      %2532 = vmatpush.msra.mxu0 %v1169
      %2533 = vmatmul.f32.gmra.mxu0 %v393
      %v2534 = vpop.f32.mrf.mxu0
      %v2535 = vadd.f32 %v2515, %v2534
      %2536 = vdwg.mxu0
      %2537 = vmatpush.msra.mxu0 %v1417
      %2538 = vmatpush.msra.mxu0 %v1409
      %2539 = vmatpush.msra.mxu0 %v1401
      %2540 = vmatpush.msra.mxu0 %v1393
      %2541 = vmatpush.msra.mxu0 %v1385
      %2542 = vmatpush.msra.mxu0 %v1377
      %2543 = vmatpush.msra.mxu0 %v1369
      %2544 = vmatpush.msra.mxu0 %v1361
      %2545 = vmatpush.msra.mxu0 %v1353
      %2546 = vmatpush.msra.mxu0 %v1345
      %2547 = vmatpush.msra.mxu0 %v1337
      %2548 = vmatpush.msra.mxu0 %v1329
      %2549 = vmatpush.msra.mxu0 %v1321
      %2550 = vmatpush.msra.mxu0 %v1313
      %2551 = vmatpush.msra.mxu0 %v1305
      %2552 = vmatpush.msra.mxu0 %v1297
      %2553 = vmatmul.f32.gmra.mxu0 %v394
      %v2554 = vpop.f32.mrf.mxu0
      %v2555 = vadd.f32 %v2535, %v2554
      %2556 = vdwg.mxu0
      %2557 = vmatpush.msra.mxu0 %v522
      %2558 = vmatpush.msra.mxu0 %v514
      %2559 = vmatpush.msra.mxu0 %v506
      %2560 = vmatpush.msra.mxu0 %v498
      %2561 = vmatpush.msra.mxu0 %v490
      %2562 = vmatpush.msra.mxu0 %v482
      %2563 = vmatpush.msra.mxu0 %v474
      %2564 = vmatpush.msra.mxu0 %v466
      %2565 = vmatpush.msra.mxu0 %v458
      %2566 = vmatpush.msra.mxu0 %v450
      %2567 = vmatpush.msra.mxu0 %v442
      %2568 = vmatpush.msra.mxu0 %v434
      %2569 = vmatpush.msra.mxu0 %v426
      %2570 = vmatpush.msra.mxu0 %v418
      %2571 = vmatpush.msra.mxu0 %v410
      %2572 = vmatpush.msra.mxu0 %v402
      %2573 = vmatmul.f32.gmra.mxu0 %v387
      %v2574 = vpop.f32.mrf.mxu0
      %v2575 = vadd.f32 %v1428, %v2574
      %2576 = vdwg.mxu0
      %2577 = vmatpush.msra.mxu0 %v650
      %2578 = vmatpush.msra.mxu0 %v642
      %2579 = vmatpush.msra.mxu0 %v634
      %2580 = vmatpush.msra.mxu0 %v626
      %2581 = vmatpush.msra.mxu0 %v618
      %2582 = vmatpush.msra.mxu0 %v610
      %2583 = vmatpush.msra.mxu0 %v602
      %2584 = vmatpush.msra.mxu0 %v594
      %2585 = vmatpush.msra.mxu0 %v586
      %2586 = vmatpush.msra.mxu0 %v578
      %2587 = vmatpush.msra.mxu0 %v570
      %2588 = vmatpush.msra.mxu0 %v562
      %2589 = vmatpush.msra.mxu0 %v554
      %2590 = vmatpush.msra.mxu0 %v546
      %2591 = vmatpush.msra.mxu0 %v538
      %2592 = vmatpush.msra.mxu0 %v530
      %2593 = vmatmul.f32.gmra.mxu0 %v388
      %v2594 = vpop.f32.mrf.mxu0
      %v2595 = vadd.f32 %v2575, %v2594
      %2596 = vdwg.mxu0
      %2597 = vmatpush.msra.mxu0 %v778
      %2598 = vmatpush.msra.mxu0 %v770
      %2599 = vmatpush.msra.mxu0 %v762
      %2600 = vmatpush.msra.mxu0 %v754
      %2601 = vmatpush.msra.mxu0 %v746
      %2602 = vmatpush.msra.mxu0 %v738
      %2603 = vmatpush.msra.mxu0 %v730
      %2604 = vmatpush.msra.mxu0 %v722
      %2605 = vmatpush.msra.mxu0 %v714
      %2606 = vmatpush.msra.mxu0 %v706
      %2607 = vmatpush.msra.mxu0 %v698
      %2608 = vmatpush.msra.mxu0 %v690
      %2609 = vmatpush.msra.mxu0 %v682
      %2610 = vmatpush.msra.mxu0 %v674
      %2611 = vmatpush.msra.mxu0 %v666
      %2612 = vmatpush.msra.mxu0 %v658
      %2613 = vmatmul.f32.gmra.mxu0 %v389
      %v2614 = vpop.f32.mrf.mxu0
      %v2615 = vadd.f32 %v2595, %v2614
      %2616 = vdwg.mxu0
      %2617 = vmatpush.msra.mxu0 %v906
      %2618 = vmatpush.msra.mxu0 %v898
      %2619 = vmatpush.msra.mxu0 %v890
      %2620 = vmatpush.msra.mxu0 %v882
      %2621 = vmatpush.msra.mxu0 %v874
      %2622 = vmatpush.msra.mxu0 %v866
      %2623 = vmatpush.msra.mxu0 %v858
      %2624 = vmatpush.msra.mxu0 %v850
      %2625 = vmatpush.msra.mxu0 %v842
      %2626 = vmatpush.msra.mxu0 %v834
      %2627 = vmatpush.msra.mxu0 %v826
      %2628 = vmatpush.msra.mxu0 %v818
      %2629 = vmatpush.msra.mxu0 %v810
      %2630 = vmatpush.msra.mxu0 %v802
      %2631 = vmatpush.msra.mxu0 %v794
      %2632 = vmatpush.msra.mxu0 %v786
      %2633 = vmatmul.f32.gmra.mxu0 %v390
      %v2634 = vpop.f32.mrf.mxu0
      %v2635 = vadd.f32 %v2615, %v2634
      %2636 = vdwg.mxu0
      %2637 = vmatpush.msra.mxu0 %v1034
      %2638 = vmatpush.msra.mxu0 %v1026
      %2639 = vmatpush.msra.mxu0 %v1018
      %2640 = vmatpush.msra.mxu0 %v1010
      %2641 = vmatpush.msra.mxu0 %v1002
      %2642 = vmatpush.msra.mxu0 %v994
      %2643 = vmatpush.msra.mxu0 %v986
      %2644 = vmatpush.msra.mxu0 %v978
      %2645 = vmatpush.msra.mxu0 %v970
      %2646 = vmatpush.msra.mxu0 %v962
      %2647 = vmatpush.msra.mxu0 %v954
      %2648 = vmatpush.msra.mxu0 %v946
      %2649 = vmatpush.msra.mxu0 %v938
      %2650 = vmatpush.msra.mxu0 %v930
      %2651 = vmatpush.msra.mxu0 %v922
      %2652 = vmatpush.msra.mxu0 %v914
      %2653 = vmatmul.f32.gmra.mxu0 %v391
      %v2654 = vpop.f32.mrf.mxu0
      %v2655 = vadd.f32 %v2635, %v2654
      %2656 = vdwg.mxu0
      %2657 = vmatpush.msra.mxu0 %v1162
      %2658 = vmatpush.msra.mxu0 %v1154
      %2659 = vmatpush.msra.mxu0 %v1146
      %2660 = vmatpush.msra.mxu0 %v1138
      %2661 = vmatpush.msra.mxu0 %v1130
      %2662 = vmatpush.msra.mxu0 %v1122
      %2663 = vmatpush.msra.mxu0 %v1114
      %2664 = vmatpush.msra.mxu0 %v1106
      %2665 = vmatpush.msra.mxu0 %v1098
      %2666 = vmatpush.msra.mxu0 %v1090
      %2667 = vmatpush.msra.mxu0 %v1082
      %2668 = vmatpush.msra.mxu0 %v1074
      %2669 = vmatpush.msra.mxu0 %v1066
      %2670 = vmatpush.msra.mxu0 %v1058
      %2671 = vmatpush.msra.mxu0 %v1050
      %2672 = vmatpush.msra.mxu0 %v1042
      %2673 = vmatmul.f32.gmra.mxu0 %v392
      %v2674 = vpop.f32.mrf.mxu0
      %v2675 = vadd.f32 %v2655, %v2674
      %2676 = vdwg.mxu0
      %2677 = vmatpush.msra.mxu0 %v1290
      %2678 = vmatpush.msra.mxu0 %v1282
      %2679 = vmatpush.msra.mxu0 %v1274
      %2680 = vmatpush.msra.mxu0 %v1266
      %2681 = vmatpush.msra.mxu0 %v1258
      %2682 = vmatpush.msra.mxu0 %v1250
      %2683 = vmatpush.msra.mxu0 %v1242
      %2684 = vmatpush.msra.mxu0 %v1234
      %2685 = vmatpush.msra.mxu0 %v1226
      %2686 = vmatpush.msra.mxu0 %v1218
      %2687 = vmatpush.msra.mxu0 %v1210
      %2688 = vmatpush.msra.mxu0 %v1202
      %2689 = vmatpush.msra.mxu0 %v1194
      %2690 = vmatpush.msra.mxu0 %v1186
      %2691 = vmatpush.msra.mxu0 %v1178
      %2692 = vmatpush.msra.mxu0 %v1170
      %2693 = vmatmul.f32.gmra.mxu0 %v393
      %v2694 = vpop.f32.mrf.mxu0
      %v2695 = vadd.f32 %v2675, %v2694
      %2696 = vdwg.mxu0
      %2697 = vmatpush.msra.mxu0 %v1418
      %2698 = vmatpush.msra.mxu0 %v1410
      %2699 = vmatpush.msra.mxu0 %v1402
      %2700 = vmatpush.msra.mxu0 %v1394
      %2701 = vmatpush.msra.mxu0 %v1386
      %2702 = vmatpush.msra.mxu0 %v1378
      %2703 = vmatpush.msra.mxu0 %v1370
      %2704 = vmatpush.msra.mxu0 %v1362
      %2705 = vmatpush.msra.mxu0 %v1354
      %2706 = vmatpush.msra.mxu0 %v1346
      %2707 = vmatpush.msra.mxu0 %v1338
      %2708 = vmatpush.msra.mxu0 %v1330
      %2709 = vmatpush.msra.mxu0 %v1322
      %2710 = vmatpush.msra.mxu0 %v1314
      %2711 = vmatpush.msra.mxu0 %v1306
      %2712 = vmatpush.msra.mxu0 %v1298
      %2713 = vmatmul.f32.gmra.mxu0 %v394
      %v2714 = vpop.f32.mrf.mxu0
      %v2715 = vadd.f32 %v2695, %v2714
      %2716 = vdwg.mxu0
      %vm2717 = vcmp.ge.f32.partialorder %v1595, 0.0
      %vm2718 = vcmp.ge.f32.partialorder %v1755, 0.0
      %vm2719 = vcmp.ge.f32.partialorder %v1915, 0.0
      %vm2720 = vcmp.ge.f32.partialorder %v2075, 0.0
      %vm2721 = vcmp.ge.f32.partialorder %v2235, 0.0
      %vm2722 = vcmp.ge.f32.partialorder %v2395, 0.0
      %vm2723 = vcmp.ge.f32.partialorder %v2555, 0.0
      %vm2724 = vcmp.ge.f32.partialorder %v2715, 0.0
      %v2725 = vmul.f32 %v1595, 0.2
      %v2726 = vmul.f32 %v1755, 0.2
      %v2727 = vmul.f32 %v1915, 0.2
      %v2728 = vmul.f32 %v2075, 0.2
      %v2729 = vmul.f32 %v2235, 0.2
      %v2730 = vmul.f32 %v2395, 0.2
      %v2731 = vmul.f32 %v2555, 0.2
      %v2732 = vmul.f32 %v2715, 0.2
      %v2733 = vsel %vm2717, %v1595, %v2725
      %v2734 = vsel %vm2718, %v1755, %v2726
      %v2735 = vsel %vm2719, %v1915, %v2727
      %v2736 = vsel %vm2720, %v2075, %v2728
      %v2737 = vsel %vm2721, %v2235, %v2729
      %v2738 = vsel %vm2722, %v2395, %v2730
      %v2739 = vsel %vm2723, %v2555, %v2731
      %v2740 = vsel %vm2724, %v2715, %v2732
      %v2741 = vld [vmem:[%s3] sm:$0xff]
      %v2742 = vld [vmem:[%s3 + $0x8] sm:$0xff]
      %v2743 = vld [vmem:[%s3 + $0x10] sm:$0xff]
      %v2744 = vld [vmem:[%s3 + $0x18] sm:$0xff]
      %v2745 = vld [vmem:[%s3 + $0x20] sm:$0xff]
      %v2746 = vld [vmem:[%s3 + $0x28] sm:$0xff]
      %v2747 = vld [vmem:[%s3 + $0x30] sm:$0xff]
      %v2748 = vld [vmem:[%s3 + $0x38] sm:$0xff]
      %v2749 = vld [vmem:[%s3 + $0x40] sm:$0xff]
      %v2750 = vld [vmem:[%s3 + $0x48] sm:$0xff]
      %v2751 = vld [vmem:[%s3 + $0x50] sm:$0xff]
      %v2752 = vld [vmem:[%s3 + $0x58] sm:$0xff]
      %v2753 = vld [vmem:[%s3 + $0x60] sm:$0xff]
      %v2754 = vld [vmem:[%s3 + $0x68] sm:$0xff]
      %v2755 = vld [vmem:[%s3 + $0x70] sm:$0xff]
      %v2756 = vld [vmem:[%s3 + $0x78] sm:$0xff]
      %v2757 = vld [vmem:[%s3 + $0x80] sm:$0xff]
      %v2758 = vld [vmem:[%s3 + $0x88] sm:$0xff]
      %v2759 = vld [vmem:[%s3 + $0x90] sm:$0xff]
      %v2760 = vld [vmem:[%s3 + $0x98] sm:$0xff]
      %v2761 = vld [vmem:[%s3 + $0xa0] sm:$0xff]
      %v2762 = vld [vmem:[%s3 + $0xa8] sm:$0xff]
      %v2763 = vld [vmem:[%s3 + $0xb0] sm:$0xff]
      %v2764 = vld [vmem:[%s3 + $0xb8] sm:$0xff]
      %v2765 = vld [vmem:[%s3 + $0xc0] sm:$0xff]
      %v2766 = vld [vmem:[%s3 + $0xc8] sm:$0xff]
      %v2767 = vld [vmem:[%s3 + $0xd0] sm:$0xff]
      %v2768 = vld [vmem:[%s3 + $0xd8] sm:$0xff]
      %v2769 = vld [vmem:[%s3 + $0xe0] sm:$0xff]
      %v2770 = vld [vmem:[%s3 + $0xe8] sm:$0xff]
      %v2771 = vld [vmem:[%s3 + $0xf0] sm:$0xff]
      %v2772 = vld [vmem:[%s3 + $0xf8] sm:$0xff]
      %v2773 = vld [vmem:[%s3 + $0x100] sm:$0xff]
      %v2774 = vld [vmem:[%s3 + $0x108] sm:$0xff]
      %v2775 = vld [vmem:[%s3 + $0x110] sm:$0xff]
      %v2776 = vld [vmem:[%s3 + $0x118] sm:$0xff]
      %v2777 = vld [vmem:[%s3 + $0x120] sm:$0xff]
      %v2778 = vld [vmem:[%s3 + $0x128] sm:$0xff]
      %v2779 = vld [vmem:[%s3 + $0x130] sm:$0xff]
      %v2780 = vld [vmem:[%s3 + $0x138] sm:$0xff]
      %v2781 = vld [vmem:[%s3 + $0x140] sm:$0xff]
      %v2782 = vld [vmem:[%s3 + $0x148] sm:$0xff]
      %v2783 = vld [vmem:[%s3 + $0x150] sm:$0xff]
      %v2784 = vld [vmem:[%s3 + $0x158] sm:$0xff]
      %v2785 = vld [vmem:[%s3 + $0x160] sm:$0xff]
      %v2786 = vld [vmem:[%s3 + $0x168] sm:$0xff]
      %v2787 = vld [vmem:[%s3 + $0x170] sm:$0xff]
      %v2788 = vld [vmem:[%s3 + $0x178] sm:$0xff]
      %v2789 = vld [vmem:[%s3 + $0x180] sm:$0xff]
      %v2790 = vld [vmem:[%s3 + $0x188] sm:$0xff]
      %v2791 = vld [vmem:[%s3 + $0x190] sm:$0xff]
      %v2792 = vld [vmem:[%s3 + $0x198] sm:$0xff]
      %v2793 = vld [vmem:[%s3 + $0x1a0] sm:$0xff]
      %v2794 = vld [vmem:[%s3 + $0x1a8] sm:$0xff]
      %v2795 = vld [vmem:[%s3 + $0x1b0] sm:$0xff]
      %v2796 = vld [vmem:[%s3 + $0x1b8] sm:$0xff]
      %v2797 = vld [vmem:[%s3 + $0x1c0] sm:$0xff]
      %v2798 = vld [vmem:[%s3 + $0x1c8] sm:$0xff]
      %v2799 = vld [vmem:[%s3 + $0x1d0] sm:$0xff]
      %v2800 = vld [vmem:[%s3 + $0x1d8] sm:$0xff]
      %v2801 = vld [vmem:[%s3 + $0x1e0] sm:$0xff]
      %v2802 = vld [vmem:[%s3 + $0x1e8] sm:$0xff]
      %v2803 = vld [vmem:[%s3 + $0x1f0] sm:$0xff]
      %v2804 = vld [vmem:[%s3 + $0x1f8] sm:$0xff]
      %v2805 = vld [vmem:[%s3 + $0x200] sm:$0xff]
      %v2806 = vld [vmem:[%s3 + $0x208] sm:$0xff]
      %v2807 = vld [vmem:[%s3 + $0x210] sm:$0xff]
      %v2808 = vld [vmem:[%s3 + $0x218] sm:$0xff]
      %v2809 = vld [vmem:[%s3 + $0x220] sm:$0xff]
      %v2810 = vld [vmem:[%s3 + $0x228] sm:$0xff]
      %v2811 = vld [vmem:[%s3 + $0x230] sm:$0xff]
      %v2812 = vld [vmem:[%s3 + $0x238] sm:$0xff]
      %v2813 = vld [vmem:[%s3 + $0x240] sm:$0xff]
      %v2814 = vld [vmem:[%s3 + $0x248] sm:$0xff]
      %v2815 = vld [vmem:[%s3 + $0x250] sm:$0xff]
      %v2816 = vld [vmem:[%s3 + $0x258] sm:$0xff]
      %v2817 = vld [vmem:[%s3 + $0x260] sm:$0xff]
      %v2818 = vld [vmem:[%s3 + $0x268] sm:$0xff]
      %v2819 = vld [vmem:[%s3 + $0x270] sm:$0xff]
      %v2820 = vld [vmem:[%s3 + $0x278] sm:$0xff]
      %v2821 = vld [vmem:[%s3 + $0x280] sm:$0xff]
      %v2822 = vld [vmem:[%s3 + $0x288] sm:$0xff]
      %v2823 = vld [vmem:[%s3 + $0x290] sm:$0xff]
      %v2824 = vld [vmem:[%s3 + $0x298] sm:$0xff]
      %v2825 = vld [vmem:[%s3 + $0x2a0] sm:$0xff]
      %v2826 = vld [vmem:[%s3 + $0x2a8] sm:$0xff]
      %v2827 = vld [vmem:[%s3 + $0x2b0] sm:$0xff]
      %v2828 = vld [vmem:[%s3 + $0x2b8] sm:$0xff]
      %v2829 = vld [vmem:[%s3 + $0x2c0] sm:$0xff]
      %v2830 = vld [vmem:[%s3 + $0x2c8] sm:$0xff]
      %v2831 = vld [vmem:[%s3 + $0x2d0] sm:$0xff]
      %v2832 = vld [vmem:[%s3 + $0x2d8] sm:$0xff]
      %v2833 = vld [vmem:[%s3 + $0x2e0] sm:$0xff]
      %v2834 = vld [vmem:[%s3 + $0x2e8] sm:$0xff]
      %v2835 = vld [vmem:[%s3 + $0x2f0] sm:$0xff]
      %v2836 = vld [vmem:[%s3 + $0x2f8] sm:$0xff]
      %v2837 = vld [vmem:[%s3 + $0x300] sm:$0xff]
      %v2838 = vld [vmem:[%s3 + $0x308] sm:$0xff]
      %v2839 = vld [vmem:[%s3 + $0x310] sm:$0xff]
      %v2840 = vld [vmem:[%s3 + $0x318] sm:$0xff]
      %v2841 = vld [vmem:[%s3 + $0x320] sm:$0xff]
      %v2842 = vld [vmem:[%s3 + $0x328] sm:$0xff]
      %v2843 = vld [vmem:[%s3 + $0x330] sm:$0xff]
      %v2844 = vld [vmem:[%s3 + $0x338] sm:$0xff]
      %v2845 = vld [vmem:[%s3 + $0x340] sm:$0xff]
      %v2846 = vld [vmem:[%s3 + $0x348] sm:$0xff]
      %v2847 = vld [vmem:[%s3 + $0x350] sm:$0xff]
      %v2848 = vld [vmem:[%s3 + $0x358] sm:$0xff]
      %v2849 = vld [vmem:[%s3 + $0x360] sm:$0xff]
      %v2850 = vld [vmem:[%s3 + $0x368] sm:$0xff]
      %v2851 = vld [vmem:[%s3 + $0x370] sm:$0xff]
      %v2852 = vld [vmem:[%s3 + $0x378] sm:$0xff]
      %v2853 = vld [vmem:[%s3 + $0x380] sm:$0xff]
      %v2854 = vld [vmem:[%s3 + $0x388] sm:$0xff]
      %v2855 = vld [vmem:[%s3 + $0x390] sm:$0xff]
      %v2856 = vld [vmem:[%s3 + $0x398] sm:$0xff]
      %v2857 = vld [vmem:[%s3 + $0x3a0] sm:$0xff]
      %v2858 = vld [vmem:[%s3 + $0x3a8] sm:$0xff]
      %v2859 = vld [vmem:[%s3 + $0x3b0] sm:$0xff]
      %v2860 = vld [vmem:[%s3 + $0x3b8] sm:$0xff]
      %v2861 = vld [vmem:[%s3 + $0x3c0] sm:$0xff]
      %v2862 = vld [vmem:[%s3 + $0x3c8] sm:$0xff]
      %v2863 = vld [vmem:[%s3 + $0x3d0] sm:$0xff]
      %v2864 = vld [vmem:[%s3 + $0x3d8] sm:$0xff]
      %v2865 = vld [vmem:[%s3 + $0x3e0] sm:$0xff]
      %v2866 = vld [vmem:[%s3 + $0x3e8] sm:$0xff]
      %v2867 = vld [vmem:[%s3 + $0x3f0] sm:$0xff]
      %v2868 = vld [vmem:[%s3 + $0x3f8] sm:$0xff]
      %v2869 = vld [vmem:[%s3 + $0x400] sm:$0xff]
      %v2870 = vld [vmem:[%s3 + $0x408] sm:$0xff]
      %v2871 = vld [vmem:[%s3 + $0x410] sm:$0xff]
      %v2872 = vld [vmem:[%s3 + $0x418] sm:$0xff]
      %v2873 = vld [vmem:[%s3 + $0x420] sm:$0xff]
      %v2874 = vld [vmem:[%s3 + $0x428] sm:$0xff]
      %v2875 = vld [vmem:[%s3 + $0x430] sm:$0xff]
      %v2876 = vld [vmem:[%s3 + $0x438] sm:$0xff]
      %v2877 = vld [vmem:[%s3 + $0x440] sm:$0xff]
      %v2878 = vld [vmem:[%s3 + $0x448] sm:$0xff]
      %v2879 = vld [vmem:[%s3 + $0x450] sm:$0xff]
      %v2880 = vld [vmem:[%s3 + $0x458] sm:$0xff]
      %v2881 = vld [vmem:[%s3 + $0x460] sm:$0xff]
      %v2882 = vld [vmem:[%s3 + $0x468] sm:$0xff]
      %v2883 = vld [vmem:[%s3 + $0x470] sm:$0xff]
      %v2884 = vld [vmem:[%s3 + $0x478] sm:$0xff]
      %v2885 = vld [vmem:[%s3 + $0x480] sm:$0xff]
      %v2886 = vld [vmem:[%s3 + $0x488] sm:$0xff]
      %v2887 = vld [vmem:[%s3 + $0x490] sm:$0xff]
      %v2888 = vld [vmem:[%s3 + $0x498] sm:$0xff]
      %v2889 = vld [vmem:[%s3 + $0x4a0] sm:$0xff]
      %v2890 = vld [vmem:[%s3 + $0x4a8] sm:$0xff]
      %v2891 = vld [vmem:[%s3 + $0x4b0] sm:$0xff]
      %v2892 = vld [vmem:[%s3 + $0x4b8] sm:$0xff]
      %v2893 = vld [vmem:[%s3 + $0x4c0] sm:$0xff]
      %v2894 = vld [vmem:[%s3 + $0x4c8] sm:$0xff]
      %v2895 = vld [vmem:[%s3 + $0x4d0] sm:$0xff]
      %v2896 = vld [vmem:[%s3 + $0x4d8] sm:$0xff]
      %v2897 = vld [vmem:[%s3 + $0x4e0] sm:$0xff]
      %v2898 = vld [vmem:[%s3 + $0x4e8] sm:$0xff]
      %v2899 = vld [vmem:[%s3 + $0x4f0] sm:$0xff]
      %v2900 = vld [vmem:[%s3 + $0x4f8] sm:$0xff]
      %v2901 = vld [vmem:[%s3 + $0x500] sm:$0xff]
      %v2902 = vld [vmem:[%s3 + $0x508] sm:$0xff]
      %v2903 = vld [vmem:[%s3 + $0x510] sm:$0xff]
      %v2904 = vld [vmem:[%s3 + $0x518] sm:$0xff]
      %v2905 = vld [vmem:[%s3 + $0x520] sm:$0xff]
      %v2906 = vld [vmem:[%s3 + $0x528] sm:$0xff]
      %v2907 = vld [vmem:[%s3 + $0x530] sm:$0xff]
      %v2908 = vld [vmem:[%s3 + $0x538] sm:$0xff]
      %v2909 = vld [vmem:[%s3 + $0x540] sm:$0xff]
      %v2910 = vld [vmem:[%s3 + $0x548] sm:$0xff]
      %v2911 = vld [vmem:[%s3 + $0x550] sm:$0xff]
      %v2912 = vld [vmem:[%s3 + $0x558] sm:$0xff]
      %v2913 = vld [vmem:[%s3 + $0x560] sm:$0xff]
      %v2914 = vld [vmem:[%s3 + $0x568] sm:$0xff]
      %v2915 = vld [vmem:[%s3 + $0x570] sm:$0xff]
      %v2916 = vld [vmem:[%s3 + $0x578] sm:$0xff]
      %v2917 = vld [vmem:[%s3 + $0x580] sm:$0xff]
      %v2918 = vld [vmem:[%s3 + $0x588] sm:$0xff]
      %v2919 = vld [vmem:[%s3 + $0x590] sm:$0xff]
      %v2920 = vld [vmem:[%s3 + $0x598] sm:$0xff]
      %v2921 = vld [vmem:[%s3 + $0x5a0] sm:$0xff]
      %v2922 = vld [vmem:[%s3 + $0x5a8] sm:$0xff]
      %v2923 = vld [vmem:[%s3 + $0x5b0] sm:$0xff]
      %v2924 = vld [vmem:[%s3 + $0x5b8] sm:$0xff]
      %v2925 = vld [vmem:[%s3 + $0x5c0] sm:$0xff]
      %v2926 = vld [vmem:[%s3 + $0x5c8] sm:$0xff]
      %v2927 = vld [vmem:[%s3 + $0x5d0] sm:$0xff]
      %v2928 = vld [vmem:[%s3 + $0x5d8] sm:$0xff]
      %v2929 = vld [vmem:[%s3 + $0x5e0] sm:$0xff]
      %v2930 = vld [vmem:[%s3 + $0x5e8] sm:$0xff]
      %v2931 = vld [vmem:[%s3 + $0x5f0] sm:$0xff]
      %v2932 = vld [vmem:[%s3 + $0x5f8] sm:$0xff]
      %v2933 = vld [vmem:[%s3 + $0x600] sm:$0xff]
      %v2934 = vld [vmem:[%s3 + $0x608] sm:$0xff]
      %v2935 = vld [vmem:[%s3 + $0x610] sm:$0xff]
      %v2936 = vld [vmem:[%s3 + $0x618] sm:$0xff]
      %v2937 = vld [vmem:[%s3 + $0x620] sm:$0xff]
      %v2938 = vld [vmem:[%s3 + $0x628] sm:$0xff]
      %v2939 = vld [vmem:[%s3 + $0x630] sm:$0xff]
      %v2940 = vld [vmem:[%s3 + $0x638] sm:$0xff]
      %v2941 = vld [vmem:[%s3 + $0x640] sm:$0xff]
      %v2942 = vld [vmem:[%s3 + $0x648] sm:$0xff]
      %v2943 = vld [vmem:[%s3 + $0x650] sm:$0xff]
      %v2944 = vld [vmem:[%s3 + $0x658] sm:$0xff]
      %v2945 = vld [vmem:[%s3 + $0x660] sm:$0xff]
      %v2946 = vld [vmem:[%s3 + $0x668] sm:$0xff]
      %v2947 = vld [vmem:[%s3 + $0x670] sm:$0xff]
      %v2948 = vld [vmem:[%s3 + $0x678] sm:$0xff]
      %v2949 = vld [vmem:[%s3 + $0x680] sm:$0xff]
      %v2950 = vld [vmem:[%s3 + $0x688] sm:$0xff]
      %v2951 = vld [vmem:[%s3 + $0x690] sm:$0xff]
      %v2952 = vld [vmem:[%s3 + $0x698] sm:$0xff]
      %v2953 = vld [vmem:[%s3 + $0x6a0] sm:$0xff]
      %v2954 = vld [vmem:[%s3 + $0x6a8] sm:$0xff]
      %v2955 = vld [vmem:[%s3 + $0x6b0] sm:$0xff]
      %v2956 = vld [vmem:[%s3 + $0x6b8] sm:$0xff]
      %v2957 = vld [vmem:[%s3 + $0x6c0] sm:$0xff]
      %v2958 = vld [vmem:[%s3 + $0x6c8] sm:$0xff]
      %v2959 = vld [vmem:[%s3 + $0x6d0] sm:$0xff]
      %v2960 = vld [vmem:[%s3 + $0x6d8] sm:$0xff]
      %v2961 = vld [vmem:[%s3 + $0x6e0] sm:$0xff]
      %v2962 = vld [vmem:[%s3 + $0x6e8] sm:$0xff]
      %v2963 = vld [vmem:[%s3 + $0x6f0] sm:$0xff]
      %v2964 = vld [vmem:[%s3 + $0x6f8] sm:$0xff]
      %v2965 = vld [vmem:[%s3 + $0x700] sm:$0xff]
      %v2966 = vld [vmem:[%s3 + $0x708] sm:$0xff]
      %v2967 = vld [vmem:[%s3 + $0x710] sm:$0xff]
      %v2968 = vld [vmem:[%s3 + $0x718] sm:$0xff]
      %v2969 = vld [vmem:[%s3 + $0x720] sm:$0xff]
      %v2970 = vld [vmem:[%s3 + $0x728] sm:$0xff]
      %v2971 = vld [vmem:[%s3 + $0x730] sm:$0xff]
      %v2972 = vld [vmem:[%s3 + $0x738] sm:$0xff]
      %v2973 = vld [vmem:[%s3 + $0x740] sm:$0xff]
      %v2974 = vld [vmem:[%s3 + $0x748] sm:$0xff]
      %v2975 = vld [vmem:[%s3 + $0x750] sm:$0xff]
      %v2976 = vld [vmem:[%s3 + $0x758] sm:$0xff]
      %v2977 = vld [vmem:[%s3 + $0x760] sm:$0xff]
      %v2978 = vld [vmem:[%s3 + $0x768] sm:$0xff]
      %v2979 = vld [vmem:[%s3 + $0x770] sm:$0xff]
      %v2980 = vld [vmem:[%s3 + $0x778] sm:$0xff]
      %v2981 = vld [vmem:[%s3 + $0x780] sm:$0xff]
      %v2982 = vld [vmem:[%s3 + $0x788] sm:$0xff]
      %v2983 = vld [vmem:[%s3 + $0x790] sm:$0xff]
      %v2984 = vld [vmem:[%s3 + $0x798] sm:$0xff]
      %v2985 = vld [vmem:[%s3 + $0x7a0] sm:$0xff]
      %v2986 = vld [vmem:[%s3 + $0x7a8] sm:$0xff]
      %v2987 = vld [vmem:[%s3 + $0x7b0] sm:$0xff]
      %v2988 = vld [vmem:[%s3 + $0x7b8] sm:$0xff]
      %v2989 = vld [vmem:[%s3 + $0x7c0] sm:$0xff]
      %v2990 = vld [vmem:[%s3 + $0x7c8] sm:$0xff]
      %v2991 = vld [vmem:[%s3 + $0x7d0] sm:$0xff]
      %v2992 = vld [vmem:[%s3 + $0x7d8] sm:$0xff]
      %v2993 = vld [vmem:[%s3 + $0x7e0] sm:$0xff]
      %v2994 = vld [vmem:[%s3 + $0x7e8] sm:$0xff]
      %v2995 = vld [vmem:[%s3 + $0x7f0] sm:$0xff]
      %v2996 = vld [vmem:[%s3 + $0x7f8] sm:$0xff]
      %v2997 = vld [vmem:[%s3 + $0x800] sm:$0xff]
      %v2998 = vld [vmem:[%s3 + $0x808] sm:$0xff]
      %v2999 = vld [vmem:[%s3 + $0x810] sm:$0xff]
      %v3000 = vld [vmem:[%s3 + $0x818] sm:$0xff]
      %v3001 = vld [vmem:[%s3 + $0x820] sm:$0xff]
      %v3002 = vld [vmem:[%s3 + $0x828] sm:$0xff]
      %v3003 = vld [vmem:[%s3 + $0x830] sm:$0xff]
      %v3004 = vld [vmem:[%s3 + $0x838] sm:$0xff]
      %v3005 = vld [vmem:[%s3 + $0x840] sm:$0xff]
      %v3006 = vld [vmem:[%s3 + $0x848] sm:$0xff]
      %v3007 = vld [vmem:[%s3 + $0x850] sm:$0xff]
      %v3008 = vld [vmem:[%s3 + $0x858] sm:$0xff]
      %v3009 = vld [vmem:[%s3 + $0x860] sm:$0xff]
      %v3010 = vld [vmem:[%s3 + $0x868] sm:$0xff]
      %v3011 = vld [vmem:[%s3 + $0x870] sm:$0xff]
      %v3012 = vld [vmem:[%s3 + $0x878] sm:$0xff]
      %v3013 = vld [vmem:[%s3 + $0x880] sm:$0xff]
      %v3014 = vld [vmem:[%s3 + $0x888] sm:$0xff]
      %v3015 = vld [vmem:[%s3 + $0x890] sm:$0xff]
      %v3016 = vld [vmem:[%s3 + $0x898] sm:$0xff]
      %v3017 = vld [vmem:[%s3 + $0x8a0] sm:$0xff]
      %v3018 = vld [vmem:[%s3 + $0x8a8] sm:$0xff]
      %v3019 = vld [vmem:[%s3 + $0x8b0] sm:$0xff]
      %v3020 = vld [vmem:[%s3 + $0x8b8] sm:$0xff]
      %v3021 = vld [vmem:[%s3 + $0x8c0] sm:$0xff]
      %v3022 = vld [vmem:[%s3 + $0x8c8] sm:$0xff]
      %v3023 = vld [vmem:[%s3 + $0x8d0] sm:$0xff]
      %v3024 = vld [vmem:[%s3 + $0x8d8] sm:$0xff]
      %v3025 = vld [vmem:[%s3 + $0x8e0] sm:$0xff]
      %v3026 = vld [vmem:[%s3 + $0x8e8] sm:$0xff]
      %v3027 = vld [vmem:[%s3 + $0x8f0] sm:$0xff]
      %v3028 = vld [vmem:[%s3 + $0x8f8] sm:$0xff]
      %v3029 = vld [vmem:[%s3 + $0x900] sm:$0xff]
      %v3030 = vld [vmem:[%s3 + $0x908] sm:$0xff]
      %v3031 = vld [vmem:[%s3 + $0x910] sm:$0xff]
      %v3032 = vld [vmem:[%s3 + $0x918] sm:$0xff]
      %v3033 = vld [vmem:[%s3 + $0x920] sm:$0xff]
      %v3034 = vld [vmem:[%s3 + $0x928] sm:$0xff]
      %v3035 = vld [vmem:[%s3 + $0x930] sm:$0xff]
      %v3036 = vld [vmem:[%s3 + $0x938] sm:$0xff]
      %v3037 = vld [vmem:[%s3 + $0x940] sm:$0xff]
      %v3038 = vld [vmem:[%s3 + $0x948] sm:$0xff]
      %v3039 = vld [vmem:[%s3 + $0x950] sm:$0xff]
      %v3040 = vld [vmem:[%s3 + $0x958] sm:$0xff]
      %v3041 = vld [vmem:[%s3 + $0x960] sm:$0xff]
      %v3042 = vld [vmem:[%s3 + $0x968] sm:$0xff]
      %v3043 = vld [vmem:[%s3 + $0x970] sm:$0xff]
      %v3044 = vld [vmem:[%s3 + $0x978] sm:$0xff]
      %v3045 = vld [vmem:[%s3 + $0x980] sm:$0xff]
      %v3046 = vld [vmem:[%s3 + $0x988] sm:$0xff]
      %v3047 = vld [vmem:[%s3 + $0x990] sm:$0xff]
      %v3048 = vld [vmem:[%s3 + $0x998] sm:$0xff]
      %v3049 = vld [vmem:[%s3 + $0x9a0] sm:$0xff]
      %v3050 = vld [vmem:[%s3 + $0x9a8] sm:$0xff]
      %v3051 = vld [vmem:[%s3 + $0x9b0] sm:$0xff]
      %v3052 = vld [vmem:[%s3 + $0x9b8] sm:$0xff]
      %v3053 = vld [vmem:[%s3 + $0x9c0] sm:$0xff]
      %v3054 = vld [vmem:[%s3 + $0x9c8] sm:$0xff]
      %v3055 = vld [vmem:[%s3 + $0x9d0] sm:$0xff]
      %v3056 = vld [vmem:[%s3 + $0x9d8] sm:$0xff]
      %v3057 = vld [vmem:[%s3 + $0x9e0] sm:$0xff]
      %v3058 = vld [vmem:[%s3 + $0x9e8] sm:$0xff]
      %v3059 = vld [vmem:[%s3 + $0x9f0] sm:$0xff]
      %v3060 = vld [vmem:[%s3 + $0x9f8] sm:$0xff]
      %v3061 = vld [vmem:[%s3 + $0xa00] sm:$0xff]
      %v3062 = vld [vmem:[%s3 + $0xa08] sm:$0xff]
      %v3063 = vld [vmem:[%s3 + $0xa10] sm:$0xff]
      %v3064 = vld [vmem:[%s3 + $0xa18] sm:$0xff]
      %v3065 = vld [vmem:[%s3 + $0xa20] sm:$0xff]
      %v3066 = vld [vmem:[%s3 + $0xa28] sm:$0xff]
      %v3067 = vld [vmem:[%s3 + $0xa30] sm:$0xff]
      %v3068 = vld [vmem:[%s3 + $0xa38] sm:$0xff]
      %v3069 = vld [vmem:[%s3 + $0xa40] sm:$0xff]
      %v3070 = vld [vmem:[%s3 + $0xa48] sm:$0xff]
      %v3071 = vld [vmem:[%s3 + $0xa50] sm:$0xff]
      %v3072 = vld [vmem:[%s3 + $0xa58] sm:$0xff]
      %v3073 = vld [vmem:[%s3 + $0xa60] sm:$0xff]
      %v3074 = vld [vmem:[%s3 + $0xa68] sm:$0xff]
      %v3075 = vld [vmem:[%s3 + $0xa70] sm:$0xff]
      %v3076 = vld [vmem:[%s3 + $0xa78] sm:$0xff]
      %v3077 = vld [vmem:[%s3 + $0xa80] sm:$0xff]
      %v3078 = vld [vmem:[%s3 + $0xa88] sm:$0xff]
      %v3079 = vld [vmem:[%s3 + $0xa90] sm:$0xff]
      %v3080 = vld [vmem:[%s3 + $0xa98] sm:$0xff]
      %v3081 = vld [vmem:[%s3 + $0xaa0] sm:$0xff]
      %v3082 = vld [vmem:[%s3 + $0xaa8] sm:$0xff]
      %v3083 = vld [vmem:[%s3 + $0xab0] sm:$0xff]
      %v3084 = vld [vmem:[%s3 + $0xab8] sm:$0xff]
      %v3085 = vld [vmem:[%s3 + $0xac0] sm:$0xff]
      %v3086 = vld [vmem:[%s3 + $0xac8] sm:$0xff]
      %v3087 = vld [vmem:[%s3 + $0xad0] sm:$0xff]
      %v3088 = vld [vmem:[%s3 + $0xad8] sm:$0xff]
      %v3089 = vld [vmem:[%s3 + $0xae0] sm:$0xff]
      %v3090 = vld [vmem:[%s3 + $0xae8] sm:$0xff]
      %v3091 = vld [vmem:[%s3 + $0xaf0] sm:$0xff]
      %v3092 = vld [vmem:[%s3 + $0xaf8] sm:$0xff]
      %v3093 = vld [vmem:[%s3 + $0xb00] sm:$0xff]
      %v3094 = vld [vmem:[%s3 + $0xb08] sm:$0xff]
      %v3095 = vld [vmem:[%s3 + $0xb10] sm:$0xff]
      %v3096 = vld [vmem:[%s3 + $0xb18] sm:$0xff]
      %v3097 = vld [vmem:[%s3 + $0xb20] sm:$0xff]
      %v3098 = vld [vmem:[%s3 + $0xb28] sm:$0xff]
      %v3099 = vld [vmem:[%s3 + $0xb30] sm:$0xff]
      %v3100 = vld [vmem:[%s3 + $0xb38] sm:$0xff]
      %v3101 = vld [vmem:[%s3 + $0xb40] sm:$0xff]
      %v3102 = vld [vmem:[%s3 + $0xb48] sm:$0xff]
      %v3103 = vld [vmem:[%s3 + $0xb50] sm:$0xff]
      %v3104 = vld [vmem:[%s3 + $0xb58] sm:$0xff]
      %v3105 = vld [vmem:[%s3 + $0xb60] sm:$0xff]
      %v3106 = vld [vmem:[%s3 + $0xb68] sm:$0xff]
      %v3107 = vld [vmem:[%s3 + $0xb70] sm:$0xff]
      %v3108 = vld [vmem:[%s3 + $0xb78] sm:$0xff]
      %v3109 = vld [vmem:[%s3 + $0xb80] sm:$0xff]
      %v3110 = vld [vmem:[%s3 + $0xb88] sm:$0xff]
      %v3111 = vld [vmem:[%s3 + $0xb90] sm:$0xff]
      %v3112 = vld [vmem:[%s3 + $0xb98] sm:$0xff]
      %v3113 = vld [vmem:[%s3 + $0xba0] sm:$0xff]
      %v3114 = vld [vmem:[%s3 + $0xba8] sm:$0xff]
      %v3115 = vld [vmem:[%s3 + $0xbb0] sm:$0xff]
      %v3116 = vld [vmem:[%s3 + $0xbb8] sm:$0xff]
      %v3117 = vld [vmem:[%s3 + $0xbc0] sm:$0xff]
      %v3118 = vld [vmem:[%s3 + $0xbc8] sm:$0xff]
      %v3119 = vld [vmem:[%s3 + $0xbd0] sm:$0xff]
      %v3120 = vld [vmem:[%s3 + $0xbd8] sm:$0xff]
      %v3121 = vld [vmem:[%s3 + $0xbe0] sm:$0xff]
      %v3122 = vld [vmem:[%s3 + $0xbe8] sm:$0xff]
      %v3123 = vld [vmem:[%s3 + $0xbf0] sm:$0xff]
      %v3124 = vld [vmem:[%s3 + $0xbf8] sm:$0xff]
      %v3125 = vld [vmem:[%s3 + $0xc00] sm:$0xff]
      %v3126 = vld [vmem:[%s3 + $0xc08] sm:$0xff]
      %v3127 = vld [vmem:[%s3 + $0xc10] sm:$0xff]
      %v3128 = vld [vmem:[%s3 + $0xc18] sm:$0xff]
      %v3129 = vld [vmem:[%s3 + $0xc20] sm:$0xff]
      %v3130 = vld [vmem:[%s3 + $0xc28] sm:$0xff]
      %v3131 = vld [vmem:[%s3 + $0xc30] sm:$0xff]
      %v3132 = vld [vmem:[%s3 + $0xc38] sm:$0xff]
      %v3133 = vld [vmem:[%s3 + $0xc40] sm:$0xff]
      %v3134 = vld [vmem:[%s3 + $0xc48] sm:$0xff]
      %v3135 = vld [vmem:[%s3 + $0xc50] sm:$0xff]
      %v3136 = vld [vmem:[%s3 + $0xc58] sm:$0xff]
      %v3137 = vld [vmem:[%s3 + $0xc60] sm:$0xff]
      %v3138 = vld [vmem:[%s3 + $0xc68] sm:$0xff]
      %v3139 = vld [vmem:[%s3 + $0xc70] sm:$0xff]
      %v3140 = vld [vmem:[%s3 + $0xc78] sm:$0xff]
      %v3141 = vld [vmem:[%s3 + $0xc80] sm:$0xff]
      %v3142 = vld [vmem:[%s3 + $0xc88] sm:$0xff]
      %v3143 = vld [vmem:[%s3 + $0xc90] sm:$0xff]
      %v3144 = vld [vmem:[%s3 + $0xc98] sm:$0xff]
      %v3145 = vld [vmem:[%s3 + $0xca0] sm:$0xff]
      %v3146 = vld [vmem:[%s3 + $0xca8] sm:$0xff]
      %v3147 = vld [vmem:[%s3 + $0xcb0] sm:$0xff]
      %v3148 = vld [vmem:[%s3 + $0xcb8] sm:$0xff]
      %v3149 = vld [vmem:[%s3 + $0xcc0] sm:$0xff]
      %v3150 = vld [vmem:[%s3 + $0xcc8] sm:$0xff]
      %v3151 = vld [vmem:[%s3 + $0xcd0] sm:$0xff]
      %v3152 = vld [vmem:[%s3 + $0xcd8] sm:$0xff]
      %v3153 = vld [vmem:[%s3 + $0xce0] sm:$0xff]
      %v3154 = vld [vmem:[%s3 + $0xce8] sm:$0xff]
      %v3155 = vld [vmem:[%s3 + $0xcf0] sm:$0xff]
      %v3156 = vld [vmem:[%s3 + $0xcf8] sm:$0xff]
      %v3157 = vld [vmem:[%s3 + $0xd00] sm:$0xff]
      %v3158 = vld [vmem:[%s3 + $0xd08] sm:$0xff]
      %v3159 = vld [vmem:[%s3 + $0xd10] sm:$0xff]
      %v3160 = vld [vmem:[%s3 + $0xd18] sm:$0xff]
      %v3161 = vld [vmem:[%s3 + $0xd20] sm:$0xff]
      %v3162 = vld [vmem:[%s3 + $0xd28] sm:$0xff]
      %v3163 = vld [vmem:[%s3 + $0xd30] sm:$0xff]
      %v3164 = vld [vmem:[%s3 + $0xd38] sm:$0xff]
      %v3165 = vld [vmem:[%s3 + $0xd40] sm:$0xff]
      %v3166 = vld [vmem:[%s3 + $0xd48] sm:$0xff]
      %v3167 = vld [vmem:[%s3 + $0xd50] sm:$0xff]
      %v3168 = vld [vmem:[%s3 + $0xd58] sm:$0xff]
      %v3169 = vld [vmem:[%s3 + $0xd60] sm:$0xff]
      %v3170 = vld [vmem:[%s3 + $0xd68] sm:$0xff]
      %v3171 = vld [vmem:[%s3 + $0xd70] sm:$0xff]
      %v3172 = vld [vmem:[%s3 + $0xd78] sm:$0xff]
      %v3173 = vld [vmem:[%s3 + $0xd80] sm:$0xff]
      %v3174 = vld [vmem:[%s3 + $0xd88] sm:$0xff]
      %v3175 = vld [vmem:[%s3 + $0xd90] sm:$0xff]
      %v3176 = vld [vmem:[%s3 + $0xd98] sm:$0xff]
      %v3177 = vld [vmem:[%s3 + $0xda0] sm:$0xff]
      %v3178 = vld [vmem:[%s3 + $0xda8] sm:$0xff]
      %v3179 = vld [vmem:[%s3 + $0xdb0] sm:$0xff]
      %v3180 = vld [vmem:[%s3 + $0xdb8] sm:$0xff]
      %v3181 = vld [vmem:[%s3 + $0xdc0] sm:$0xff]
      %v3182 = vld [vmem:[%s3 + $0xdc8] sm:$0xff]
      %v3183 = vld [vmem:[%s3 + $0xdd0] sm:$0xff]
      %v3184 = vld [vmem:[%s3 + $0xdd8] sm:$0xff]
      %v3185 = vld [vmem:[%s3 + $0xde0] sm:$0xff]
      %v3186 = vld [vmem:[%s3 + $0xde8] sm:$0xff]
      %v3187 = vld [vmem:[%s3 + $0xdf0] sm:$0xff]
      %v3188 = vld [vmem:[%s3 + $0xdf8] sm:$0xff]
      %v3189 = vld [vmem:[%s3 + $0xe00] sm:$0xff]
      %v3190 = vld [vmem:[%s3 + $0xe08] sm:$0xff]
      %v3191 = vld [vmem:[%s3 + $0xe10] sm:$0xff]
      %v3192 = vld [vmem:[%s3 + $0xe18] sm:$0xff]
      %v3193 = vld [vmem:[%s3 + $0xe20] sm:$0xff]
      %v3194 = vld [vmem:[%s3 + $0xe28] sm:$0xff]
      %v3195 = vld [vmem:[%s3 + $0xe30] sm:$0xff]
      %v3196 = vld [vmem:[%s3 + $0xe38] sm:$0xff]
      %v3197 = vld [vmem:[%s3 + $0xe40] sm:$0xff]
      %v3198 = vld [vmem:[%s3 + $0xe48] sm:$0xff]
      %v3199 = vld [vmem:[%s3 + $0xe50] sm:$0xff]
      %v3200 = vld [vmem:[%s3 + $0xe58] sm:$0xff]
      %v3201 = vld [vmem:[%s3 + $0xe60] sm:$0xff]
      %v3202 = vld [vmem:[%s3 + $0xe68] sm:$0xff]
      %v3203 = vld [vmem:[%s3 + $0xe70] sm:$0xff]
      %v3204 = vld [vmem:[%s3 + $0xe78] sm:$0xff]
      %v3205 = vld [vmem:[%s3 + $0xe80] sm:$0xff]
      %v3206 = vld [vmem:[%s3 + $0xe88] sm:$0xff]
      %v3207 = vld [vmem:[%s3 + $0xe90] sm:$0xff]
      %v3208 = vld [vmem:[%s3 + $0xe98] sm:$0xff]
      %v3209 = vld [vmem:[%s3 + $0xea0] sm:$0xff]
      %v3210 = vld [vmem:[%s3 + $0xea8] sm:$0xff]
      %v3211 = vld [vmem:[%s3 + $0xeb0] sm:$0xff]
      %v3212 = vld [vmem:[%s3 + $0xeb8] sm:$0xff]
      %v3213 = vld [vmem:[%s3 + $0xec0] sm:$0xff]
      %v3214 = vld [vmem:[%s3 + $0xec8] sm:$0xff]
      %v3215 = vld [vmem:[%s3 + $0xed0] sm:$0xff]
      %v3216 = vld [vmem:[%s3 + $0xed8] sm:$0xff]
      %v3217 = vld [vmem:[%s3 + $0xee0] sm:$0xff]
      %v3218 = vld [vmem:[%s3 + $0xee8] sm:$0xff]
      %v3219 = vld [vmem:[%s3 + $0xef0] sm:$0xff]
      %v3220 = vld [vmem:[%s3 + $0xef8] sm:$0xff]
      %v3221 = vld [vmem:[%s3 + $0xf00] sm:$0xff]
      %v3222 = vld [vmem:[%s3 + $0xf08] sm:$0xff]
      %v3223 = vld [vmem:[%s3 + $0xf10] sm:$0xff]
      %v3224 = vld [vmem:[%s3 + $0xf18] sm:$0xff]
      %v3225 = vld [vmem:[%s3 + $0xf20] sm:$0xff]
      %v3226 = vld [vmem:[%s3 + $0xf28] sm:$0xff]
      %v3227 = vld [vmem:[%s3 + $0xf30] sm:$0xff]
      %v3228 = vld [vmem:[%s3 + $0xf38] sm:$0xff]
      %v3229 = vld [vmem:[%s3 + $0xf40] sm:$0xff]
      %v3230 = vld [vmem:[%s3 + $0xf48] sm:$0xff]
      %v3231 = vld [vmem:[%s3 + $0xf50] sm:$0xff]
      %v3232 = vld [vmem:[%s3 + $0xf58] sm:$0xff]
      %v3233 = vld [vmem:[%s3 + $0xf60] sm:$0xff]
      %v3234 = vld [vmem:[%s3 + $0xf68] sm:$0xff]
      %v3235 = vld [vmem:[%s3 + $0xf70] sm:$0xff]
      %v3236 = vld [vmem:[%s3 + $0xf78] sm:$0xff]
      %v3237 = vld [vmem:[%s3 + $0xf80] sm:$0xff]
      %v3238 = vld [vmem:[%s3 + $0xf88] sm:$0xff]
      %v3239 = vld [vmem:[%s3 + $0xf90] sm:$0xff]
      %v3240 = vld [vmem:[%s3 + $0xf98] sm:$0xff]
      %v3241 = vld [vmem:[%s3 + $0xfa0] sm:$0xff]
      %v3242 = vld [vmem:[%s3 + $0xfa8] sm:$0xff]
      %v3243 = vld [vmem:[%s3 + $0xfb0] sm:$0xff]
      %v3244 = vld [vmem:[%s3 + $0xfb8] sm:$0xff]
      %v3245 = vld [vmem:[%s3 + $0xfc0] sm:$0xff]
      %v3246 = vld [vmem:[%s3 + $0xfc8] sm:$0xff]
      %v3247 = vld [vmem:[%s3 + $0xfd0] sm:$0xff]
      %v3248 = vld [vmem:[%s3 + $0xfd8] sm:$0xff]
      %v3249 = vld [vmem:[%s3 + $0xfe0] sm:$0xff]
      %v3250 = vld [vmem:[%s3 + $0xfe8] sm:$0xff]
      %v3251 = vld [vmem:[%s3 + $0xff0] sm:$0xff]
      %v3252 = vld [vmem:[%s3 + $0xff8] sm:$0xff]
      %v3253 = vld [vmem:[%s4] sm:$0xf]
      %v3255 = vperm.slane %v3253, 0
      %v3256 = vperm.slane %v3253, 1
      %v3257 = vperm.slane %v3253, 2
      %v3258 = vperm.slane %v3253, 3
      %3263 = vmatpush.msra.mxu0 %v2801
      %3264 = vmatpush.msra.mxu0 %v2797
      %3265 = vmatpush.msra.mxu0 %v2793
      %3266 = vmatpush.msra.mxu0 %v2789
      %3267 = vmatpush.msra.mxu0 %v2785
      %3268 = vmatpush.msra.mxu0 %v2781
      %3269 = vmatpush.msra.mxu0 %v2777
      %3270 = vmatpush.msra.mxu0 %v2773
      %3271 = vmatpush.msra.mxu0 %v2769
      %3272 = vmatpush.msra.mxu0 %v2765
      %3273 = vmatpush.msra.mxu0 %v2761
      %3274 = vmatpush.msra.mxu0 %v2757
      %3275 = vmatpush.msra.mxu0 %v2753
      %3276 = vmatpush.msra.mxu0 %v2749
      %3277 = vmatpush.msra.mxu0 %v2745
      %3278 = vmatpush.msra.mxu0 %v2741
      %3279 = vmatmul.f32.gmra.mxu0 %v2733
      %v3280 = vpop.f32.mrf.mxu0
      %v3281 = vadd.f32 %v3255, %v3280
      %3282 = vdwg.mxu0
      %3283 = vmatpush.msra.mxu0 %v2865
      %3284 = vmatpush.msra.mxu0 %v2861
      %3285 = vmatpush.msra.mxu0 %v2857
      %3286 = vmatpush.msra.mxu0 %v2853
      %3287 = vmatpush.msra.mxu0 %v2849
      %3288 = vmatpush.msra.mxu0 %v2845
      %3289 = vmatpush.msra.mxu0 %v2841
      %3290 = vmatpush.msra.mxu0 %v2837
      %3291 = vmatpush.msra.mxu0 %v2833
      %3292 = vmatpush.msra.mxu0 %v2829
      %3293 = vmatpush.msra.mxu0 %v2825
      %3294 = vmatpush.msra.mxu0 %v2821
      %3295 = vmatpush.msra.mxu0 %v2817
      %3296 = vmatpush.msra.mxu0 %v2813
      %3297 = vmatpush.msra.mxu0 %v2809
      %3298 = vmatpush.msra.mxu0 %v2805
      %3299 = vmatmul.f32.gmra.mxu0 %v2734
      %v3300 = vpop.f32.mrf.mxu0
      %v3301 = vadd.f32 %v3281, %v3300
      %3302 = vdwg.mxu0
      %3303 = vmatpush.msra.mxu0 %v2929
      %3304 = vmatpush.msra.mxu0 %v2925
      %3305 = vmatpush.msra.mxu0 %v2921
      %3306 = vmatpush.msra.mxu0 %v2917
      %3307 = vmatpush.msra.mxu0 %v2913
      %3308 = vmatpush.msra.mxu0 %v2909
      %3309 = vmatpush.msra.mxu0 %v2905
      %3310 = vmatpush.msra.mxu0 %v2901
      %3311 = vmatpush.msra.mxu0 %v2897
      %3312 = vmatpush.msra.mxu0 %v2893
      %3313 = vmatpush.msra.mxu0 %v2889
      %3314 = vmatpush.msra.mxu0 %v2885
      %3315 = vmatpush.msra.mxu0 %v2881
      %3316 = vmatpush.msra.mxu0 %v2877
      %3317 = vmatpush.msra.mxu0 %v2873
      %3318 = vmatpush.msra.mxu0 %v2869
      %3319 = vmatmul.f32.gmra.mxu0 %v2735
      %v3320 = vpop.f32.mrf.mxu0
      %v3321 = vadd.f32 %v3301, %v3320
      %3322 = vdwg.mxu0
      %3323 = vmatpush.msra.mxu0 %v2993
      %3324 = vmatpush.msra.mxu0 %v2989
      %3325 = vmatpush.msra.mxu0 %v2985
      %3326 = vmatpush.msra.mxu0 %v2981
      %3327 = vmatpush.msra.mxu0 %v2977
      %3328 = vmatpush.msra.mxu0 %v2973
      %3329 = vmatpush.msra.mxu0 %v2969
      %3330 = vmatpush.msra.mxu0 %v2965
      %3331 = vmatpush.msra.mxu0 %v2961
      %3332 = vmatpush.msra.mxu0 %v2957
      %3333 = vmatpush.msra.mxu0 %v2953
      %3334 = vmatpush.msra.mxu0 %v2949
      %3335 = vmatpush.msra.mxu0 %v2945
      %3336 = vmatpush.msra.mxu0 %v2941
      %3337 = vmatpush.msra.mxu0 %v2937
      %3338 = vmatpush.msra.mxu0 %v2933
      %3339 = vmatmul.f32.gmra.mxu0 %v2736
      %v3340 = vpop.f32.mrf.mxu0
      %v3341 = vadd.f32 %v3321, %v3340
      %3342 = vdwg.mxu0
      %3343 = vmatpush.msra.mxu0 %v3057
      %3344 = vmatpush.msra.mxu0 %v3053
      %3345 = vmatpush.msra.mxu0 %v3049
      %3346 = vmatpush.msra.mxu0 %v3045
      %3347 = vmatpush.msra.mxu0 %v3041
      %3348 = vmatpush.msra.mxu0 %v3037
      %3349 = vmatpush.msra.mxu0 %v3033
      %3350 = vmatpush.msra.mxu0 %v3029
      %3351 = vmatpush.msra.mxu0 %v3025
      %3352 = vmatpush.msra.mxu0 %v3021
      %3353 = vmatpush.msra.mxu0 %v3017
      %3354 = vmatpush.msra.mxu0 %v3013
      %3355 = vmatpush.msra.mxu0 %v3009
      %3356 = vmatpush.msra.mxu0 %v3005
      %3357 = vmatpush.msra.mxu0 %v3001
      %3358 = vmatpush.msra.mxu0 %v2997
      %3359 = vmatmul.f32.gmra.mxu0 %v2737
      %v3360 = vpop.f32.mrf.mxu0
      %v3361 = vadd.f32 %v3341, %v3360
      %3362 = vdwg.mxu0
      %3363 = vmatpush.msra.mxu0 %v3121
      %3364 = vmatpush.msra.mxu0 %v3117
      %3365 = vmatpush.msra.mxu0 %v3113
      %3366 = vmatpush.msra.mxu0 %v3109
      %3367 = vmatpush.msra.mxu0 %v3105
      %3368 = vmatpush.msra.mxu0 %v3101
      %3369 = vmatpush.msra.mxu0 %v3097
      %3370 = vmatpush.msra.mxu0 %v3093
      %3371 = vmatpush.msra.mxu0 %v3089
      %3372 = vmatpush.msra.mxu0 %v3085
      %3373 = vmatpush.msra.mxu0 %v3081
      %3374 = vmatpush.msra.mxu0 %v3077
      %3375 = vmatpush.msra.mxu0 %v3073
      %3376 = vmatpush.msra.mxu0 %v3069
      %3377 = vmatpush.msra.mxu0 %v3065
      %3378 = vmatpush.msra.mxu0 %v3061
      %3379 = vmatmul.f32.gmra.mxu0 %v2738
      %v3380 = vpop.f32.mrf.mxu0
      %v3381 = vadd.f32 %v3361, %v3380
      %3382 = vdwg.mxu0
      %3383 = vmatpush.msra.mxu0 %v3185
      %3384 = vmatpush.msra.mxu0 %v3181
      %3385 = vmatpush.msra.mxu0 %v3177
      %3386 = vmatpush.msra.mxu0 %v3173
      %3387 = vmatpush.msra.mxu0 %v3169
      %3388 = vmatpush.msra.mxu0 %v3165
      %3389 = vmatpush.msra.mxu0 %v3161
      %3390 = vmatpush.msra.mxu0 %v3157
      %3391 = vmatpush.msra.mxu0 %v3153
      %3392 = vmatpush.msra.mxu0 %v3149
      %3393 = vmatpush.msra.mxu0 %v3145
      %3394 = vmatpush.msra.mxu0 %v3141
      %3395 = vmatpush.msra.mxu0 %v3137
      %3396 = vmatpush.msra.mxu0 %v3133
      %3397 = vmatpush.msra.mxu0 %v3129
      %3398 = vmatpush.msra.mxu0 %v3125
      %3399 = vmatmul.f32.gmra.mxu0 %v2739
      %v3400 = vpop.f32.mrf.mxu0
      %v3401 = vadd.f32 %v3381, %v3400
      %3402 = vdwg.mxu0
      %3403 = vmatpush.msra.mxu0 %v3249
      %3404 = vmatpush.msra.mxu0 %v3245
      %3405 = vmatpush.msra.mxu0 %v3241
      %3406 = vmatpush.msra.mxu0 %v3237
      %3407 = vmatpush.msra.mxu0 %v3233
      %3408 = vmatpush.msra.mxu0 %v3229
      %3409 = vmatpush.msra.mxu0 %v3225
      %3410 = vmatpush.msra.mxu0 %v3221
      %3411 = vmatpush.msra.mxu0 %v3217
      %3412 = vmatpush.msra.mxu0 %v3213
      %3413 = vmatpush.msra.mxu0 %v3209
      %3414 = vmatpush.msra.mxu0 %v3205
      %3415 = vmatpush.msra.mxu0 %v3201
      %3416 = vmatpush.msra.mxu0 %v3197
      %3417 = vmatpush.msra.mxu0 %v3193
      %3418 = vmatpush.msra.mxu0 %v3189
      %3419 = vmatmul.f32.gmra.mxu0 %v2740
      %v3420 = vpop.f32.mrf.mxu0
      %v3421 = vadd.f32 %v3401, %v3420
      %3422 = vdwg.mxu0
      %3423 = vmatpush.msra.mxu0 %v2802
      %3424 = vmatpush.msra.mxu0 %v2798
      %3425 = vmatpush.msra.mxu0 %v2794
      %3426 = vmatpush.msra.mxu0 %v2790
      %3427 = vmatpush.msra.mxu0 %v2786
      %3428 = vmatpush.msra.mxu0 %v2782
      %3429 = vmatpush.msra.mxu0 %v2778
      %3430 = vmatpush.msra.mxu0 %v2774
      %3431 = vmatpush.msra.mxu0 %v2770
      %3432 = vmatpush.msra.mxu0 %v2766
      %3433 = vmatpush.msra.mxu0 %v2762
      %3434 = vmatpush.msra.mxu0 %v2758
      %3435 = vmatpush.msra.mxu0 %v2754
      %3436 = vmatpush.msra.mxu0 %v2750
      %3437 = vmatpush.msra.mxu0 %v2746
      %3438 = vmatpush.msra.mxu0 %v2742
      %3439 = vmatmul.f32.gmra.mxu0 %v2733
      %v3440 = vpop.f32.mrf.mxu0
      %v3441 = vadd.f32 %v3256, %v3440
      %3442 = vdwg.mxu0
      %3443 = vmatpush.msra.mxu0 %v2866
      %3444 = vmatpush.msra.mxu0 %v2862
      %3445 = vmatpush.msra.mxu0 %v2858
      %3446 = vmatpush.msra.mxu0 %v2854
      %3447 = vmatpush.msra.mxu0 %v2850
      %3448 = vmatpush.msra.mxu0 %v2846
      %3449 = vmatpush.msra.mxu0 %v2842
      %3450 = vmatpush.msra.mxu0 %v2838
      %3451 = vmatpush.msra.mxu0 %v2834
      %3452 = vmatpush.msra.mxu0 %v2830
      %3453 = vmatpush.msra.mxu0 %v2826
      %3454 = vmatpush.msra.mxu0 %v2822
      %3455 = vmatpush.msra.mxu0 %v2818
      %3456 = vmatpush.msra.mxu0 %v2814
      %3457 = vmatpush.msra.mxu0 %v2810
      %3458 = vmatpush.msra.mxu0 %v2806
      %3459 = vmatmul.f32.gmra.mxu0 %v2734
      %v3460 = vpop.f32.mrf.mxu0
      %v3461 = vadd.f32 %v3441, %v3460
      %3462 = vdwg.mxu0
      %3463 = vmatpush.msra.mxu0 %v2930
      %3464 = vmatpush.msra.mxu0 %v2926
      %3465 = vmatpush.msra.mxu0 %v2922
      %3466 = vmatpush.msra.mxu0 %v2918
      %3467 = vmatpush.msra.mxu0 %v2914
      %3468 = vmatpush.msra.mxu0 %v2910
      %3469 = vmatpush.msra.mxu0 %v2906
      %3470 = vmatpush.msra.mxu0 %v2902
      %3471 = vmatpush.msra.mxu0 %v2898
      %3472 = vmatpush.msra.mxu0 %v2894
      %3473 = vmatpush.msra.mxu0 %v2890
      %3474 = vmatpush.msra.mxu0 %v2886
      %3475 = vmatpush.msra.mxu0 %v2882
      %3476 = vmatpush.msra.mxu0 %v2878
      %3477 = vmatpush.msra.mxu0 %v2874
      %3478 = vmatpush.msra.mxu0 %v2870
      %3479 = vmatmul.f32.gmra.mxu0 %v2735
      %v3480 = vpop.f32.mrf.mxu0
      %v3481 = vadd.f32 %v3461, %v3480
      %3482 = vdwg.mxu0
      %3483 = vmatpush.msra.mxu0 %v2994
      %3484 = vmatpush.msra.mxu0 %v2990
      %3485 = vmatpush.msra.mxu0 %v2986
      %3486 = vmatpush.msra.mxu0 %v2982
      %3487 = vmatpush.msra.mxu0 %v2978
      %3488 = vmatpush.msra.mxu0 %v2974
      %3489 = vmatpush.msra.mxu0 %v2970
      %3490 = vmatpush.msra.mxu0 %v2966
      %3491 = vmatpush.msra.mxu0 %v2962
      %3492 = vmatpush.msra.mxu0 %v2958
      %3493 = vmatpush.msra.mxu0 %v2954
      %3494 = vmatpush.msra.mxu0 %v2950
      %3495 = vmatpush.msra.mxu0 %v2946
      %3496 = vmatpush.msra.mxu0 %v2942
      %3497 = vmatpush.msra.mxu0 %v2938
      %3498 = vmatpush.msra.mxu0 %v2934
      %3499 = vmatmul.f32.gmra.mxu0 %v2736
      %v3500 = vpop.f32.mrf.mxu0
      %v3501 = vadd.f32 %v3481, %v3500
      %3502 = vdwg.mxu0
      %3503 = vmatpush.msra.mxu0 %v3058
      %3504 = vmatpush.msra.mxu0 %v3054
      %3505 = vmatpush.msra.mxu0 %v3050
      %3506 = vmatpush.msra.mxu0 %v3046
      %3507 = vmatpush.msra.mxu0 %v3042
      %3508 = vmatpush.msra.mxu0 %v3038
      %3509 = vmatpush.msra.mxu0 %v3034
      %3510 = vmatpush.msra.mxu0 %v3030
      %3511 = vmatpush.msra.mxu0 %v3026
      %3512 = vmatpush.msra.mxu0 %v3022
      %3513 = vmatpush.msra.mxu0 %v3018
      %3514 = vmatpush.msra.mxu0 %v3014
      %3515 = vmatpush.msra.mxu0 %v3010
      %3516 = vmatpush.msra.mxu0 %v3006
      %3517 = vmatpush.msra.mxu0 %v3002
      %3518 = vmatpush.msra.mxu0 %v2998
      %3519 = vmatmul.f32.gmra.mxu0 %v2737
      %v3520 = vpop.f32.mrf.mxu0
      %v3521 = vadd.f32 %v3501, %v3520
      %3522 = vdwg.mxu0
      %3523 = vmatpush.msra.mxu0 %v3122
      %3524 = vmatpush.msra.mxu0 %v3118
      %3525 = vmatpush.msra.mxu0 %v3114
      %3526 = vmatpush.msra.mxu0 %v3110
      %3527 = vmatpush.msra.mxu0 %v3106
      %3528 = vmatpush.msra.mxu0 %v3102
      %3529 = vmatpush.msra.mxu0 %v3098
      %3530 = vmatpush.msra.mxu0 %v3094
      %3531 = vmatpush.msra.mxu0 %v3090
      %3532 = vmatpush.msra.mxu0 %v3086
      %3533 = vmatpush.msra.mxu0 %v3082
      %3534 = vmatpush.msra.mxu0 %v3078
      %3535 = vmatpush.msra.mxu0 %v3074
      %3536 = vmatpush.msra.mxu0 %v3070
      %3537 = vmatpush.msra.mxu0 %v3066
      %3538 = vmatpush.msra.mxu0 %v3062
      %3539 = vmatmul.f32.gmra.mxu0 %v2738
      %v3540 = vpop.f32.mrf.mxu0
      %v3541 = vadd.f32 %v3521, %v3540
      %3542 = vdwg.mxu0
      %3543 = vmatpush.msra.mxu0 %v3186
      %3544 = vmatpush.msra.mxu0 %v3182
      %3545 = vmatpush.msra.mxu0 %v3178
      %3546 = vmatpush.msra.mxu0 %v3174
      %3547 = vmatpush.msra.mxu0 %v3170
      %3548 = vmatpush.msra.mxu0 %v3166
      %3549 = vmatpush.msra.mxu0 %v3162
      %3550 = vmatpush.msra.mxu0 %v3158
      %3551 = vmatpush.msra.mxu0 %v3154
      %3552 = vmatpush.msra.mxu0 %v3150
      %3553 = vmatpush.msra.mxu0 %v3146
      %3554 = vmatpush.msra.mxu0 %v3142
      %3555 = vmatpush.msra.mxu0 %v3138
      %3556 = vmatpush.msra.mxu0 %v3134
      %3557 = vmatpush.msra.mxu0 %v3130
      %3558 = vmatpush.msra.mxu0 %v3126
      %3559 = vmatmul.f32.gmra.mxu0 %v2739
      %v3560 = vpop.f32.mrf.mxu0
      %v3561 = vadd.f32 %v3541, %v3560
      %3562 = vdwg.mxu0
      %3563 = vmatpush.msra.mxu0 %v3250
      %3564 = vmatpush.msra.mxu0 %v3246
      %3565 = vmatpush.msra.mxu0 %v3242
      %3566 = vmatpush.msra.mxu0 %v3238
      %3567 = vmatpush.msra.mxu0 %v3234
      %3568 = vmatpush.msra.mxu0 %v3230
      %3569 = vmatpush.msra.mxu0 %v3226
      %3570 = vmatpush.msra.mxu0 %v3222
      %3571 = vmatpush.msra.mxu0 %v3218
      %3572 = vmatpush.msra.mxu0 %v3214
      %3573 = vmatpush.msra.mxu0 %v3210
      %3574 = vmatpush.msra.mxu0 %v3206
      %3575 = vmatpush.msra.mxu0 %v3202
      %3576 = vmatpush.msra.mxu0 %v3198
      %3577 = vmatpush.msra.mxu0 %v3194
      %3578 = vmatpush.msra.mxu0 %v3190
      %3579 = vmatmul.f32.gmra.mxu0 %v2740
      %v3580 = vpop.f32.mrf.mxu0
      %v3581 = vadd.f32 %v3561, %v3580
      %3582 = vdwg.mxu0
      %3583 = vmatpush.msra.mxu0 %v2803
      %3584 = vmatpush.msra.mxu0 %v2799
      %3585 = vmatpush.msra.mxu0 %v2795
      %3586 = vmatpush.msra.mxu0 %v2791
      %3587 = vmatpush.msra.mxu0 %v2787
      %3588 = vmatpush.msra.mxu0 %v2783
      %3589 = vmatpush.msra.mxu0 %v2779
      %3590 = vmatpush.msra.mxu0 %v2775
      %3591 = vmatpush.msra.mxu0 %v2771
      %3592 = vmatpush.msra.mxu0 %v2767
      %3593 = vmatpush.msra.mxu0 %v2763
      %3594 = vmatpush.msra.mxu0 %v2759
      %3595 = vmatpush.msra.mxu0 %v2755
      %3596 = vmatpush.msra.mxu0 %v2751
      %3597 = vmatpush.msra.mxu0 %v2747
      %3598 = vmatpush.msra.mxu0 %v2743
      %3599 = vmatmul.f32.gmra.mxu0 %v2733
      %v3600 = vpop.f32.mrf.mxu0
      %v3601 = vadd.f32 %v3257, %v3600
      %3602 = vdwg.mxu0
      %3603 = vmatpush.msra.mxu0 %v2867
      %3604 = vmatpush.msra.mxu0 %v2863
      %3605 = vmatpush.msra.mxu0 %v2859
      %3606 = vmatpush.msra.mxu0 %v2855
      %3607 = vmatpush.msra.mxu0 %v2851
      %3608 = vmatpush.msra.mxu0 %v2847
      %3609 = vmatpush.msra.mxu0 %v2843
      %3610 = vmatpush.msra.mxu0 %v2839
      %3611 = vmatpush.msra.mxu0 %v2835
      %3612 = vmatpush.msra.mxu0 %v2831
      %3613 = vmatpush.msra.mxu0 %v2827
      %3614 = vmatpush.msra.mxu0 %v2823
      %3615 = vmatpush.msra.mxu0 %v2819
      %3616 = vmatpush.msra.mxu0 %v2815
      %3617 = vmatpush.msra.mxu0 %v2811
      %3618 = vmatpush.msra.mxu0 %v2807
      %3619 = vmatmul.f32.gmra.mxu0 %v2734
      %v3620 = vpop.f32.mrf.mxu0
      %v3621 = vadd.f32 %v3601, %v3620
      %3622 = vdwg.mxu0
      %3623 = vmatpush.msra.mxu0 %v2931
      %3624 = vmatpush.msra.mxu0 %v2927
      %3625 = vmatpush.msra.mxu0 %v2923
      %3626 = vmatpush.msra.mxu0 %v2919
      %3627 = vmatpush.msra.mxu0 %v2915
      %3628 = vmatpush.msra.mxu0 %v2911
      %3629 = vmatpush.msra.mxu0 %v2907
      %3630 = vmatpush.msra.mxu0 %v2903
      %3631 = vmatpush.msra.mxu0 %v2899
      %3632 = vmatpush.msra.mxu0 %v2895
      %3633 = vmatpush.msra.mxu0 %v2891
      %3634 = vmatpush.msra.mxu0 %v2887
      %3635 = vmatpush.msra.mxu0 %v2883
      %3636 = vmatpush.msra.mxu0 %v2879
      %3637 = vmatpush.msra.mxu0 %v2875
      %3638 = vmatpush.msra.mxu0 %v2871
      %3639 = vmatmul.f32.gmra.mxu0 %v2735
      %v3640 = vpop.f32.mrf.mxu0
      %v3641 = vadd.f32 %v3621, %v3640
      %3642 = vdwg.mxu0
      %3643 = vmatpush.msra.mxu0 %v2995
      %3644 = vmatpush.msra.mxu0 %v2991
      %3645 = vmatpush.msra.mxu0 %v2987
      %3646 = vmatpush.msra.mxu0 %v2983
      %3647 = vmatpush.msra.mxu0 %v2979
      %3648 = vmatpush.msra.mxu0 %v2975
      %3649 = vmatpush.msra.mxu0 %v2971
      %3650 = vmatpush.msra.mxu0 %v2967
      %3651 = vmatpush.msra.mxu0 %v2963
      %3652 = vmatpush.msra.mxu0 %v2959
      %3653 = vmatpush.msra.mxu0 %v2955
      %3654 = vmatpush.msra.mxu0 %v2951
      %3655 = vmatpush.msra.mxu0 %v2947
      %3656 = vmatpush.msra.mxu0 %v2943
      %3657 = vmatpush.msra.mxu0 %v2939
      %3658 = vmatpush.msra.mxu0 %v2935
      %3659 = vmatmul.f32.gmra.mxu0 %v2736
      %v3660 = vpop.f32.mrf.mxu0
      %v3661 = vadd.f32 %v3641, %v3660
      %3662 = vdwg.mxu0
      %3663 = vmatpush.msra.mxu0 %v3059
      %3664 = vmatpush.msra.mxu0 %v3055
      %3665 = vmatpush.msra.mxu0 %v3051
      %3666 = vmatpush.msra.mxu0 %v3047
      %3667 = vmatpush.msra.mxu0 %v3043
      %3668 = vmatpush.msra.mxu0 %v3039
      %3669 = vmatpush.msra.mxu0 %v3035
      %3670 = vmatpush.msra.mxu0 %v3031
      %3671 = vmatpush.msra.mxu0 %v3027
      %3672 = vmatpush.msra.mxu0 %v3023
      %3673 = vmatpush.msra.mxu0 %v3019
      %3674 = vmatpush.msra.mxu0 %v3015
      %3675 = vmatpush.msra.mxu0 %v3011
      %3676 = vmatpush.msra.mxu0 %v3007
      %3677 = vmatpush.msra.mxu0 %v3003
      %3678 = vmatpush.msra.mxu0 %v2999
      %3679 = vmatmul.f32.gmra.mxu0 %v2737
      %v3680 = vpop.f32.mrf.mxu0
      %v3681 = vadd.f32 %v3661, %v3680
      %3682 = vdwg.mxu0
      %3683 = vmatpush.msra.mxu0 %v3123
      %3684 = vmatpush.msra.mxu0 %v3119
      %3685 = vmatpush.msra.mxu0 %v3115
      %3686 = vmatpush.msra.mxu0 %v3111
      %3687 = vmatpush.msra.mxu0 %v3107
      %3688 = vmatpush.msra.mxu0 %v3103
      %3689 = vmatpush.msra.mxu0 %v3099
      %3690 = vmatpush.msra.mxu0 %v3095
      %3691 = vmatpush.msra.mxu0 %v3091
      %3692 = vmatpush.msra.mxu0 %v3087
      %3693 = vmatpush.msra.mxu0 %v3083
      %3694 = vmatpush.msra.mxu0 %v3079
      %3695 = vmatpush.msra.mxu0 %v3075
      %3696 = vmatpush.msra.mxu0 %v3071
      %3697 = vmatpush.msra.mxu0 %v3067
      %3698 = vmatpush.msra.mxu0 %v3063
      %3699 = vmatmul.f32.gmra.mxu0 %v2738
      %v3700 = vpop.f32.mrf.mxu0
      %v3701 = vadd.f32 %v3681, %v3700
      %3702 = vdwg.mxu0
      %3703 = vmatpush.msra.mxu0 %v3187
      %3704 = vmatpush.msra.mxu0 %v3183
      %3705 = vmatpush.msra.mxu0 %v3179
      %3706 = vmatpush.msra.mxu0 %v3175
      %3707 = vmatpush.msra.mxu0 %v3171
      %3708 = vmatpush.msra.mxu0 %v3167
      %3709 = vmatpush.msra.mxu0 %v3163
      %3710 = vmatpush.msra.mxu0 %v3159
      %3711 = vmatpush.msra.mxu0 %v3155
      %3712 = vmatpush.msra.mxu0 %v3151
      %3713 = vmatpush.msra.mxu0 %v3147
      %3714 = vmatpush.msra.mxu0 %v3143
      %3715 = vmatpush.msra.mxu0 %v3139
      %3716 = vmatpush.msra.mxu0 %v3135
      %3717 = vmatpush.msra.mxu0 %v3131
      %3718 = vmatpush.msra.mxu0 %v3127
      %3719 = vmatmul.f32.gmra.mxu0 %v2739
      %v3720 = vpop.f32.mrf.mxu0
      %v3721 = vadd.f32 %v3701, %v3720
      %3722 = vdwg.mxu0
      %3723 = vmatpush.msra.mxu0 %v3251
      %3724 = vmatpush.msra.mxu0 %v3247
      %3725 = vmatpush.msra.mxu0 %v3243
      %3726 = vmatpush.msra.mxu0 %v3239
      %3727 = vmatpush.msra.mxu0 %v3235
      %3728 = vmatpush.msra.mxu0 %v3231
      %3729 = vmatpush.msra.mxu0 %v3227
      %3730 = vmatpush.msra.mxu0 %v3223
      %3731 = vmatpush.msra.mxu0 %v3219
      %3732 = vmatpush.msra.mxu0 %v3215
      %3733 = vmatpush.msra.mxu0 %v3211
      %3734 = vmatpush.msra.mxu0 %v3207
      %3735 = vmatpush.msra.mxu0 %v3203
      %3736 = vmatpush.msra.mxu0 %v3199
      %3737 = vmatpush.msra.mxu0 %v3195
      %3738 = vmatpush.msra.mxu0 %v3191
      %3739 = vmatmul.f32.gmra.mxu0 %v2740
      %v3740 = vpop.f32.mrf.mxu0
      %v3741 = vadd.f32 %v3721, %v3740
      %3742 = vdwg.mxu0
      %3743 = vmatpush.msra.mxu0 %v2804
      %3744 = vmatpush.msra.mxu0 %v2800
      %3745 = vmatpush.msra.mxu0 %v2796
      %3746 = vmatpush.msra.mxu0 %v2792
      %3747 = vmatpush.msra.mxu0 %v2788
      %3748 = vmatpush.msra.mxu0 %v2784
      %3749 = vmatpush.msra.mxu0 %v2780
      %3750 = vmatpush.msra.mxu0 %v2776
      %3751 = vmatpush.msra.mxu0 %v2772
      %3752 = vmatpush.msra.mxu0 %v2768
      %3753 = vmatpush.msra.mxu0 %v2764
      %3754 = vmatpush.msra.mxu0 %v2760
      %3755 = vmatpush.msra.mxu0 %v2756
      %3756 = vmatpush.msra.mxu0 %v2752
      %3757 = vmatpush.msra.mxu0 %v2748
      %3758 = vmatpush.msra.mxu0 %v2744
      %3759 = vmatmul.f32.gmra.mxu0 %v2733
      %v3760 = vpop.f32.mrf.mxu0
      %v3761 = vadd.f32 %v3258, %v3760
      %3762 = vdwg.mxu0
      %3763 = vmatpush.msra.mxu0 %v2868
      %3764 = vmatpush.msra.mxu0 %v2864
      %3765 = vmatpush.msra.mxu0 %v2860
      %3766 = vmatpush.msra.mxu0 %v2856
      %3767 = vmatpush.msra.mxu0 %v2852
      %3768 = vmatpush.msra.mxu0 %v2848
      %3769 = vmatpush.msra.mxu0 %v2844
      %3770 = vmatpush.msra.mxu0 %v2840
      %3771 = vmatpush.msra.mxu0 %v2836
      %3772 = vmatpush.msra.mxu0 %v2832
      %3773 = vmatpush.msra.mxu0 %v2828
      %3774 = vmatpush.msra.mxu0 %v2824
      %3775 = vmatpush.msra.mxu0 %v2820
      %3776 = vmatpush.msra.mxu0 %v2816
      %3777 = vmatpush.msra.mxu0 %v2812
      %3778 = vmatpush.msra.mxu0 %v2808
      %3779 = vmatmul.f32.gmra.mxu0 %v2734
      %v3780 = vpop.f32.mrf.mxu0
      %v3781 = vadd.f32 %v3761, %v3780
      %3782 = vdwg.mxu0
      %3783 = vmatpush.msra.mxu0 %v2932
      %3784 = vmatpush.msra.mxu0 %v2928
      %3785 = vmatpush.msra.mxu0 %v2924
      %3786 = vmatpush.msra.mxu0 %v2920
      %3787 = vmatpush.msra.mxu0 %v2916
      %3788 = vmatpush.msra.mxu0 %v2912
      %3789 = vmatpush.msra.mxu0 %v2908
      %3790 = vmatpush.msra.mxu0 %v2904
      %3791 = vmatpush.msra.mxu0 %v2900
      %3792 = vmatpush.msra.mxu0 %v2896
      %3793 = vmatpush.msra.mxu0 %v2892
      %3794 = vmatpush.msra.mxu0 %v2888
      %3795 = vmatpush.msra.mxu0 %v2884
      %3796 = vmatpush.msra.mxu0 %v2880
      %3797 = vmatpush.msra.mxu0 %v2876
      %3798 = vmatpush.msra.mxu0 %v2872
      %3799 = vmatmul.f32.gmra.mxu0 %v2735
      %v3800 = vpop.f32.mrf.mxu0
      %v3801 = vadd.f32 %v3781, %v3800
      %3802 = vdwg.mxu0
      %3803 = vmatpush.msra.mxu0 %v2996
      %3804 = vmatpush.msra.mxu0 %v2992
      %3805 = vmatpush.msra.mxu0 %v2988
      %3806 = vmatpush.msra.mxu0 %v2984
      %3807 = vmatpush.msra.mxu0 %v2980
      %3808 = vmatpush.msra.mxu0 %v2976
      %3809 = vmatpush.msra.mxu0 %v2972
      %3810 = vmatpush.msra.mxu0 %v2968
      %3811 = vmatpush.msra.mxu0 %v2964
      %3812 = vmatpush.msra.mxu0 %v2960
      %3813 = vmatpush.msra.mxu0 %v2956
      %3814 = vmatpush.msra.mxu0 %v2952
      %3815 = vmatpush.msra.mxu0 %v2948
      %3816 = vmatpush.msra.mxu0 %v2944
      %3817 = vmatpush.msra.mxu0 %v2940
      %3818 = vmatpush.msra.mxu0 %v2936
      %3819 = vmatmul.f32.gmra.mxu0 %v2736
      %v3820 = vpop.f32.mrf.mxu0
      %v3821 = vadd.f32 %v3801, %v3820
      %3822 = vdwg.mxu0
      %3823 = vmatpush.msra.mxu0 %v3060
      %3824 = vmatpush.msra.mxu0 %v3056
      %3825 = vmatpush.msra.mxu0 %v3052
      %3826 = vmatpush.msra.mxu0 %v3048
      %3827 = vmatpush.msra.mxu0 %v3044
      %3828 = vmatpush.msra.mxu0 %v3040
      %3829 = vmatpush.msra.mxu0 %v3036
      %3830 = vmatpush.msra.mxu0 %v3032
      %3831 = vmatpush.msra.mxu0 %v3028
      %3832 = vmatpush.msra.mxu0 %v3024
      %3833 = vmatpush.msra.mxu0 %v3020
      %3834 = vmatpush.msra.mxu0 %v3016
      %3835 = vmatpush.msra.mxu0 %v3012
      %3836 = vmatpush.msra.mxu0 %v3008
      %3837 = vmatpush.msra.mxu0 %v3004
      %3838 = vmatpush.msra.mxu0 %v3000
      %3839 = vmatmul.f32.gmra.mxu0 %v2737
      %v3840 = vpop.f32.mrf.mxu0
      %v3841 = vadd.f32 %v3821, %v3840
      %3842 = vdwg.mxu0
      %3843 = vmatpush.msra.mxu0 %v3124
      %3844 = vmatpush.msra.mxu0 %v3120
      %3845 = vmatpush.msra.mxu0 %v3116
      %3846 = vmatpush.msra.mxu0 %v3112
      %3847 = vmatpush.msra.mxu0 %v3108
      %3848 = vmatpush.msra.mxu0 %v3104
      %3849 = vmatpush.msra.mxu0 %v3100
      %3850 = vmatpush.msra.mxu0 %v3096
      %3851 = vmatpush.msra.mxu0 %v3092
      %3852 = vmatpush.msra.mxu0 %v3088
      %3853 = vmatpush.msra.mxu0 %v3084
      %3854 = vmatpush.msra.mxu0 %v3080
      %3855 = vmatpush.msra.mxu0 %v3076
      %3856 = vmatpush.msra.mxu0 %v3072
      %3857 = vmatpush.msra.mxu0 %v3068
      %3858 = vmatpush.msra.mxu0 %v3064
      %3859 = vmatmul.f32.gmra.mxu0 %v2738
      %v3860 = vpop.f32.mrf.mxu0
      %v3861 = vadd.f32 %v3841, %v3860
      %3862 = vdwg.mxu0
      %3863 = vmatpush.msra.mxu0 %v3188
      %3864 = vmatpush.msra.mxu0 %v3184
      %3865 = vmatpush.msra.mxu0 %v3180
      %3866 = vmatpush.msra.mxu0 %v3176
      %3867 = vmatpush.msra.mxu0 %v3172
      %3868 = vmatpush.msra.mxu0 %v3168
      %3869 = vmatpush.msra.mxu0 %v3164
      %3870 = vmatpush.msra.mxu0 %v3160
      %3871 = vmatpush.msra.mxu0 %v3156
      %3872 = vmatpush.msra.mxu0 %v3152
      %3873 = vmatpush.msra.mxu0 %v3148
      %3874 = vmatpush.msra.mxu0 %v3144
      %3875 = vmatpush.msra.mxu0 %v3140
      %3876 = vmatpush.msra.mxu0 %v3136
      %3877 = vmatpush.msra.mxu0 %v3132
      %3878 = vmatpush.msra.mxu0 %v3128
      %3879 = vmatmul.f32.gmra.mxu0 %v2739
      %v3880 = vpop.f32.mrf.mxu0
      %v3881 = vadd.f32 %v3861, %v3880
      %3882 = vdwg.mxu0
      %3883 = vmatpush.msra.mxu0 %v3252
      %3884 = vmatpush.msra.mxu0 %v3248
      %3885 = vmatpush.msra.mxu0 %v3244
      %3886 = vmatpush.msra.mxu0 %v3240
      %3887 = vmatpush.msra.mxu0 %v3236
      %3888 = vmatpush.msra.mxu0 %v3232
      %3889 = vmatpush.msra.mxu0 %v3228
      %3890 = vmatpush.msra.mxu0 %v3224
      %3891 = vmatpush.msra.mxu0 %v3220
      %3892 = vmatpush.msra.mxu0 %v3216
      %3893 = vmatpush.msra.mxu0 %v3212
      %3894 = vmatpush.msra.mxu0 %v3208
      %3895 = vmatpush.msra.mxu0 %v3204
      %3896 = vmatpush.msra.mxu0 %v3200
      %3897 = vmatpush.msra.mxu0 %v3196
      %3898 = vmatpush.msra.mxu0 %v3192
      %3899 = vmatmul.f32.gmra.mxu0 %v2740
      %v3900 = vpop.f32.mrf.mxu0
      %v3901 = vadd.f32 %v3881, %v3900
      %3902 = vdwg.mxu0
      %vm3903 = vcmp.ge.f32.partialorder %v3421, 0.0
      %vm3904 = vcmp.ge.f32.partialorder %v3581, 0.0
      %vm3905 = vcmp.ge.f32.partialorder %v3741, 0.0
      %vm3906 = vcmp.ge.f32.partialorder %v3901, 0.0
      %v3907 = vmul.f32 %v3421, 0.2
      %v3908 = vmul.f32 %v3581, 0.2
      %v3909 = vmul.f32 %v3741, 0.2
      %v3910 = vmul.f32 %v3901, 0.2
      %v3911 = vsel %vm3903, %v3421, %v3907
      %v3912 = vsel %vm3904, %v3581, %v3908
      %v3913 = vsel %vm3905, %v3741, %v3909
      %v3914 = vsel %vm3906, %v3901, %v3910
      %v3915 = vld [vmem:[%s5] sm:$0xff]
      %v3916 = vld [vmem:[%s5 + $0x8] sm:$0xff]
      %v3917 = vld [vmem:[%s5 + $0x10] sm:$0xff]
      %v3918 = vld [vmem:[%s5 + $0x18] sm:$0xff]
      %v3919 = vld [vmem:[%s5 + $0x20] sm:$0xff]
      %v3920 = vld [vmem:[%s5 + $0x28] sm:$0xff]
      %v3921 = vld [vmem:[%s5 + $0x30] sm:$0xff]
      %v3922 = vld [vmem:[%s5 + $0x38] sm:$0xff]
      %v3923 = vld [vmem:[%s5 + $0x40] sm:$0xff]
      %v3924 = vld [vmem:[%s5 + $0x48] sm:$0xff]
      %v3925 = vld [vmem:[%s5 + $0x50] sm:$0xff]
      %v3926 = vld [vmem:[%s5 + $0x58] sm:$0xff]
      %v3927 = vld [vmem:[%s5 + $0x60] sm:$0xff]
      %v3928 = vld [vmem:[%s5 + $0x68] sm:$0xff]
      %v3929 = vld [vmem:[%s5 + $0x70] sm:$0xff]
      %v3930 = vld [vmem:[%s5 + $0x78] sm:$0xff]
      %v3931 = vld [vmem:[%s5 + $0x80] sm:$0xff]
      %v3932 = vld [vmem:[%s5 + $0x88] sm:$0xff]
      %v3933 = vld [vmem:[%s5 + $0x90] sm:$0xff]
      %v3934 = vld [vmem:[%s5 + $0x98] sm:$0xff]
      %v3935 = vld [vmem:[%s5 + $0xa0] sm:$0xff]
      %v3936 = vld [vmem:[%s5 + $0xa8] sm:$0xff]
      %v3937 = vld [vmem:[%s5 + $0xb0] sm:$0xff]
      %v3938 = vld [vmem:[%s5 + $0xb8] sm:$0xff]
      %v3939 = vld [vmem:[%s5 + $0xc0] sm:$0xff]
      %v3940 = vld [vmem:[%s5 + $0xc8] sm:$0xff]
      %v3941 = vld [vmem:[%s5 + $0xd0] sm:$0xff]
      %v3942 = vld [vmem:[%s5 + $0xd8] sm:$0xff]
      %v3943 = vld [vmem:[%s5 + $0xe0] sm:$0xff]
      %v3944 = vld [vmem:[%s5 + $0xe8] sm:$0xff]
      %v3945 = vld [vmem:[%s5 + $0xf0] sm:$0xff]
      %v3946 = vld [vmem:[%s5 + $0xf8] sm:$0xff]
      %v3947 = vld [vmem:[%s5 + $0x100] sm:$0xff]
      %v3948 = vld [vmem:[%s5 + $0x108] sm:$0xff]
      %v3949 = vld [vmem:[%s5 + $0x110] sm:$0xff]
      %v3950 = vld [vmem:[%s5 + $0x118] sm:$0xff]
      %v3951 = vld [vmem:[%s5 + $0x120] sm:$0xff]
      %v3952 = vld [vmem:[%s5 + $0x128] sm:$0xff]
      %v3953 = vld [vmem:[%s5 + $0x130] sm:$0xff]
      %v3954 = vld [vmem:[%s5 + $0x138] sm:$0xff]
      %v3955 = vld [vmem:[%s5 + $0x140] sm:$0xff]
      %v3956 = vld [vmem:[%s5 + $0x148] sm:$0xff]
      %v3957 = vld [vmem:[%s5 + $0x150] sm:$0xff]
      %v3958 = vld [vmem:[%s5 + $0x158] sm:$0xff]
      %v3959 = vld [vmem:[%s5 + $0x160] sm:$0xff]
      %v3960 = vld [vmem:[%s5 + $0x168] sm:$0xff]
      %v3961 = vld [vmem:[%s5 + $0x170] sm:$0xff]
      %v3962 = vld [vmem:[%s5 + $0x178] sm:$0xff]
      %v3963 = vld [vmem:[%s5 + $0x180] sm:$0xff]
      %v3964 = vld [vmem:[%s5 + $0x188] sm:$0xff]
      %v3965 = vld [vmem:[%s5 + $0x190] sm:$0xff]
      %v3966 = vld [vmem:[%s5 + $0x198] sm:$0xff]
      %v3967 = vld [vmem:[%s5 + $0x1a0] sm:$0xff]
      %v3968 = vld [vmem:[%s5 + $0x1a8] sm:$0xff]
      %v3969 = vld [vmem:[%s5 + $0x1b0] sm:$0xff]
      %v3970 = vld [vmem:[%s5 + $0x1b8] sm:$0xff]
      %v3971 = vld [vmem:[%s5 + $0x1c0] sm:$0xff]
      %v3972 = vld [vmem:[%s5 + $0x1c8] sm:$0xff]
      %v3973 = vld [vmem:[%s5 + $0x1d0] sm:$0xff]
      %v3974 = vld [vmem:[%s5 + $0x1d8] sm:$0xff]
      %v3975 = vld [vmem:[%s5 + $0x1e0] sm:$0xff]
      %v3976 = vld [vmem:[%s5 + $0x1e8] sm:$0xff]
      %v3977 = vld [vmem:[%s5 + $0x1f0] sm:$0xff]
      %v3978 = vld [vmem:[%s5 + $0x1f8] sm:$0xff]
      %v3979 = vld [vmem:[%s5 + $0x200] sm:$0xff]
      %v3980 = vld [vmem:[%s5 + $0x208] sm:$0xff]
      %v3981 = vld [vmem:[%s5 + $0x210] sm:$0xff]
      %v3982 = vld [vmem:[%s5 + $0x218] sm:$0xff]
      %v3983 = vld [vmem:[%s5 + $0x220] sm:$0xff]
      %v3984 = vld [vmem:[%s5 + $0x228] sm:$0xff]
      %v3985 = vld [vmem:[%s5 + $0x230] sm:$0xff]
      %v3986 = vld [vmem:[%s5 + $0x238] sm:$0xff]
      %v3987 = vld [vmem:[%s5 + $0x240] sm:$0xff]
      %v3988 = vld [vmem:[%s5 + $0x248] sm:$0xff]
      %v3989 = vld [vmem:[%s5 + $0x250] sm:$0xff]
      %v3990 = vld [vmem:[%s5 + $0x258] sm:$0xff]
      %v3991 = vld [vmem:[%s5 + $0x260] sm:$0xff]
      %v3992 = vld [vmem:[%s5 + $0x268] sm:$0xff]
      %v3993 = vld [vmem:[%s5 + $0x270] sm:$0xff]
      %v3994 = vld [vmem:[%s5 + $0x278] sm:$0xff]
      %v3995 = vld [vmem:[%s5 + $0x280] sm:$0xff]
      %v3996 = vld [vmem:[%s5 + $0x288] sm:$0xff]
      %v3997 = vld [vmem:[%s5 + $0x290] sm:$0xff]
      %v3998 = vld [vmem:[%s5 + $0x298] sm:$0xff]
      %v3999 = vld [vmem:[%s5 + $0x2a0] sm:$0xff]
      %v4000 = vld [vmem:[%s5 + $0x2a8] sm:$0xff]
      %v4001 = vld [vmem:[%s5 + $0x2b0] sm:$0xff]
      %v4002 = vld [vmem:[%s5 + $0x2b8] sm:$0xff]
      %v4003 = vld [vmem:[%s5 + $0x2c0] sm:$0xff]
      %v4004 = vld [vmem:[%s5 + $0x2c8] sm:$0xff]
      %v4005 = vld [vmem:[%s5 + $0x2d0] sm:$0xff]
      %v4006 = vld [vmem:[%s5 + $0x2d8] sm:$0xff]
      %v4007 = vld [vmem:[%s5 + $0x2e0] sm:$0xff]
      %v4008 = vld [vmem:[%s5 + $0x2e8] sm:$0xff]
      %v4009 = vld [vmem:[%s5 + $0x2f0] sm:$0xff]
      %v4010 = vld [vmem:[%s5 + $0x2f8] sm:$0xff]
      %v4011 = vld [vmem:[%s5 + $0x300] sm:$0xff]
      %v4012 = vld [vmem:[%s5 + $0x308] sm:$0xff]
      %v4013 = vld [vmem:[%s5 + $0x310] sm:$0xff]
      %v4014 = vld [vmem:[%s5 + $0x318] sm:$0xff]
      %v4015 = vld [vmem:[%s5 + $0x320] sm:$0xff]
      %v4016 = vld [vmem:[%s5 + $0x328] sm:$0xff]
      %v4017 = vld [vmem:[%s5 + $0x330] sm:$0xff]
      %v4018 = vld [vmem:[%s5 + $0x338] sm:$0xff]
      %v4019 = vld [vmem:[%s5 + $0x340] sm:$0xff]
      %v4020 = vld [vmem:[%s5 + $0x348] sm:$0xff]
      %v4021 = vld [vmem:[%s5 + $0x350] sm:$0xff]
      %v4022 = vld [vmem:[%s5 + $0x358] sm:$0xff]
      %v4023 = vld [vmem:[%s5 + $0x360] sm:$0xff]
      %v4024 = vld [vmem:[%s5 + $0x368] sm:$0xff]
      %v4025 = vld [vmem:[%s5 + $0x370] sm:$0xff]
      %v4026 = vld [vmem:[%s5 + $0x378] sm:$0xff]
      %v4027 = vld [vmem:[%s5 + $0x380] sm:$0xff]
      %v4028 = vld [vmem:[%s5 + $0x388] sm:$0xff]
      %v4029 = vld [vmem:[%s5 + $0x390] sm:$0xff]
      %v4030 = vld [vmem:[%s5 + $0x398] sm:$0xff]
      %v4031 = vld [vmem:[%s5 + $0x3a0] sm:$0xff]
      %v4032 = vld [vmem:[%s5 + $0x3a8] sm:$0xff]
      %v4033 = vld [vmem:[%s5 + $0x3b0] sm:$0xff]
      %v4034 = vld [vmem:[%s5 + $0x3b8] sm:$0xff]
      %v4035 = vld [vmem:[%s5 + $0x3c0] sm:$0xff]
      %v4036 = vld [vmem:[%s5 + $0x3c8] sm:$0xff]
      %v4037 = vld [vmem:[%s5 + $0x3d0] sm:$0xff]
      %v4038 = vld [vmem:[%s5 + $0x3d8] sm:$0xff]
      %v4039 = vld [vmem:[%s5 + $0x3e0] sm:$0xff]
      %v4040 = vld [vmem:[%s5 + $0x3e8] sm:$0xff]
      %v4041 = vld [vmem:[%s5 + $0x3f0] sm:$0xff]
      %v4042 = vld [vmem:[%s5 + $0x3f8] sm:$0xff]
      %v4043 = vld [vmem:[%s6] sm:$0x3]
      %v4045 = vperm.slane %v4043, 0
      %v4046 = vperm.slane %v4043, 1
      %4049 = vmatpush.msra.mxu0 %v3945
      %4050 = vmatpush.msra.mxu0 %v3943
      %4051 = vmatpush.msra.mxu0 %v3941
      %4052 = vmatpush.msra.mxu0 %v3939
      %4053 = vmatpush.msra.mxu0 %v3937
      %4054 = vmatpush.msra.mxu0 %v3935
      %4055 = vmatpush.msra.mxu0 %v3933
      %4056 = vmatpush.msra.mxu0 %v3931
      %4057 = vmatpush.msra.mxu0 %v3929
      %4058 = vmatpush.msra.mxu0 %v3927
      %4059 = vmatpush.msra.mxu0 %v3925
      %4060 = vmatpush.msra.mxu0 %v3923
      %4061 = vmatpush.msra.mxu0 %v3921
      %4062 = vmatpush.msra.mxu0 %v3919
      %4063 = vmatpush.msra.mxu0 %v3917
      %4064 = vmatpush.msra.mxu0 %v3915
      %4065 = vmatmul.f32.gmra.mxu0 %v3911
      %v4066 = vpop.f32.mrf.mxu0
      %v4067 = vadd.f32 %v4045, %v4066
      %4068 = vdwg.mxu0
      %4069 = vmatpush.msra.mxu0 %v3977
      %4070 = vmatpush.msra.mxu0 %v3975
      %4071 = vmatpush.msra.mxu0 %v3973
      %4072 = vmatpush.msra.mxu0 %v3971
      %4073 = vmatpush.msra.mxu0 %v3969
      %4074 = vmatpush.msra.mxu0 %v3967
      %4075 = vmatpush.msra.mxu0 %v3965
      %4076 = vmatpush.msra.mxu0 %v3963
      %4077 = vmatpush.msra.mxu0 %v3961
      %4078 = vmatpush.msra.mxu0 %v3959
      %4079 = vmatpush.msra.mxu0 %v3957
      %4080 = vmatpush.msra.mxu0 %v3955
      %4081 = vmatpush.msra.mxu0 %v3953
      %4082 = vmatpush.msra.mxu0 %v3951
      %4083 = vmatpush.msra.mxu0 %v3949
      %4084 = vmatpush.msra.mxu0 %v3947
      %4085 = vmatmul.f32.gmra.mxu0 %v3912
      %v4086 = vpop.f32.mrf.mxu0
      %v4087 = vadd.f32 %v4067, %v4086
      %4088 = vdwg.mxu0
      %4089 = vmatpush.msra.mxu0 %v4009
      %4090 = vmatpush.msra.mxu0 %v4007
      %4091 = vmatpush.msra.mxu0 %v4005
      %4092 = vmatpush.msra.mxu0 %v4003
      %4093 = vmatpush.msra.mxu0 %v4001
      %4094 = vmatpush.msra.mxu0 %v3999
      %4095 = vmatpush.msra.mxu0 %v3997
      %4096 = vmatpush.msra.mxu0 %v3995
      %4097 = vmatpush.msra.mxu0 %v3993
      %4098 = vmatpush.msra.mxu0 %v3991
      %4099 = vmatpush.msra.mxu0 %v3989
      %4100 = vmatpush.msra.mxu0 %v3987
      %4101 = vmatpush.msra.mxu0 %v3985
      %4102 = vmatpush.msra.mxu0 %v3983
      %4103 = vmatpush.msra.mxu0 %v3981
      %4104 = vmatpush.msra.mxu0 %v3979
      %4105 = vmatmul.f32.gmra.mxu0 %v3913
      %v4106 = vpop.f32.mrf.mxu0
      %v4107 = vadd.f32 %v4087, %v4106
      %4108 = vdwg.mxu0
      %4109 = vmatpush.msra.mxu0 %v4041
      %4110 = vmatpush.msra.mxu0 %v4039
      %4111 = vmatpush.msra.mxu0 %v4037
      %4112 = vmatpush.msra.mxu0 %v4035
      %4113 = vmatpush.msra.mxu0 %v4033
      %4114 = vmatpush.msra.mxu0 %v4031
      %4115 = vmatpush.msra.mxu0 %v4029
      %4116 = vmatpush.msra.mxu0 %v4027
      %4117 = vmatpush.msra.mxu0 %v4025
      %4118 = vmatpush.msra.mxu0 %v4023
      %4119 = vmatpush.msra.mxu0 %v4021
      %4120 = vmatpush.msra.mxu0 %v4019
      %4121 = vmatpush.msra.mxu0 %v4017
      %4122 = vmatpush.msra.mxu0 %v4015
      %4123 = vmatpush.msra.mxu0 %v4013
      %4124 = vmatpush.msra.mxu0 %v4011
      %4125 = vmatmul.f32.gmra.mxu0 %v3914
      %v4126 = vpop.f32.mrf.mxu0
      %v4127 = vadd.f32 %v4107, %v4126
      %4128 = vdwg.mxu0
      %4129 = vmatpush.msra.mxu0 %v3946
      %4130 = vmatpush.msra.mxu0 %v3944
      %4131 = vmatpush.msra.mxu0 %v3942
      %4132 = vmatpush.msra.mxu0 %v3940
      %4133 = vmatpush.msra.mxu0 %v3938
      %4134 = vmatpush.msra.mxu0 %v3936
      %4135 = vmatpush.msra.mxu0 %v3934
      %4136 = vmatpush.msra.mxu0 %v3932
      %4137 = vmatpush.msra.mxu0 %v3930
      %4138 = vmatpush.msra.mxu0 %v3928
      %4139 = vmatpush.msra.mxu0 %v3926
      %4140 = vmatpush.msra.mxu0 %v3924
      %4141 = vmatpush.msra.mxu0 %v3922
      %4142 = vmatpush.msra.mxu0 %v3920
      %4143 = vmatpush.msra.mxu0 %v3918
      %4144 = vmatpush.msra.mxu0 %v3916
      %4145 = vmatmul.f32.gmra.mxu0 %v3911
      %v4146 = vpop.f32.mrf.mxu0
      %v4147 = vadd.f32 %v4046, %v4146
      %4148 = vdwg.mxu0
      %4149 = vmatpush.msra.mxu0 %v3978
      %4150 = vmatpush.msra.mxu0 %v3976
      %4151 = vmatpush.msra.mxu0 %v3974
      %4152 = vmatpush.msra.mxu0 %v3972
      %4153 = vmatpush.msra.mxu0 %v3970
      %4154 = vmatpush.msra.mxu0 %v3968
      %4155 = vmatpush.msra.mxu0 %v3966
      %4156 = vmatpush.msra.mxu0 %v3964
      %4157 = vmatpush.msra.mxu0 %v3962
      %4158 = vmatpush.msra.mxu0 %v3960
      %4159 = vmatpush.msra.mxu0 %v3958
      %4160 = vmatpush.msra.mxu0 %v3956
      %4161 = vmatpush.msra.mxu0 %v3954
      %4162 = vmatpush.msra.mxu0 %v3952
      %4163 = vmatpush.msra.mxu0 %v3950
      %4164 = vmatpush.msra.mxu0 %v3948
      %4165 = vmatmul.f32.gmra.mxu0 %v3912
      %v4166 = vpop.f32.mrf.mxu0
      %v4167 = vadd.f32 %v4147, %v4166
      %4168 = vdwg.mxu0
      %4169 = vmatpush.msra.mxu0 %v4010
      %4170 = vmatpush.msra.mxu0 %v4008
      %4171 = vmatpush.msra.mxu0 %v4006
      %4172 = vmatpush.msra.mxu0 %v4004
      %4173 = vmatpush.msra.mxu0 %v4002
      %4174 = vmatpush.msra.mxu0 %v4000
      %4175 = vmatpush.msra.mxu0 %v3998
      %4176 = vmatpush.msra.mxu0 %v3996
      %4177 = vmatpush.msra.mxu0 %v3994
      %4178 = vmatpush.msra.mxu0 %v3992
      %4179 = vmatpush.msra.mxu0 %v3990
      %4180 = vmatpush.msra.mxu0 %v3988
      %4181 = vmatpush.msra.mxu0 %v3986
      %4182 = vmatpush.msra.mxu0 %v3984
      %4183 = vmatpush.msra.mxu0 %v3982
      %4184 = vmatpush.msra.mxu0 %v3980
      %4185 = vmatmul.f32.gmra.mxu0 %v3913
      %v4186 = vpop.f32.mrf.mxu0
      %v4187 = vadd.f32 %v4167, %v4186
      %4188 = vdwg.mxu0
      %4189 = vmatpush.msra.mxu0 %v4042
      %4190 = vmatpush.msra.mxu0 %v4040
      %4191 = vmatpush.msra.mxu0 %v4038
      %4192 = vmatpush.msra.mxu0 %v4036
      %4193 = vmatpush.msra.mxu0 %v4034
      %4194 = vmatpush.msra.mxu0 %v4032
      %4195 = vmatpush.msra.mxu0 %v4030
      %4196 = vmatpush.msra.mxu0 %v4028
      %4197 = vmatpush.msra.mxu0 %v4026
      %4198 = vmatpush.msra.mxu0 %v4024
      %4199 = vmatpush.msra.mxu0 %v4022
      %4200 = vmatpush.msra.mxu0 %v4020
      %4201 = vmatpush.msra.mxu0 %v4018
      %4202 = vmatpush.msra.mxu0 %v4016
      %4203 = vmatpush.msra.mxu0 %v4014
      %4204 = vmatpush.msra.mxu0 %v4012
      %4205 = vmatmul.f32.gmra.mxu0 %v3914
      %v4206 = vpop.f32.mrf.mxu0
      %v4207 = vadd.f32 %v4187, %v4206
      %4208 = vdwg.mxu0
      %vm4209 = vcmp.ge.f32.partialorder %v4127, 0.0
      %vm4210 = vcmp.ge.f32.partialorder %v4207, 0.0
      %v4211 = vmul.f32 %v4127, 0.2
      %v4212 = vmul.f32 %v4207, 0.2
      %v4213 = vsel %vm4209, %v4127, %v4211
      %v4214 = vsel %vm4210, %v4207, %v4212
      %v4215 = vld [vmem:[%s7] sm:$0xff]
      %v4216 = vld [vmem:[%s7 + $0x8] sm:$0xff]
      %v4217 = vld [vmem:[%s7 + $0x10] sm:$0xff]
      %v4218 = vld [vmem:[%s7 + $0x18] sm:$0xff]
      %v4219 = vld [vmem:[%s7 + $0x20] sm:$0xff]
      %v4220 = vld [vmem:[%s7 + $0x28] sm:$0xff]
      %v4221 = vld [vmem:[%s7 + $0x30] sm:$0xff]
      %v4222 = vld [vmem:[%s7 + $0x38] sm:$0xff]
      %v4223 = vld [vmem:[%s7 + $0x40] sm:$0xff]
      %v4224 = vld [vmem:[%s7 + $0x48] sm:$0xff]
      %v4225 = vld [vmem:[%s7 + $0x50] sm:$0xff]
      %v4226 = vld [vmem:[%s7 + $0x58] sm:$0xff]
      %v4227 = vld [vmem:[%s7 + $0x60] sm:$0xff]
      %v4228 = vld [vmem:[%s7 + $0x68] sm:$0xff]
      %v4229 = vld [vmem:[%s7 + $0x70] sm:$0xff]
      %v4230 = vld [vmem:[%s7 + $0x78] sm:$0xff]
      %v4231 = vld [vmem:[%s7 + $0x80] sm:$0xff]
      %v4232 = vld [vmem:[%s7 + $0x88] sm:$0xff]
      %v4233 = vld [vmem:[%s7 + $0x90] sm:$0xff]
      %v4234 = vld [vmem:[%s7 + $0x98] sm:$0xff]
      %v4235 = vld [vmem:[%s7 + $0xa0] sm:$0xff]
      %v4236 = vld [vmem:[%s7 + $0xa8] sm:$0xff]
      %v4237 = vld [vmem:[%s7 + $0xb0] sm:$0xff]
      %v4238 = vld [vmem:[%s7 + $0xb8] sm:$0xff]
      %v4239 = vld [vmem:[%s7 + $0xc0] sm:$0xff]
      %v4240 = vld [vmem:[%s7 + $0xc8] sm:$0xff]
      %v4241 = vld [vmem:[%s7 + $0xd0] sm:$0xff]
      %v4242 = vld [vmem:[%s7 + $0xd8] sm:$0xff]
      %v4243 = vld [vmem:[%s7 + $0xe0] sm:$0xff]
      %v4244 = vld [vmem:[%s7 + $0xe8] sm:$0xff]
      %v4245 = vld [vmem:[%s7 + $0xf0] sm:$0xff]
      %v4246 = vld [vmem:[%s7 + $0xf8] sm:$0xff]
      %v4247 = vld [vmem:[%s8] sm:$0x1]
      %v4249 = vperm.slane %v4247, 0
      %4251 = vmatpush.msra.mxu0 %v4230
      %4252 = vmatpush.msra.mxu0 %v4229
      %4253 = vmatpush.msra.mxu0 %v4228
      %4254 = vmatpush.msra.mxu0 %v4227
      %4255 = vmatpush.msra.mxu0 %v4226
      %4256 = vmatpush.msra.mxu0 %v4225
      %4257 = vmatpush.msra.mxu0 %v4224
      %4258 = vmatpush.msra.mxu0 %v4223
      %4259 = vmatpush.msra.mxu0 %v4222
      %4260 = vmatpush.msra.mxu0 %v4221
      %4261 = vmatpush.msra.mxu0 %v4220
      %4262 = vmatpush.msra.mxu0 %v4219
      %4263 = vmatpush.msra.mxu0 %v4218
      %4264 = vmatpush.msra.mxu0 %v4217
      %4265 = vmatpush.msra.mxu0 %v4216
      %4266 = vmatpush.msra.mxu0 %v4215
      %4267 = vmatmul.f32.gmra.mxu0 %v4213
      %v4268 = vpop.f32.mrf.mxu0
      %v4269 = vadd.f32 %v4249, %v4268
      %4270 = vdwg.mxu0
      %4271 = vmatpush.msra.mxu0 %v4246
      %4272 = vmatpush.msra.mxu0 %v4245
      %4273 = vmatpush.msra.mxu0 %v4244
      %4274 = vmatpush.msra.mxu0 %v4243
      %4275 = vmatpush.msra.mxu0 %v4242
      %4276 = vmatpush.msra.mxu0 %v4241
      %4277 = vmatpush.msra.mxu0 %v4240
      %4278 = vmatpush.msra.mxu0 %v4239
      %4279 = vmatpush.msra.mxu0 %v4238
      %4280 = vmatpush.msra.mxu0 %v4237
      %4281 = vmatpush.msra.mxu0 %v4236
      %4282 = vmatpush.msra.mxu0 %v4235
      %4283 = vmatpush.msra.mxu0 %v4234
      %4284 = vmatpush.msra.mxu0 %v4233
      %4285 = vmatpush.msra.mxu0 %v4232
      %4286 = vmatpush.msra.mxu0 %v4231
      %4287 = vmatmul.f32.gmra.mxu0 %v4214
      %v4288 = vpop.f32.mrf.mxu0
      %v4289 = vadd.f32 %v4269, %v4288
      %4290 = vdwg.mxu0
      %vm4291 = vcmp.ge.f32.partialorder %v4289, 0.0
      %v4292 = vmul.f32 %v4289, 0.2
      %v4293 = vsel %vm4291, %v4289, %v4292
      %v4294 = vld [vmem:[%s9] sm:$0x1]
      %v4296 = vperm.slane %v4294, 0
      %v4298 = vmul.f32 %v4293, %v4296
      %4299 = vadd.xlane.f32.xlu0 %v4298
      %v4300 = vpop.xlane.xlu0 %4299
      %v4301 = vld [vmem:[#allocation2] sm:$0x1]
      %v4303 = vperm.slane %v4301, 0
      %v4305 = vadd.f32 %v4300, %v4303
      %vm4306 = vcmask 7168
      %4307 = vst.msk [vmem:[%s386] sm:$0xff] %vm4306, %v4305
      %p4308 = scmp.lt.s32.totalorder %s24, 1
      %s4309 = scalar_select %p4308, %s24, 1
      %s4310 = smul.addr %s4309, 8
      %s4311 = scalar_lea.vmem %s11, %s4310
      // Predicated region
      $region65: #{discriminator_forward.1} parent=63 // pred_check
        %p4312 = pneg %p278
      $region66: #{discriminator_forward.1} parent=63 // pred_check_branch
        %4314 = sbr.rel (%p4312) target = $region68
      $region67: #{discriminator_forward.1} parent=63 // pred_region
        _
      $region68: #{discriminator_forward.1} parent=63 // pred_fallthru
        _
    $region64: #{discriminator_forward.1} parent=5 // pred_fallthru
      _
    %p4315 = scmp.le.s32.totalorder 2, %s19
    // Predicated region
    $region69: #{discriminator_forward.1} parent=5 // pred_check
      %p4316 = pneg %p4315
    $region70: #{discriminator_forward.1} parent=5 // pred_check_branch
      %4318 = sbr.rel (%p4316) target = $region72
    $region71: #{discriminator_forward.1} parent=5 // pred_region
      %s4319 = ssub.s32 %s19, 2
      // Predicated region
      $region73: #{discriminator_forward.1} parent=71 // pred_check
        %p4320 = pneg %p284
      $region74: #{discriminator_forward.1} parent=71 // pred_check_branch
        %4322 = sbr.rel (%p4320) target = $region76
      $region75: #{discriminator_forward.1} parent=71 // pred_region
        %p4323 = scmp.lt.s32.totalorder %s25, 1
        %s4324 = scalar_select %p4323, %s25, 1
        %s4325 = smul.addr %s4324, 8
        %s4326 = scalar_lea.vmem %s11, %s4325
      $region76: #{discriminator_forward.1} parent=71 // pred_fallthru
        _
    $region72: #{discriminator_forward.1} parent=5 // pred_fallthru
      _
  $region6: #{discriminator_forward.1} parent=0 // loop_footer
    %s23 = sadd.s32 1, %s19
  $region7: #{discriminator_forward.1} parent=0 // loop_footer_branch
    %18 = sbr.rel target = $region3
  $region8: #{discriminator_forward.1} parent=0 // loop_exit
    _

</llo_original>
